<compile_context>
chip_gen: v5e
topology: v5e:2x2
jax: 0.10.0
libtpu: 0.0.40
codegen_flags: <defaults>
</compile_context>

<pallas_src>
import numpy as np
import jax
import jax.numpy as jnp
from jax.experimental import pallas as pl
from jax.experimental.pallas import tpu as pltpu

# ----------------------------- configuration ---------------------------------
BATCH = 8
N_SAMPLES = 8
AFFINE_EMB_DIM = 8          # E
COORD_FREQS = 4             # step embedder: 1 * (1 + 2*4) = 9 dims
POS_FREQS = 4               # feature embedder: E * (1 + 2*4) = 72 dims
HIDDEN = 32

COORD_EMB_DIM = 1 * (1 + 2 * COORD_FREQS)                 # 9
POS_EMB_DIM = AFFINE_EMB_DIM * (1 + 2 * POS_FREQS)        # 72

AFFINE_LAYERS = [4 + COORD_EMB_DIM, HIDDEN, HIDDEN, AFFINE_EMB_DIM * 5]   # 13->32->32->40
RENDER_LAYERS = [POS_EMB_DIM, HIDDEN, HIDDEN, 4]                          # 72->32->32->4

# ----------------------------- constant matrices (packed into the weight slab) --
_CFREQS = (2.0 ** np.arange(COORD_FREQS)).astype(np.float32)               # [1,2,4,8]
_PFREQS = (2.0 ** np.arange(POS_FREQS)).astype(np.float32)
# step-embed: arg = st * STEP_FREQ2 + STEP_PHASE ; sin(arg) = [sin(f*st) | cos(f*st)]
STEP_FREQ2 = np.concatenate([_CFREQS, _CFREQS]).reshape(1, 2 * COORD_FREQS)
STEP_PHASE = np.concatenate([np.zeros(COORD_FREQS, np.float32),
                             np.full(COORD_FREQS, np.pi / 2, np.float32)]).reshape(1, -1)
# (4, 4E): LC_T[k, 4e+k] = 1  -> lane-replicates local_coords over the E groups
LC_T = np.kron(np.ones((1, AFFINE_EMB_DIM), np.float32), np.eye(4, dtype=np.float32))
# (4E, E): SEL[4e+k, e] = 1   -> block-diagonal selector summing each 4-wide group
SEL = np.kron(np.eye(AFFINE_EMB_DIM, dtype=np.float32), np.ones((4, 1), np.float32))
# (E, E*F): POS_T[d, f*E+d] = 2^f -> folds freq scaling + lane replication for the PE
POS_T = np.kron(_PFREQS.reshape(1, POS_FREQS), np.eye(AFFINE_EMB_DIM, dtype=np.float32))
POS_T2 = np.concatenate([POS_T, POS_T], axis=1)                              # (E, 2*E*F) = (8, 64)
POS_PHASE = np.concatenate([np.zeros(AFFINE_EMB_DIM * POS_FREQS, np.float32),
                            np.full(AFFINE_EMB_DIM * POS_FREQS, np.pi / 2, np.float32)]
                           ).reshape(1, -1)                                  # (1, 64)

# ----------------------------- weight-slab layout (all starts 8-row aligned) ----
W_LANES = 64
A1A_R, A1S_R, A2_R, A3_R = 0, 8, 16, 48          # affine MLP
R1X_R, R1S_R, R2_R, R3_R = 80, 88, 152, 184      # render MLP
BIAS_R = 216                                     # rows: ab1, ab2, ab3, rb1, rb2, rb3, 0, 0
LCT_R, SEL_R, POST_R, CST_R = 224, 232, 264, 272 # constants; CST rows: freq2, step_phase, pos_phase
W_ROWS = 280


# ----------------------------- shared math helpers ----------------------------
def _softplus_beta10(x):
    # matches F.softplus(x, beta=10) with default threshold=20 (linear when beta*x > 20)
    bx = x * 10.0
    safe = jnp.minimum(bx, 20.0)
    return jnp.where(bx > 20.0, x, jnp.log(1.0 + jnp.exp(safe)) / 10.0)


def _pos_embed_ref(x, n_freqs):
    """NeRF-style embedding, grouped layout: [x, sin(f*x) all freqs, cos(f*x) all freqs]."""
    freqs = jnp.asarray(2.0 ** np.arange(n_freqs), jnp.float32)
    xf = (x[:, None, :] * freqs[None, :, None]).reshape(x.shape[0], -1)   # freq-major, dim-minor
    return jnp.concatenate([x, jnp.sin(xf), jnp.cos(xf)], axis=-1)


# ----------------------------- the Pallas kernel ------------------------------
def rsen_kernel(act_ref, bg_ref, w_ref, colors_ref):
    f32 = jnp.float32
    E = AFFINE_EMB_DIM
    H = HIDDEN
    F2C = 2 * COORD_FREQS
    F2P = 2 * E * POS_FREQS

    def w(r0, nrows, ncols):
        # static slice of the packed weight slab (row starts are 8-aligned by layout)
        return w_ref[pl.ds(r0, nrows), pl.ds(0, ncols)]

    act = act_ref[...]                      # (M, 8): [cx, cy, cx, cy, step, 0, 0, 0]
    bg = bg_ref[...]                        # (B, 3)
    lc = act[:, 0:4]                        # (M, 4)
    st = act[:, 4:5]                        # (M, 1)

    # --- step embedding: ONE EUP sin over [f*st | f*st + pi/2] -------------------
    st_sc = jnp.sin(st * w(CST_R, 1, F2C) + w(CST_R + 1, 1, F2C))       # (M, 8) = [sin | cos]

    # --- affine_nn: 13 -> 32 -> 32 -> 5E (f32; [lc|st] fused, sin/cos stacked) ----
    h = (jnp.dot(act, w(A1A_R, 8, H), preferred_element_type=f32)
         + jnp.dot(st_sc, w(A1S_R, 8, H), preferred_element_type=f32)
         + w(BIAS_R, 1, H))
    h = jnp.maximum(h, 0.0)
    h = jnp.maximum(jnp.dot(h, w(A2_R, H, H), preferred_element_type=f32)
                    + w(BIAS_R + 1, 1, H), 0.0)
    mb = (jnp.dot(h, w(A3_R, H, 5 * E), preferred_element_type=f32)
          + w(BIAS_R + 2, 1, 5 * E))                                     # (M, 40) fused head
    mat = mb[:, 0:4 * E]                                                 # (M, 32), row-major (E,4)
    bias = jnp.tanh(mb[:, 4 * E:5 * E])                                  # (M, 8)

    # --- per-row Frobenius normalization (rsqrt on EUP; eps guards the NaN case) --
    # Per-row scalar => commutes with the linear contraction below; applied after it.
    sumsq = jnp.sum(mat * mat, axis=-1, keepdims=True)                   # (M, 1)
    inv_norm = jax.lax.rsqrt(sumsq + 1e-12) * np.sqrt(128.0)             # (M, 1)

    # --- affine feature contraction: 1 VPU mul + 2 tiny MXU pushes ----------------
    lc_tiled = jnp.dot(lc, w(LCT_R, 4, 4 * E), preferred_element_type=f32)           # (M, 32)
    feat = (jnp.dot(mat * lc_tiled, w(SEL_R, 4 * E, E), preferred_element_type=f32)
            * inv_norm + bias)                                                        # (M, 8)

    # --- positional embedding: const matmul + phase row + ONE EUP sin -------------
    pe_sc = jnp.sin(jnp.dot(feat, w(POST_R, E, F2P), preferred_element_type=f32)
                    + w(CST_R + 2, 1, F2P))                              # (M, 64) = [sin | cos]

    # --- render_nn: 72 -> 32 -> 32 -> 4 (f32 end-to-end; bf16 dropped per review) --
    h = (jnp.dot(feat, w(R1X_R, E, H), preferred_element_type=f32)
         + jnp.dot(pe_sc, w(R1S_R, F2P, H), preferred_element_type=f32)
         + w(BIAS_R + 3, 1, H))
    h = jnp.maximum(h, 0.0)
    h = jnp.maximum(jnp.dot(h, w(R2_R, H, H), preferred_element_type=f32)
                    + w(BIAS_R + 4, 1, H), 0.0)
    rgba = (jnp.dot(h, w(R3_R, H, 4), preferred_element_type=f32)
            + w(BIAS_R + 5, 1, 4))                                       # (M, 4)

    # sigmoid via a single EUP tanh (exact): sigmoid(x) = 0.5*(tanh(x/2) + 1)
    rgb = 0.5 * (jnp.tanh(0.5 * rgba[:, 0:3]) + 1.0)                     # (M, 3)
    alpha = 1.0 - jnp.exp(-_softplus_beta10(rgba[:, 3:4]))               # (M, 1)
    one_minus_alpha = 1.0 - alpha

    # --- front-to-back compositing over n_samples (rows are sample-major) ---------
    # weights[i] = alpha[i] * prod_{j<i} (1 - alpha[j]).  N_SAMPLES == 8 -> keep the
    # unrolled serial chain (log-space prefix-sum only pays off for larger N).
    Bsz = bg.shape[0]
    running = jnp.ones((Bsz, 1), f32)
    color_acc = jnp.zeros((Bsz, 3), f32)
    wsum = jnp.zeros((Bsz, 1), f32)
    for i in range(N_SAMPLES):          # slices are sublane-aligned (B % 8 == 0)
        a_i = alpha[i * Bsz:(i + 1) * Bsz, :]                 # (B, 1)
        rgb_i = rgb[i * Bsz:(i + 1) * Bsz, :]                 # (B, 3)
        w_i = running * a_i
        color_acc = color_acc + rgb_i * w_i
        wsum = wsum + w_i
        running = running * one_minus_alpha[i * Bsz:(i + 1) * Bsz, :]

    colors_ref[...] = color_acc + bg * (1.0 - wsum)           # (B, 3)


# ----------------------------- slab packing -----------------------------------
def _pad_block(a, rows):
    a = jnp.asarray(a, jnp.float32)
    return jnp.pad(a, ((0, rows - a.shape[0]), (0, W_LANES - a.shape[1])))


def pack_weight_slab(params):
    """One f32 (W_ROWS, W_LANES) slab: all weights, biases and constant matrices."""
    aw1 = params["aw1"]; rw1 = params["rw1"]
    pieces = [
        _pad_block(aw1[0:5], 8),                                   # A1A_R  : [lc|st] -> H
        _pad_block(aw1[5:5 + 2 * COORD_FREQS], 8),                 # A1S_R  : stacked [sin; cos]
        _pad_block(params["aw2"], 32),                             # A2_R
        _pad_block(params["aw3"], 32),                             # A3_R   : fused [mat | bias]
        _pad_block(rw1[0:AFFINE_EMB_DIM], 8),                      # R1X_R
        _pad_block(rw1[AFFINE_EMB_DIM:], 64),                      # R1S_R  : stacked [sin; cos]
        _pad_block(params["rw2"], 32),                             # R2_R
        _pad_block(params["rw3"], 32),                             # R3_R
        _pad_block(params["ab1"], 1), _pad_block(params["ab2"], 1),  # BIAS_R ...
        _pad_block(params["ab3"], 1), _pad_block(params["rb1"], 1),
        _pad_block(params["rb2"], 1), _pad_block(params["rb3"], 1),
        jnp.zeros((2, W_LANES), jnp.float32),
        _pad_block(LC_T, 8),                                       # LCT_R
        _pad_block(SEL, 32),                                       # SEL_R
        _pad_block(POS_T2, 8),                                     # POST_R
        _pad_block(STEP_FREQ2, 1), _pad_block(STEP_PHASE, 1),      # CST_R ...
        _pad_block(POS_PHASE, 1), jnp.zeros((5, W_LANES), jnp.float32),
    ]
    slab = jnp.concatenate(pieces, axis=0)
    assert slab.shape == (W_ROWS, W_LANES)
    return slab


# ----------------------------- wrapper -----------------------------------------
def rsen_render(coords, steps, bg, params):
    B = coords.shape[0]
    N = N_SAMPLES
    M = N * B
    # The compositing loop slices (B, ·) blocks at row offsets i*B; keep them sublane-aligned
    # and keep the sample-major layout assumption explicit.
    assert B % 8 == 0, "kernel layout assumes the batch is a multiple of 8 (sublane alignment)"

    # glue: pts = c*(1-s) + c*s == c, so local_coords rows are [cx, cy, cx, cy]
    lc2 = jnp.concatenate([coords[:, :2], coords[:, :2]], axis=-1)        # (B, 4)
    lc_rows = jnp.tile(lc2, (N, 1))                                       # (M, 4) sample-major
    st_rows = jnp.repeat(steps[:N], B)[:, None]                           # (M, 1) sample-major
    act = jnp.concatenate([lc_rows, st_rows,
                           jnp.zeros((M, 3), jnp.float32)], axis=-1).astype(jnp.float32)  # (M, 8)

    w_slab = pack_weight_slab(params)                                     # (280, 64) f32

    args = [act, bg.astype(jnp.float32), w_slab]
    in_specs = [pl.BlockSpec(a.shape, lambda i: (0, 0)) for a in args]

    # Everything fits one full-block grid step (3 DMAs in, 1 out).  For large ray counts,
    # add a row grid axis over M marked "parallel" and tile at 256-512 rows per step.
    return pl.pallas_call(
        rsen_kernel,
        out_shape=jax.ShapeDtypeStruct((B, 3), jnp.float32),
        grid=(1,),
        in_specs=in_specs,
        out_specs=pl.BlockSpec((B, 3), lambda i: (0, 0)),
        compiler_params=pltpu.CompilerParams(dimension_semantics=("arbitrary",)),
    )(*args)


# ----------------------------- parameter init ----------------------------------
def _init_linear(key, fan_in, fan_out):
    kw, kb = jax.random.split(key)
    bound = 1.0 / np.sqrt(fan_in)
    w = jax.random.uniform(kw, (fan_in, fan_out), jnp.float32, -bound, bound)
    b = jax.random.uniform(kb, (1, fan_out), jnp.float32, -bound, bound)
    return w, b


def init_params(key):
    params = {}
    keys = jax.random.split(key, 6)
    for li in range(3):
        w, b = _init_linear(keys[li], AFFINE_LAYERS[li], AFFINE_LAYERS[li + 1])
        params[f"aw{li + 1}"] = w
        params[f"ab{li + 1}"] = b
    for li in range(3):
        w, b = _init_linear(keys[3 + li], RENDER_LAYERS[li], RENDER_LAYERS[li + 1])
        params[f"rw{li + 1}"] = w
        params[f"rb{li + 1}"] = b
    return params


# ----------------------------- pure-JAX reference -------------------------------
def _mlp_ref(x, params, prefix):
    h = jnp.maximum(jnp.dot(x, params[f"{prefix}w1"]) + params[f"{prefix}b1"], 0.0)
    h = jnp.maximum(jnp.dot(h, params[f"{prefix}w2"]) + params[f"{prefix}b2"], 0.0)
    return jnp.dot(h, params[f"{prefix}w3"]) + params[f"{prefix}b3"]


def reference_forward(coords, steps, bg, params):
    B, N, E = coords.shape[0], N_SAMPLES, AFFINE_EMB_DIM
    pts = (coords[:, None, :2] * (1.0 - steps[None, :, None])
           + coords[:, None, :2] * steps[None, :, None])
    local_coords = jnp.concatenate([pts[:, :N, :], pts[:, 1:, :]], axis=-1).reshape(B * N, 4)
    st = jnp.broadcast_to(steps[None, :N, None], (B, N, 1)).reshape(B * N, 1)
    st_emb = _pos_embed_ref(st, COORD_FREQS)
    y = _mlp_ref(jnp.concatenate([local_coords, st_emb], axis=-1), params, "a")
    mat = y[:, :E * 4].reshape(B * N, E, 4)
    bias = y[:, E * 4:E * 5]
    norm = jnp.sqrt(jnp.sum(mat ** 2, axis=1, keepdims=True).sum(axis=2, keepdims=True))
    mat = mat / norm * np.sqrt(128.0)
    bias = jnp.tanh(bias)
    feat = jnp.sum(local_coords[:, None, :] * mat, axis=2) + bias
    feat = _pos_embed_ref(feat, POS_FREQS)
    rgba = _mlp_ref(feat, params, "r").reshape(B, N, 4)
    rgb = jax.nn.sigmoid(rgba[..., :3])
    alpha = 1.0 - jnp.exp(-_softplus_beta10(rgba[..., 3]))
    trans = jnp.cumprod(1.0 - alpha, axis=-1)
    weights = jnp.concatenate([alpha[:, :1], trans[:, :-1] * alpha[:, 1:]], axis=-1)
    colors = (jnp.sum(rgb * weights[..., None], axis=1)
              + bg * (1.0 - jnp.sum(weights, axis=1, keepdims=True)))
    return colors


# ----------------------------- main ---------------------------------------------
if __name__ == "__main__":
    key = jax.random.PRNGKey(0)
    kc, kb, kp = jax.random.split(key, 3)

    coords = jax.random.uniform(kc, (BATCH, 2), jnp.float32, -1.0, 1.0)
    bg = jax.random.uniform(kb, (BATCH, 3), jnp.float32)          # replaces torch.rand(B, 3)
    params = init_params(kp)
    steps = jnp.linspace(0.0, 1.0, N_SAMPLES + 1, dtype=jnp.float32)

    colors = jax.block_until_ready(jax.jit(rsen_render)(coords, steps, bg, params))
    ref = jax.block_until_ready(reference_forward(coords, steps, bg, params))

    assert colors.shape == (BATCH, 3)
    np.testing.assert_allclose(np.asarray(colors), np.asarray(ref), atol=5e-2, rtol=0.0)
    print("KERNEL_OK")
</pallas_src>

<mosaic_0001>
module attributes {stable_mosaic.version = 11 : i64} {
  func.func @rsen_kernel(%arg0: i32, %arg1: memref<64x8xf32, #tpu.memory_space<vmem>>, %arg2: memref<8x3xf32, #tpu.memory_space<vmem>>, %arg3: memref<280x64xf32, #tpu.memory_space<vmem>>, %arg4: memref<8x3xf32, #tpu.memory_space<vmem>>) attributes {dimension_semantics = [#tpu.dimension_semantics<arbitrary>], iteration_bounds = array<i64: 1>, scalar_prefetch = 0 : i64, scratch_operands = 0 : i64, tpu.core_type = #tpu.core_type<tc>, window_params = [{pipeline_mode = #tpu.pipeline_mode<synchronous>, transform_indices = @transform_0, window_bounds = array<i64: 64, 8>}, {pipeline_mode = #tpu.pipeline_mode<synchronous>, transform_indices = @transform_1, window_bounds = array<i64: 8, 3>}, {pipeline_mode = #tpu.pipeline_mode<synchronous>, transform_indices = @transform_2, window_bounds = array<i64: 280, 64>}, {pipeline_mode = #tpu.pipeline_mode<synchronous>, transform_indices = @transform_3, window_bounds = array<i64: 8, 3>}]} {
    %c0 = arith.constant 0 : index
    %c0_0 = arith.constant 0 : index
    %0 = vector.load %arg1[%c0, %c0_0] : memref<64x8xf32, #tpu.memory_space<vmem>>, vector<64x8xf32>
    %c0_1 = arith.constant 0 : index
    %c0_2 = arith.constant 0 : index
    %1 = vector.load %arg2[%c0_1, %c0_2] : memref<8x3xf32, #tpu.memory_space<vmem>>, vector<8x3xf32>
    %2 = vector.extract_strided_slice %0 {offsets = [0, 0], sizes = [64, 4], strides = [1, 1]} : vector<64x8xf32> to vector<64x4xf32>
    %3 = vector.extract_strided_slice %0 {offsets = [0, 4], sizes = [64, 1], strides = [1, 1]} : vector<64x8xf32> to vector<64x1xf32>
    %c272 = arith.constant 272 : index
    %c0_3 = arith.constant 0 : index
    %4 = vector.load %arg3[%c272, %c0_3] : memref<280x64xf32, #tpu.memory_space<vmem>>, vector<1x8xf32>
    %5 = vector.broadcast %3 : vector<64x1xf32> to vector<64x8xf32>
    %6 = vector.broadcast %4 : vector<1x8xf32> to vector<64x8xf32>
    %7 = arith.mulf %5, %6 : vector<64x8xf32>
    %c273 = arith.constant 273 : index
    %c0_4 = arith.constant 0 : index
    %8 = vector.load %arg3[%c273, %c0_4] : memref<280x64xf32, #tpu.memory_space<vmem>>, vector<1x8xf32>
    %9 = vector.broadcast %8 : vector<1x8xf32> to vector<64x8xf32>
    %10 = arith.addf %7, %9 : vector<64x8xf32>
    %11 = math.sin %10 : vector<64x8xf32>
    %c0_5 = arith.constant 0 : index
    %c0_6 = arith.constant 0 : index
    %12 = vector.load %arg3[%c0_5, %c0_6] : memref<280x64xf32, #tpu.memory_space<vmem>>, vector<8x32xf32>
    %cst = arith.constant dense<0.000000e+00> : vector<64x32xf32>
    %13 = tpu.matmul %0, %12, %cst {dimension_numbers = #tpu.dot_dimension_numbers<[1], [0], [0], [1], [0, 0, 1, 1], [], []>} : vector<64x8xf32>, vector<8x32xf32>, vector<64x32xf32> -> vector<64x32xf32>
    %c8 = arith.constant 8 : index
    %c0_7 = arith.constant 0 : index
    %14 = vector.load %arg3[%c8, %c0_7] : memref<280x64xf32, #tpu.memory_space<vmem>>, vector<8x32xf32>
    %cst_8 = arith.constant dense<0.000000e+00> : vector<64x32xf32>
    %15 = tpu.matmul %11, %14, %cst_8 {dimension_numbers = #tpu.dot_dimension_numbers<[1], [0], [0], [1], [0, 0, 1, 1], [], []>} : vector<64x8xf32>, vector<8x32xf32>, vector<64x32xf32> -> vector<64x32xf32>
    %16 = arith.addf %13, %15 : vector<64x32xf32>
    %c216 = arith.constant 216 : index
    %c0_9 = arith.constant 0 : index
    %17 = vector.load %arg3[%c216, %c0_9] : memref<280x64xf32, #tpu.memory_space<vmem>>, vector<1x32xf32>
    %18 = vector.broadcast %17 : vector<1x32xf32> to vector<64x32xf32>
    %19 = arith.addf %16, %18 : vector<64x32xf32>
    %cst_10 = arith.constant 0.000000e+00 : f32
    %20 = vector.broadcast %cst_10 : f32 to vector<64x32xf32>
    %21 = arith.maximumf %19, %20 : vector<64x32xf32>
    %c16 = arith.constant 16 : index
    %c0_11 = arith.constant 0 : index
    %22 = vector.load %arg3[%c16, %c0_11] : memref<280x64xf32, #tpu.memory_space<vmem>>, vector<32x32xf32>
    %cst_12 = arith.constant dense<0.000000e+00> : vector<64x32xf32>
    %23 = tpu.matmul %21, %22, %cst_12 {dimension_numbers = #tpu.dot_dimension_numbers<[1], [0], [0], [1], [0, 0, 1, 1], [], []>} : vector<64x32xf32>, vector<32x32xf32>, vector<64x32xf32> -> vector<64x32xf32>
    %c217 = arith.constant 217 : index
    %c0_13 = arith.constant 0 : index
    %24 = vector.load %arg3[%c217, %c0_13] : memref<280x64xf32, #tpu.memory_space<vmem>>, vector<1x32xf32>
    %25 = vector.broadcast %24 : vector<1x32xf32> to vector<64x32xf32>
    %26 = arith.addf %23, %25 : vector<64x32xf32>
    %cst_14 = arith.constant 0.000000e+00 : f32
    %27 = vector.broadcast %cst_14 : f32 to vector<64x32xf32>
    %28 = arith.maximumf %26, %27 : vector<64x32xf32>
    %c48 = arith.constant 48 : index
    %c0_15 = arith.constant 0 : index
    %29 = vector.load %arg3[%c48, %c0_15] : memref<280x64xf32, #tpu.memory_space<vmem>>, vector<32x40xf32>
    %cst_16 = arith.constant dense<0.000000e+00> : vector<64x40xf32>
    %30 = tpu.matmul %28, %29, %cst_16 {dimension_numbers = #tpu.dot_dimension_numbers<[1], [0], [0], [1], [0, 0, 1, 1], [], []>} : vector<64x32xf32>, vector<32x40xf32>, vector<64x40xf32> -> vector<64x40xf32>
    %c218 = arith.constant 218 : index
    %c0_17 = arith.constant 0 : index
    %31 = vector.load %arg3[%c218, %c0_17] : memref<280x64xf32, #tpu.memory_space<vmem>>, vector<1x40xf32>
    %32 = vector.broadcast %31 : vector<1x40xf32> to vector<64x40xf32>
    %33 = arith.addf %30, %32 : vector<64x40xf32>
    %34 = vector.extract_strided_slice %33 {offsets = [0, 0], sizes = [64, 32], strides = [1, 1]} : vector<64x40xf32> to vector<64x32xf32>
    %35 = vector.extract_strided_slice %33 {offsets = [0, 32], sizes = [64, 8], strides = [1, 1]} : vector<64x40xf32> to vector<64x8xf32>
    %36 = math.tanh %35 : vector<64x8xf32>
    %37 = arith.mulf %34, %34 : vector<64x32xf32>
    %cst_18 = arith.constant dense<0.000000e+00> : vector<64xf32>
    %38 = vector.multi_reduction <add>, %37, %cst_18 [1] : vector<64x32xf32> to vector<64xf32>
    %39 = vector.shape_cast %38 : vector<64xf32> to vector<64x1xf32>
    %cst_19 = arith.constant 9.99999996E-13 : f32
    %40 = vector.broadcast %cst_19 : f32 to vector<64x1xf32>
    %41 = arith.addf %39, %40 : vector<64x1xf32>
    %42 = math.rsqrt %41 : vector<64x1xf32>
    %cst_20 = arith.constant 11.3137083 : f32
    %43 = vector.broadcast %cst_20 : f32 to vector<64x1xf32>
    %44 = arith.mulf %42, %43 : vector<64x1xf32>
    %c224 = arith.constant 224 : index
    %c0_21 = arith.constant 0 : index
    %45 = vector.load %arg3[%c224, %c0_21] : memref<280x64xf32, #tpu.memory_space<vmem>>, vector<4x32xf32>
    %cst_22 = arith.constant dense<0.000000e+00> : vector<64x32xf32>
    %46 = tpu.matmul %2, %45, %cst_22 {dimension_numbers = #tpu.dot_dimension_numbers<[1], [0], [0], [1], [0, 0, 1, 1], [], []>} : vector<64x4xf32>, vector<4x32xf32>, vector<64x32xf32> -> vector<64x32xf32>
    %47 = arith.mulf %34, %46 : vector<64x32xf32>
    %c232 = arith.constant 232 : index
    %c0_23 = arith.constant 0 : index
    %48 = vector.load %arg3[%c232, %c0_23] : memref<280x64xf32, #tpu.memory_space<vmem>>, vector<32x8xf32>
    %cst_24 = arith.constant dense<0.000000e+00> : vector<64x8xf32>
    %49 = tpu.matmul %47, %48, %cst_24 {dimension_numbers = #tpu.dot_dimension_numbers<[1], [0], [0], [1], [0, 0, 1, 1], [], []>} : vector<64x32xf32>, vector<32x8xf32>, vector<64x8xf32> -> vector<64x8xf32>
    %50 = vector.broadcast %44 : vector<64x1xf32> to vector<64x8xf32>
    %51 = arith.mulf %49, %50 : vector<64x8xf32>
    %52 = arith.addf %51, %36 : vector<64x8xf32>
    %c264 = arith.constant 264 : index
    %c0_25 = arith.constant 0 : index
    %53 = vector.load %arg3[%c264, %c0_25] : memref<280x64xf32, #tpu.memory_space<vmem>>, vector<8x64xf32>
    %cst_26 = arith.constant dense<0.000000e+00> : vector<64x64xf32>
    %54 = tpu.matmul %52, %53, %cst_26 {dimension_numbers = #tpu.dot_dimension_numbers<[1], [0], [0], [1], [0, 0, 1, 1], [], []>} : vector<64x8xf32>, vector<8x64xf32>, vector<64x64xf32> -> vector<64x64xf32>
    %c274 = arith.constant 274 : index
    %c0_27 = arith.constant 0 : index
    %55 = vector.load %arg3[%c274, %c0_27] : memref<280x64xf32, #tpu.memory_space<vmem>>, vector<1x64xf32>
    %56 = vector.broadcast %55 : vector<1x64xf32> to vector<64x64xf32>
    %57 = arith.addf %54, %56 : vector<64x64xf32>
    %58 = math.sin %57 : vector<64x64xf32>
    %c80 = arith.constant 80 : index
    %c0_28 = arith.constant 0 : index
    %59 = vector.load %arg3[%c80, %c0_28] : memref<280x64xf32, #tpu.memory_space<vmem>>, vector<8x32xf32>
    %cst_29 = arith.constant dense<0.000000e+00> : vector<64x32xf32>
    %60 = tpu.matmul %52, %59, %cst_29 {dimension_numbers = #tpu.dot_dimension_numbers<[1], [0], [0], [1], [0, 0, 1, 1], [], []>} : vector<64x8xf32>, vector<8x32xf32>, vector<64x32xf32> -> vector<64x32xf32>
    %c88 = arith.constant 88 : index
    %c0_30 = arith.constant 0 : index
    %61 = vector.load %arg3[%c88, %c0_30] : memref<280x64xf32, #tpu.memory_space<vmem>>, vector<64x32xf32>
    %cst_31 = arith.constant dense<0.000000e+00> : vector<64x32xf32>
    %62 = tpu.matmul %58, %61, %cst_31 {dimension_numbers = #tpu.dot_dimension_numbers<[1], [0], [0], [1], [0, 0, 1, 1], [], []>} : vector<64x64xf32>, vector<64x32xf32>, vector<64x32xf32> -> vector<64x32xf32>
    %63 = arith.addf %60, %62 : vector<64x32xf32>
    %c219 = arith.constant 219 : index
    %c0_32 = arith.constant 0 : index
    %64 = vector.load %arg3[%c219, %c0_32] : memref<280x64xf32, #tpu.memory_space<vmem>>, vector<1x32xf32>
    %65 = vector.broadcast %64 : vector<1x32xf32> to vector<64x32xf32>
    %66 = arith.addf %63, %65 : vector<64x32xf32>
    %cst_33 = arith.constant 0.000000e+00 : f32
    %67 = vector.broadcast %cst_33 : f32 to vector<64x32xf32>
    %68 = arith.maximumf %66, %67 : vector<64x32xf32>
    %c152 = arith.constant 152 : index
    %c0_34 = arith.constant 0 : index
    %69 = vector.load %arg3[%c152, %c0_34] : memref<280x64xf32, #tpu.memory_space<vmem>>, vector<32x32xf32>
    %cst_35 = arith.constant dense<0.000000e+00> : vector<64x32xf32>
    %70 = tpu.matmul %68, %69, %cst_35 {dimension_numbers = #tpu.dot_dimension_numbers<[1], [0], [0], [1], [0, 0, 1, 1], [], []>} : vector<64x32xf32>, vector<32x32xf32>, vector<64x32xf32> -> vector<64x32xf32>
    %c220 = arith.constant 220 : index
    %c0_36 = arith.constant 0 : index
    %71 = vector.load %arg3[%c220, %c0_36] : memref<280x64xf32, #tpu.memory_space<vmem>>, vector<1x32xf32>
    %72 = vector.broadcast %71 : vector<1x32xf32> to vector<64x32xf32>
    %73 = arith.addf %70, %72 : vector<64x32xf32>
    %cst_37 = arith.constant 0.000000e+00 : f32
    %74 = vector.broadcast %cst_37 : f32 to vector<64x32xf32>
    %75 = arith.maximumf %73, %74 : vector<64x32xf32>
    %c184 = arith.constant 184 : index
    %c0_38 = arith.constant 0 : index
    %76 = vector.load %arg3[%c184, %c0_38] : memref<280x64xf32, #tpu.memory_space<vmem>>, vector<32x4xf32>
    %cst_39 = arith.constant dense<0.000000e+00> : vector<64x4xf32>
    %77 = tpu.matmul %75, %76, %cst_39 {dimension_numbers = #tpu.dot_dimension_numbers<[1], [0], [0], [1], [0, 0, 1, 1], [], []>} : vector<64x32xf32>, vector<32x4xf32>, vector<64x4xf32> -> vector<64x4xf32>
    %c221 = arith.constant 221 : index
    %c0_40 = arith.constant 0 : index
    %78 = vector.load %arg3[%c221, %c0_40] : memref<280x64xf32, #tpu.memory_space<vmem>>, vector<1x4xf32>
    %79 = vector.broadcast %78 : vector<1x4xf32> to vector<64x4xf32>
    %80 = arith.addf %77, %79 : vector<64x4xf32>
    %81 = vector.extract_strided_slice %80 {offsets = [0, 0], sizes = [64, 3], strides = [1, 1]} : vector<64x4xf32> to vector<64x3xf32>
    %cst_41 = arith.constant 5.000000e-01 : f32
    %82 = vector.broadcast %cst_41 : f32 to vector<64x3xf32>
    %83 = arith.mulf %82, %81 : vector<64x3xf32>
    %84 = math.tanh %83 : vector<64x3xf32>
    %cst_42 = arith.constant 1.000000e+00 : f32
    %85 = vector.broadcast %cst_42 : f32 to vector<64x3xf32>
    %86 = arith.addf %84, %85 : vector<64x3xf32>
    %cst_43 = arith.constant 5.000000e-01 : f32
    %87 = vector.broadcast %cst_43 : f32 to vector<64x3xf32>
    %88 = arith.mulf %87, %86 : vector<64x3xf32>
    %89 = vector.extract_strided_slice %80 {offsets = [0, 3], sizes = [64, 1], strides = [1, 1]} : vector<64x4xf32> to vector<64x1xf32>
    %cst_44 = arith.constant 1.000000e+01 : f32
    %90 = vector.broadcast %cst_44 : f32 to vector<64x1xf32>
    %91 = arith.mulf %89, %90 : vector<64x1xf32>
    %cst_45 = arith.constant 2.000000e+01 : f32
    %92 = vector.broadcast %cst_45 : f32 to vector<64x1xf32>
    %93 = arith.minimumf %91, %92 : vector<64x1xf32>
    %cst_46 = arith.constant 2.000000e+01 : f32
    %94 = vector.broadcast %cst_46 : f32 to vector<64x1xf32>
    %95 = arith.cmpf ogt, %91, %94 : vector<64x1xf32>
    %96 = math.exp %93 : vector<64x1xf32>
    %cst_47 = arith.constant 1.000000e+00 : f32
    %97 = vector.broadcast %cst_47 : f32 to vector<64x1xf32>
    %98 = arith.addf %97, %96 : vector<64x1xf32>
    %99 = math.log %98 : vector<64x1xf32>
    %cst_48 = arith.constant 1.000000e+01 : f32
    %100 = vector.broadcast %cst_48 : f32 to vector<64x1xf32>
    %101 = arith.divf %99, %100 : vector<64x1xf32>
    %102 = arith.select %95, %89, %101 : vector<64x1xi1>, vector<64x1xf32>
    %cst_49 = arith.constant 0.000000e+00 : f32
    %103 = vector.broadcast %cst_49 : f32 to vector<64x1xf32>
    %104 = arith.subf %103, %102 : vector<64x1xf32>
    %105 = math.exp %104 : vector<64x1xf32>
    %cst_50 = arith.constant 1.000000e+00 : f32
    %106 = vector.broadcast %cst_50 : f32 to vector<64x1xf32>
    %107 = arith.subf %106, %105 : vector<64x1xf32>
    %cst_51 = arith.constant 1.000000e+00 : f32
    %108 = vector.broadcast %cst_51 : f32 to vector<64x1xf32>
    %109 = arith.subf %108, %107 : vector<64x1xf32>
    %cst_52 = arith.constant 1.000000e+00 : f32
    %110 = vector.broadcast %cst_52 : f32 to vector<8x1xf32>
    %cst_53 = arith.constant 0.000000e+00 : f32
    %111 = vector.broadcast %cst_53 : f32 to vector<8x3xf32>
    %cst_54 = arith.constant 0.000000e+00 : f32
    %112 = vector.broadcast %cst_54 : f32 to vector<8x1xf32>
    %113 = vector.extract_strided_slice %107 {offsets = [0, 0], sizes = [8, 1], strides = [1, 1]} : vector<64x1xf32> to vector<8x1xf32>
    %114 = vector.extract_strided_slice %88 {offsets = [0, 0], sizes = [8, 3], strides = [1, 1]} : vector<64x3xf32> to vector<8x3xf32>
    %115 = arith.mulf %110, %113 : vector<8x1xf32>
    %116 = vector.broadcast %115 : vector<8x1xf32> to vector<8x3xf32>
    %117 = arith.mulf %114, %116 : vector<8x3xf32>
    %118 = arith.addf %111, %117 : vector<8x3xf32>
    %119 = arith.addf %112, %115 : vector<8x1xf32>
    %120 = vector.extract_strided_slice %109 {offsets = [0, 0], sizes = [8, 1], strides = [1, 1]} : vector<64x1xf32> to vector<8x1xf32>
    %121 = arith.mulf %110, %120 : vector<8x1xf32>
    %122 = vector.extract_strided_slice %107 {offsets = [8, 0], sizes = [8, 1], strides = [1, 1]} : vector<64x1xf32> to vector<8x1xf32>
    %123 = vector.extract_strided_slice %88 {offsets = [8, 0], sizes = [8, 3], strides = [1, 1]} : vector<64x3xf32> to vector<8x3xf32>
    %124 = arith.mulf %121, %122 : vector<8x1xf32>
    %125 = vector.broadcast %124 : vector<8x1xf32> to vector<8x3xf32>
    %126 = arith.mulf %123, %125 : vector<8x3xf32>
    %127 = arith.addf %118, %126 : vector<8x3xf32>
    %128 = arith.addf %119, %124 : vector<8x1xf32>
    %129 = vector.extract_strided_slice %109 {offsets = [8, 0], sizes = [8, 1], strides = [1, 1]} : vector<64x1xf32> to vector<8x1xf32>
    %130 = arith.mulf %121, %129 : vector<8x1xf32>
    %131 = vector.extract_strided_slice %107 {offsets = [16, 0], sizes = [8, 1], strides = [1, 1]} : vector<64x1xf32> to vector<8x1xf32>
    %132 = vector.extract_strided_slice %88 {offsets = [16, 0], sizes = [8, 3], strides = [1, 1]} : vector<64x3xf32> to vector<8x3xf32>
    %133 = arith.mulf %130, %131 : vector<8x1xf32>
    %134 = vector.broadcast %133 : vector<8x1xf32> to vector<8x3xf32>
    %135 = arith.mulf %132, %134 : vector<8x3xf32>
    %136 = arith.addf %127, %135 : vector<8x3xf32>
    %137 = arith.addf %128, %133 : vector<8x1xf32>
    %138 = vector.extract_strided_slice %109 {offsets = [16, 0], sizes = [8, 1], strides = [1, 1]} : vector<64x1xf32> to vector<8x1xf32>
    %139 = arith.mulf %130, %138 : vector<8x1xf32>
    %140 = vector.extract_strided_slice %107 {offsets = [24, 0], sizes = [8, 1], strides = [1, 1]} : vector<64x1xf32> to vector<8x1xf32>
    %141 = vector.extract_strided_slice %88 {offsets = [24, 0], sizes = [8, 3], strides = [1, 1]} : vector<64x3xf32> to vector<8x3xf32>
    %142 = arith.mulf %139, %140 : vector<8x1xf32>
    %143 = vector.broadcast %142 : vector<8x1xf32> to vector<8x3xf32>
    %144 = arith.mulf %141, %143 : vector<8x3xf32>
    %145 = arith.addf %136, %144 : vector<8x3xf32>
    %146 = arith.addf %137, %142 : vector<8x1xf32>
    %147 = vector.extract_strided_slice %109 {offsets = [24, 0], sizes = [8, 1], strides = [1, 1]} : vector<64x1xf32> to vector<8x1xf32>
    %148 = arith.mulf %139, %147 : vector<8x1xf32>
    %149 = vector.extract_strided_slice %107 {offsets = [32, 0], sizes = [8, 1], strides = [1, 1]} : vector<64x1xf32> to vector<8x1xf32>
    %150 = vector.extract_strided_slice %88 {offsets = [32, 0], sizes = [8, 3], strides = [1, 1]} : vector<64x3xf32> to vector<8x3xf32>
    %151 = arith.mulf %148, %149 : vector<8x1xf32>
    %152 = vector.broadcast %151 : vector<8x1xf32> to vector<8x3xf32>
    %153 = arith.mulf %150, %152 : vector<8x3xf32>
    %154 = arith.addf %145, %153 : vector<8x3xf32>
    %155 = arith.addf %146, %151 : vector<8x1xf32>
    %156 = vector.extract_strided_slice %109 {offsets = [32, 0], sizes = [8, 1], strides = [1, 1]} : vector<64x1xf32> to vector<8x1xf32>
    %157 = arith.mulf %148, %156 : vector<8x1xf32>
    %158 = vector.extract_strided_slice %107 {offsets = [40, 0], sizes = [8, 1], strides = [1, 1]} : vector<64x1xf32> to vector<8x1xf32>
    %159 = vector.extract_strided_slice %88 {offsets = [40, 0], sizes = [8, 3], strides = [1, 1]} : vector<64x3xf32> to vector<8x3xf32>
    %160 = arith.mulf %157, %158 : vector<8x1xf32>
    %161 = vector.broadcast %160 : vector<8x1xf32> to vector<8x3xf32>
    %162 = arith.mulf %159, %161 : vector<8x3xf32>
    %163 = arith.addf %154, %162 : vector<8x3xf32>
    %164 = arith.addf %155, %160 : vector<8x1xf32>
    %165 = vector.extract_strided_slice %109 {offsets = [40, 0], sizes = [8, 1], strides = [1, 1]} : vector<64x1xf32> to vector<8x1xf32>
    %166 = arith.mulf %157, %165 : vector<8x1xf32>
    %167 = vector.extract_strided_slice %107 {offsets = [48, 0], sizes = [8, 1], strides = [1, 1]} : vector<64x1xf32> to vector<8x1xf32>
    %168 = vector.extract_strided_slice %88 {offsets = [48, 0], sizes = [8, 3], strides = [1, 1]} : vector<64x3xf32> to vector<8x3xf32>
    %169 = arith.mulf %166, %167 : vector<8x1xf32>
    %170 = vector.broadcast %169 : vector<8x1xf32> to vector<8x3xf32>
    %171 = arith.mulf %168, %170 : vector<8x3xf32>
    %172 = arith.addf %163, %171 : vector<8x3xf32>
    %173 = arith.addf %164, %169 : vector<8x1xf32>
    %174 = vector.extract_strided_slice %109 {offsets = [48, 0], sizes = [8, 1], strides = [1, 1]} : vector<64x1xf32> to vector<8x1xf32>
    %175 = arith.mulf %166, %174 : vector<8x1xf32>
    %176 = vector.extract_strided_slice %107 {offsets = [56, 0], sizes = [8, 1], strides = [1, 1]} : vector<64x1xf32> to vector<8x1xf32>
    %177 = vector.extract_strided_slice %88 {offsets = [56, 0], sizes = [8, 3], strides = [1, 1]} : vector<64x3xf32> to vector<8x3xf32>
    %178 = arith.mulf %175, %176 : vector<8x1xf32>
    %179 = vector.broadcast %178 : vector<8x1xf32> to vector<8x3xf32>
    %180 = arith.mulf %177, %179 : vector<8x3xf32>
    %181 = arith.addf %172, %180 : vector<8x3xf32>
    %182 = arith.addf %173, %178 : vector<8x1xf32>
    %cst_55 = arith.constant 1.000000e+00 : f32
    %183 = vector.broadcast %cst_55 : f32 to vector<8x1xf32>
    %184 = arith.subf %183, %182 : vector<8x1xf32>
    %185 = vector.broadcast %184 : vector<8x1xf32> to vector<8x3xf32>
    %186 = arith.mulf %1, %185 : vector<8x3xf32>
    %187 = arith.addf %181, %186 : vector<8x3xf32>
    %c0_56 = arith.constant 0 : index
    %c0_57 = arith.constant 0 : index
    %188 = vector.load %arg4[%c0_56, %c0_57] : memref<8x3xf32, #tpu.memory_space<vmem>>, vector<8x3xf32>
    tpu.vector_store %arg4[%c0_56, %c0_57], %187 {strides = array<i32>} : memref<8x3xf32, #tpu.memory_space<vmem>>, vector<8x3xf32>,
    return
  }
  func.func @transform_0(%arg0: i32) -> (i32, i32) {
    %c0_i32 = arith.constant 0 : i32
    %c0_i32_0 = arith.constant 0 : i32
    %c0_i32_1 = arith.constant 0 : i32
    return %c0_i32, %c0_i32_0 : i32, i32
  }
  func.func @transform_1(%arg0: i32) -> (i32, i32) {
    %c0_i32 = arith.constant 0 : i32
    %c0_i32_0 = arith.constant 0 : i32
    %c0_i32_1 = arith.constant 0 : i32
    return %c0_i32, %c0_i32_0 : i32, i32
  }
  func.func @transform_2(%arg0: i32) -> (i32, i32) {
    %c0_i32 = arith.constant 0 : i32
    %c0_i32_0 = arith.constant 0 : i32
    %c0_i32_1 = arith.constant 0 : i32
    return %c0_i32, %c0_i32_0 : i32, i32
  }
  func.func @transform_3(%arg0: i32) -> (i32, i32) {
    %c0_i32 = arith.constant 0 : i32
    %c0_i32_0 = arith.constant 0 : i32
    %c0_i32_1 = arith.constant 0 : i32
    return %c0_i32, %c0_i32_0 : i32, i32
  }
}

</mosaic_0001>

<llo_original>
// kernel: tile.9
$region0: #{tile.9}
  %s0 = inlined_call_operand.vmem [shape: f32[8,8,4], index: 0, kind: input, shape index: {}]
  %s1 = inlined_call_operand.vmem [shape: f32[64,4], index: 1, kind: output, shape index: {}]
  $region1: #{tile.9} parent=0
    #allocation0 [shape = 'u8[4096]{0}', space=vmem, size = 0x1000, scoped, tag = 'scoped mem for output reshape']
    %v2 = vld [vmem:[%s0] ss:$8 sm:$0xf]
    %vm3 = vcmask 64512
    %4 = vst.msk [vmem:[#allocation0] sm:$0xf] %vm3, %v2
    %s5 = scalar_lea.vmem %s0, 7
    %v6 = vld [vmem:[%s5] ss:$8 sm:$0xf]
    %7 = vrot.lane.b32.xlu0 %v6, 56
    %v8 = vpop.permute.xlu0 %7
    %vm9 = vcmask 523712
    %10 = vst.msk [vmem:[#allocation0] sm:$0xf] %vm9, %v8
    %s11 = scalar_lea.vmem %s0, 6
    %v12 = vld [vmem:[%s11] ss:$8 sm:$0xf]
    %13 = vrot.lane.b32.xlu0 %v12, 48
    %v14 = vpop.permute.xlu0 %13
    %vm15 = vcmask 458112
    %16 = vst.msk [vmem:[#allocation0] sm:$0xf] %vm15, %v14
    %s17 = scalar_lea.vmem %s0, 5
    %v18 = vld [vmem:[%s17] ss:$8 sm:$0xf]
    %19 = vrot.lane.b32.xlu0 %v18, 40
    %v20 = vpop.permute.xlu0 %19
    %vm21 = vcmask 392512
    %22 = vst.msk [vmem:[#allocation0] sm:$0xf] %vm21, %v20
    %s23 = scalar_lea.vmem %s0, 4
    %v24 = vld [vmem:[%s23] ss:$8 sm:$0xf]
    %25 = vrot.lane.b32.xlu0 %v24, 32
    %v26 = vpop.permute.xlu0 %25
    %vm27 = vcmask 326912
    %28 = vst.msk [vmem:[#allocation0] sm:$0xf] %vm27, %v26
    %s29 = scalar_lea.vmem %s0, 3
    %v30 = vld [vmem:[%s29] ss:$8 sm:$0xf]
    %31 = vrot.lane.b32.xlu0 %v30, 24
    %v32 = vpop.permute.xlu0 %31
    %vm33 = vcmask 261312
    %34 = vst.msk [vmem:[#allocation0] sm:$0xf] %vm33, %v32
    %s35 = scalar_lea.vmem %s0, 2
    %v36 = vld [vmem:[%s35] ss:$8 sm:$0xf]
    %37 = vrot.lane.b32.xlu0 %v36, 16
    %v38 = vpop.permute.xlu0 %37
    %vm39 = vcmask 195712
    %40 = vst.msk [vmem:[#allocation0] sm:$0xf] %vm39, %v38
    %s41 = scalar_lea.vmem %s0, 1
    %v42 = vld [vmem:[%s41] ss:$8 sm:$0xf]
    %43 = vrot.lane.b32.xlu0 %v42, 8
    %v44 = vpop.permute.xlu0 %43
    %vm45 = vcmask 130112
    %46 = vst.msk [vmem:[#allocation0] sm:$0xf] %vm45, %v44
    %s48 = ssub.s32 16, 1
    %v49 = vld [vmem:[#allocation0] sm:%s48]
    %s51 = ssub.s32 16, 1
    %52 = vst [vmem:[%s1] sm:%s51] %v49

// kernel: rsen_render.1
$region0: #{rsen_render.1}
  #allocation0 [shape = 'u32[]', space=smem, size = 0x4, offset = 0x4, fixed_abs, tag = 'smem constant byte address 0x4 - core index']
  #allocation1 [shape = 'u32[72,128]{1,0:T(1,128)}', space=vmem, size = 0x9000, scoped, tag = 'internal scratch']
  %s0 = inlined_call_operand.vmem [shape: f32[64,8], index: 0, kind: input, shape index: {}]
  %s1 = inlined_call_operand.vmem [shape: f32[8,3], index: 1, kind: input, shape index: {}]
  %s2 = inlined_call_operand.vmem [shape: f32[280,64], index: 2, kind: input, shape index: {}]
  %s3 = inlined_call_operand.vmem [shape: f32[8,3], index: 3, kind: output, shape index: {}]
  %s4 = sld [smem:[#allocation0]]
  $region22: #{rsen_render.1} parent=0
    _
  %s6 = ssub.s32 1, %s4
  %s7 = scalar_select 0, %s6, %s4
  // Predicated region
  $region2: #{rsen_render.1} parent=0 // pred_check
    _
  $region3: #{rsen_render.1} parent=0 // pred_check_branch
    %9 = sbr.rel (0) target = $region5
  $region4: #{rsen_render.1} parent=0 // pred_region
    _
  $region5: #{rsen_render.1} parent=0 // pred_fallthru
    _
  // Predicated region
  $region6: #{rsen_render.1} parent=0 // pred_check
    _
  $region7: #{rsen_render.1} parent=0 // pred_check_branch
    %11 = sbr.rel (0) target = $region9
  $region8: #{rsen_render.1} parent=0 // pred_region
    _
  $region9: #{rsen_render.1} parent=0 // pred_fallthru
    _
  // Predicated region
  $region10: #{rsen_render.1} parent=0 // pred_check
    _
  $region11: #{rsen_render.1} parent=0 // pred_check_branch
    %13 = sbr.rel (0) target = $region13
  $region12: #{rsen_render.1} parent=0 // pred_region
    _
  $region13: #{rsen_render.1} parent=0 // pred_fallthru
    _
  %v14 = vld [vmem:[%s0] sm:$0xff]
  %v15 = vld [vmem:[%s0 + $0x8] sm:$0xff]
  %v16 = vld [vmem:[%s0 + $0x10] sm:$0xff]
  %v17 = vld [vmem:[%s0 + $0x18] sm:$0xff]
  %v18 = vld [vmem:[%s0 + $0x20] sm:$0xff]
  %v19 = vld [vmem:[%s0 + $0x28] sm:$0xff]
  %v20 = vld [vmem:[%s0 + $0x30] sm:$0xff]
  %v21 = vld [vmem:[%s0 + $0x38] sm:$0xff]
  %v22 = vld [vmem:[%s1] sm:$0xff]
  %v23 = vld [vmem:[%s2 + $0x110] sm:$0x1]
  %25 = vset.pattern.permute.xlu0 4
  %26 = vperm.xlu0 %25, %v14
  %v27 = vpop.permute.xlu0 %26
  %30 = vset.pattern.permute.xlu0 4
  %31 = vperm.xlu0 %30, %v15
  %v32 = vpop.permute.xlu0 %31
  %35 = vset.pattern.permute.xlu0 4
  %36 = vperm.xlu0 %35, %v16
  %v37 = vpop.permute.xlu0 %36
  %40 = vset.pattern.permute.xlu0 4
  %41 = vperm.xlu0 %40, %v17
  %v42 = vpop.permute.xlu0 %41
  %45 = vset.pattern.permute.xlu0 4
  %46 = vperm.xlu0 %45, %v18
  %v47 = vpop.permute.xlu0 %46
  %50 = vset.pattern.permute.xlu0 4
  %51 = vperm.xlu0 %50, %v19
  %v52 = vpop.permute.xlu0 %51
  %55 = vset.pattern.permute.xlu0 4
  %56 = vperm.xlu0 %55, %v20
  %v57 = vpop.permute.xlu0 %56
  %60 = vset.pattern.permute.xlu0 4
  %61 = vperm.xlu0 %60, %v21
  %v62 = vpop.permute.xlu0 %61
  %v64 = vperm.slane %v23, 0
  %v65 = vmul.f32 %v27, %v64
  %v66 = vmul.f32 %v32, %v64
  %v67 = vmul.f32 %v37, %v64
  %v68 = vmul.f32 %v42, %v64
  %v69 = vmul.f32 %v47, %v64
  %v70 = vmul.f32 %v52, %v64
  %v71 = vmul.f32 %v57, %v64
  %v72 = vmul.f32 %v62, %v64
  %v73 = vld [vmem:[%s2 + $0x111] sm:$0x1]
  %v74 = vperm.slane %v73, 0
  %v75 = vadd.f32 %v65, %v74
  %v76 = vadd.f32 %v66, %v74
  %v77 = vadd.f32 %v67, %v74
  %v78 = vadd.f32 %v68, %v74
  %v79 = vadd.f32 %v69, %v74
  %v80 = vadd.f32 %v70, %v74
  %v81 = vadd.f32 %v71, %v74
  %v82 = vadd.f32 %v72, %v74
  %v83 = vand.u32 2147483647, %v75
  %vm84 = vcmp.le.f32.partialorder %v83, 0.7853982
  %vm85 = vcmp.lt.s32.totalorder %v75, 0
  %v86 = vand.u32 %v75, 2139095040
  %v87 = vshrl.u32 %v86, 23
  %v88 = vsub.s32 %v87, 127
  %v89 = vand.u32 2147483647, %v75
  %v90 = vand.u32 %v89, 8388607
  %v91 = vor.u32 %v90, 8388608
  %v92 = vsub.s32 0, %v91
  %v93 = vadd.s32 %v88, 1
  %vm94 = vcmp.gt.s32.totalorder %v93, 0
  %v95 = vsel %vm94, %v93, 0
  %v96 = vshrl.u32 %v95, 5
  %v97 = vand.u32 %v95, 31
  %v98 = vsub.s32 32, %v97
  %v99 = vshrl.u32 683565275, %v98
  %v100 = vshll.u32 683565275, %v97
  %v101 = vshrl.u32 2475754826, %v98
  %v102 = vor.u32 %v100, %v101
  %v103 = vshll.u32 2475754826, %v97
  %v104 = vshrl.u32 2131351028, %v98
  %v105 = vor.u32 %v103, %v104
  %v106 = vshll.u32 2131351028, %v97
  %v107 = vshrl.u32 2102212464, %v98
  %v108 = vor.u32 %v106, %v107
  %v109 = vshll.u32 2102212464, %v97
  %v110 = vshrl.u32 920167782, %v98
  %v111 = vor.u32 %v109, %v110
  %v112 = vshll.u32 920167782, %v97
  %v113 = vshrl.u32 1326507024, %v98
  %v114 = vor.u32 %v112, %v113
  %vm115 = vcmp.lt.s32.totalorder %v96, 1
  %vm116 = vcmp.lt.s32.totalorder %v96, 2
  %vm117 = vcmp.lt.s32.totalorder %v96, 3
  %vm118 = vcmp.lt.s32.totalorder %v96, 4
  %v119 = vsel %vm115, %v99, %v102
  %v120 = vsel %vm118, %v108, 2102212464
  %v121 = vsel %vm117, %v105, %v120
  %v122 = vsel %vm116, %v119, %v121
  %v123 = vsel %vm115, %v102, %v105
  %v124 = vsel %vm118, %v111, 920167782
  %v125 = vsel %vm117, %v108, %v124
  %v126 = vsel %vm116, %v123, %v125
  %v127 = vsel %vm115, %v105, %v108
  %v128 = vsel %vm118, %v114, 1326507024
  %v129 = vsel %vm117, %v111, %v128
  %v130 = vsel %vm116, %v127, %v129
  %v131 = vshll.u32 %v91, 8
  %v132 = vand.u32 %v131, 65535
  %v133 = vshrl.u32 %v131, 16
  %v134 = vand.u32 %v130, 65535
  %v135 = vshrl.u32 %v130, 16
  %v136 = vmul.u32 %v132, %v134
  %v137 = vmul.u32 %v132, %v135
  %v138 = vmul.u32 %v133, %v134
  %v139 = vmul.u32 %v133, %v135
  %v140 = vshll.u32 %v137, 16
  %v141 = vshrl.u32 %v137, 16
  %v142 = vshll.u32 %v138, 16
  %v143 = vshrl.u32 %v138, 16
  %vm144 = vc.u32 %v136, %v140
  %v145 = vsel %vm144, 1, 0
  %v146 = vadd.s32 %v136, %v140
  %v147 = vadd.s32 %v139, %v145
  %vm148 = vc.u32 %v146, %v142
  %v149 = vsel %vm148, 1, 0
  %v150 = vadd.s32 %v146, %v142
  %v151 = vadd.s32 %v147, %v149
  %v152 = vadd.s32 %v151, %v141
  %v153 = vadd.s32 %v152, %v143
  %v154 = vand.u32 %v131, 65535
  %v155 = vshrl.u32 %v131, 16
  %v156 = vand.u32 %v126, 65535
  %v157 = vshrl.u32 %v126, 16
  %v158 = vmul.u32 %v154, %v156
  %v159 = vmul.u32 %v154, %v157
  %v160 = vmul.u32 %v155, %v156
  %v161 = vmul.u32 %v155, %v157
  %v162 = vshll.u32 %v159, 16
  %v163 = vshrl.u32 %v159, 16
  %v164 = vshll.u32 %v160, 16
  %v165 = vshrl.u32 %v160, 16
  %vm166 = vc.u32 %v158, %v162
  %v167 = vsel %vm166, 1, 0
  %v168 = vadd.s32 %v158, %v162
  %v169 = vadd.s32 %v161, %v167
  %vm170 = vc.u32 %v168, %v164
  %v171 = vsel %vm170, 1, 0
  %v172 = vadd.s32 %v168, %v164
  %v173 = vadd.s32 %v169, %v171
  %v174 = vadd.s32 %v173, %v163
  %v175 = vadd.s32 %v174, %v165
  %v176 = vmul.u32 %v131, %v122
  %v177 = vadd.s32 %v153, %v172
  %vm178 = vc.u32 %v153, %v172
  %v179 = vadd.s32 %v175, 1
  %v180 = vsel %vm178, %v179, %v175
  %v181 = vadd.s32 %v176, %v180
  %v182 = vadd.s32 %v181, 536870912
  %v183 = vshrl.u32 %v182, 30
  %v184 = vshll.u32 %v183, 30
  %v185 = vsub.s32 %v181, %v184
  %vm186 = vcmp.lt.s32.totalorder %v185, 0
  %v187 = vsub.s32 0, %v185
  %v188 = vsel %vm186, %v187, %v185
  %v189 = vclz %v188
  %v190 = vsub.s32 %v189, 2
  %vm191 = vcmp.gt.s32.totalorder 0, %v190
  %v192 = vsel %vm191, 0, %v190
  %v193 = vsub.s32 32, %v192
  %v194 = vshll.u32 %v185, %v192
  %v195 = vshrl.u32 %v177, %v193
  %v196 = vor.u32 %v194, %v195
  %v197 = vsub.s32 4294967266, %v192
  %v198 = vadd.s32 %v197, 127
  %v199 = vshll.u32 %v198, 23
  %v200 = vor.u32 4788187, %v199
  %v201 = vand.u32 2147483647, %v200
  %v203 = vcvt.s32.f32 %v196
  %v204 = vmul.f32 %v203, %v201
  %v205 = vxor.u32 %v204, 2147483648
  %v206 = vsel %vm85, %v205, %v204
  %v207 = vsub.s32 4, %v183
  %v208 = vsel %vm85, %v207, %v183
  %v209 = vsel %vm84, %v75, %v206
  %v210 = vsel %vm84, 0, %v208
  %v211 = vmul.f32 %v209, %v209
  %v212 = vmul.f32 %v211, -0.001358992
  %v213 = vadd.f32 %v212, 0.041655596
  %v214 = vmul.f32 %v211, %v213
  %v215 = vadd.f32 %v214, -0.4999988
  %v216 = vmul.f32 %v211, %v215
  %v217 = vadd.f32 1.0, %v216
  %v218 = vmul.f32 %v209, %v209
  %v219 = vmul.f32 %v218, -0.00019511016
  %v220 = vadd.f32 %v219, 0.008332121
  %v221 = vmul.f32 %v218, %v220
  %v222 = vadd.f32 %v221, -0.16666654
  %v223 = vmul.f32 %v218, %v222
  %v224 = vadd.f32 %v223, 1.0
  %v225 = vmul.f32 %v224, %v209
  %vm226 = vweird.f32 %v75
  %v227 = vadd.s32 %v210, 3
  %v228 = vand.u32 %v227, 3
  %vm229 = vcmp.lt.s32.totalorder %v228, 2
  %vm230 = vcmp.eq.s32.totalorder %v228, 0
  %v231 = vxor.u32 %v225, 2147483648
  %v232 = vsel %vm230, %v217, %v231
  %vm233 = vcmp.eq.s32.totalorder %v228, 2
  %v234 = vxor.u32 %v217, 2147483648
  %v235 = vsel %vm233, %v234, %v225
  %v236 = vsel %vm229, %v232, %v235
  %v237 = vsel %vm226, nan, %v236
  %v238 = vand.u32 2147483647, %v76
  %vm239 = vcmp.le.f32.partialorder %v238, 0.7853982
  %vm240 = vcmp.lt.s32.totalorder %v76, 0
  %v241 = vand.u32 %v76, 2139095040
  %v242 = vshrl.u32 %v241, 23
  %v243 = vsub.s32 %v242, 127
  %v244 = vand.u32 2147483647, %v76
  %v245 = vand.u32 %v244, 8388607
  %v246 = vor.u32 %v245, 8388608
  %v247 = vsub.s32 0, %v246
  %v248 = vadd.s32 %v243, 1
  %vm249 = vcmp.gt.s32.totalorder %v248, 0
  %v250 = vsel %vm249, %v248, 0
  %v251 = vshrl.u32 %v250, 5
  %v252 = vand.u32 %v250, 31
  %v253 = vsub.s32 32, %v252
  %v254 = vshrl.u32 683565275, %v253
  %v255 = vshll.u32 683565275, %v252
  %v256 = vshrl.u32 2475754826, %v253
  %v257 = vor.u32 %v255, %v256
  %v258 = vshll.u32 2475754826, %v252
  %v259 = vshrl.u32 2131351028, %v253
  %v260 = vor.u32 %v258, %v259
  %v261 = vshll.u32 2131351028, %v252
  %v262 = vshrl.u32 2102212464, %v253
  %v263 = vor.u32 %v261, %v262
  %v264 = vshll.u32 2102212464, %v252
  %v265 = vshrl.u32 920167782, %v253
  %v266 = vor.u32 %v264, %v265
  %v267 = vshll.u32 920167782, %v252
  %v268 = vshrl.u32 1326507024, %v253
  %v269 = vor.u32 %v267, %v268
  %vm270 = vcmp.lt.s32.totalorder %v251, 1
  %vm271 = vcmp.lt.s32.totalorder %v251, 2
  %vm272 = vcmp.lt.s32.totalorder %v251, 3
  %vm273 = vcmp.lt.s32.totalorder %v251, 4
  %v274 = vsel %vm270, %v254, %v257
  %v275 = vsel %vm273, %v263, 2102212464
  %v276 = vsel %vm272, %v260, %v275
  %v277 = vsel %vm271, %v274, %v276
  %v278 = vsel %vm270, %v257, %v260
  %v279 = vsel %vm273, %v266, 920167782
  %v280 = vsel %vm272, %v263, %v279
  %v281 = vsel %vm271, %v278, %v280
  %v282 = vsel %vm270, %v260, %v263
  %v283 = vsel %vm273, %v269, 1326507024
  %v284 = vsel %vm272, %v266, %v283
  %v285 = vsel %vm271, %v282, %v284
  %v286 = vshll.u32 %v246, 8
  %v287 = vand.u32 %v286, 65535
  %v288 = vshrl.u32 %v286, 16
  %v289 = vand.u32 %v285, 65535
  %v290 = vshrl.u32 %v285, 16
  %v291 = vmul.u32 %v287, %v289
  %v292 = vmul.u32 %v287, %v290
  %v293 = vmul.u32 %v288, %v289
  %v294 = vmul.u32 %v288, %v290
  %v295 = vshll.u32 %v292, 16
  %v296 = vshrl.u32 %v292, 16
  %v297 = vshll.u32 %v293, 16
  %v298 = vshrl.u32 %v293, 16
  %vm299 = vc.u32 %v291, %v295
  %v300 = vsel %vm299, 1, 0
  %v301 = vadd.s32 %v291, %v295
  %v302 = vadd.s32 %v294, %v300
  %vm303 = vc.u32 %v301, %v297
  %v304 = vsel %vm303, 1, 0
  %v305 = vadd.s32 %v301, %v297
  %v306 = vadd.s32 %v302, %v304
  %v307 = vadd.s32 %v306, %v296
  %v308 = vadd.s32 %v307, %v298
  %v309 = vand.u32 %v286, 65535
  %v310 = vshrl.u32 %v286, 16
  %v311 = vand.u32 %v281, 65535
  %v312 = vshrl.u32 %v281, 16
  %v313 = vmul.u32 %v309, %v311
  %v314 = vmul.u32 %v309, %v312
  %v315 = vmul.u32 %v310, %v311
  %v316 = vmul.u32 %v310, %v312
  %v317 = vshll.u32 %v314, 16
  %v318 = vshrl.u32 %v314, 16
  %v319 = vshll.u32 %v315, 16
  %v320 = vshrl.u32 %v315, 16
  %vm321 = vc.u32 %v313, %v317
  %v322 = vsel %vm321, 1, 0
  %v323 = vadd.s32 %v313, %v317
  %v324 = vadd.s32 %v316, %v322
  %vm325 = vc.u32 %v323, %v319
  %v326 = vsel %vm325, 1, 0
  %v327 = vadd.s32 %v323, %v319
  %v328 = vadd.s32 %v324, %v326
  %v329 = vadd.s32 %v328, %v318
  %v330 = vadd.s32 %v329, %v320
  %v331 = vmul.u32 %v286, %v277
  %v332 = vadd.s32 %v308, %v327
  %vm333 = vc.u32 %v308, %v327
  %v334 = vadd.s32 %v330, 1
  %v335 = vsel %vm333, %v334, %v330
  %v336 = vadd.s32 %v331, %v335
  %v337 = vadd.s32 %v336, 536870912
  %v338 = vshrl.u32 %v337, 30
  %v339 = vshll.u32 %v338, 30
  %v340 = vsub.s32 %v336, %v339
  %vm341 = vcmp.lt.s32.totalorder %v340, 0
  %v342 = vsub.s32 0, %v340
  %v343 = vsel %vm341, %v342, %v340
  %v344 = vclz %v343
  %v345 = vsub.s32 %v344, 2
  %vm346 = vcmp.gt.s32.totalorder 0, %v345
  %v347 = vsel %vm346, 0, %v345
  %v348 = vsub.s32 32, %v347
  %v349 = vshll.u32 %v340, %v347
  %v350 = vshrl.u32 %v332, %v348
  %v351 = vor.u32 %v349, %v350
  %v352 = vsub.s32 4294967266, %v347
  %v353 = vadd.s32 %v352, 127
  %v354 = vshll.u32 %v353, 23
  %v355 = vor.u32 4788187, %v354
  %v356 = vand.u32 2147483647, %v355
  %v358 = vcvt.s32.f32 %v351
  %v359 = vmul.f32 %v358, %v356
  %v360 = vxor.u32 %v359, 2147483648
  %v361 = vsel %vm240, %v360, %v359
  %v362 = vsub.s32 4, %v338
  %v363 = vsel %vm240, %v362, %v338
  %v364 = vsel %vm239, %v76, %v361
  %v365 = vsel %vm239, 0, %v363
  %v366 = vmul.f32 %v364, %v364
  %v367 = vmul.f32 %v366, -0.001358992
  %v368 = vadd.f32 %v367, 0.041655596
  %v369 = vmul.f32 %v366, %v368
  %v370 = vadd.f32 %v369, -0.4999988
  %v371 = vmul.f32 %v366, %v370
  %v372 = vadd.f32 1.0, %v371
  %v373 = vmul.f32 %v364, %v364
  %v374 = vmul.f32 %v373, -0.00019511016
  %v375 = vadd.f32 %v374, 0.008332121
  %v376 = vmul.f32 %v373, %v375
  %v377 = vadd.f32 %v376, -0.16666654
  %v378 = vmul.f32 %v373, %v377
  %v379 = vadd.f32 %v378, 1.0
  %v380 = vmul.f32 %v379, %v364
  %vm381 = vweird.f32 %v76
  %v382 = vadd.s32 %v365, 3
  %v383 = vand.u32 %v382, 3
  %vm384 = vcmp.lt.s32.totalorder %v383, 2
  %vm385 = vcmp.eq.s32.totalorder %v383, 0
  %v386 = vxor.u32 %v380, 2147483648
  %v387 = vsel %vm385, %v372, %v386
  %vm388 = vcmp.eq.s32.totalorder %v383, 2
  %v389 = vxor.u32 %v372, 2147483648
  %v390 = vsel %vm388, %v389, %v380
  %v391 = vsel %vm384, %v387, %v390
  %v392 = vsel %vm381, nan, %v391
  %v393 = vand.u32 2147483647, %v77
  %vm394 = vcmp.le.f32.partialorder %v393, 0.7853982
  %vm395 = vcmp.lt.s32.totalorder %v77, 0
  %v396 = vand.u32 %v77, 2139095040
  %v397 = vshrl.u32 %v396, 23
  %v398 = vsub.s32 %v397, 127
  %v399 = vand.u32 2147483647, %v77
  %v400 = vand.u32 %v399, 8388607
  %v401 = vor.u32 %v400, 8388608
  %v402 = vsub.s32 0, %v401
  %v403 = vadd.s32 %v398, 1
  %vm404 = vcmp.gt.s32.totalorder %v403, 0
  %v405 = vsel %vm404, %v403, 0
  %v406 = vshrl.u32 %v405, 5
  %v407 = vand.u32 %v405, 31
  %v408 = vsub.s32 32, %v407
  %v409 = vshrl.u32 683565275, %v408
  %v410 = vshll.u32 683565275, %v407
  %v411 = vshrl.u32 2475754826, %v408
  %v412 = vor.u32 %v410, %v411
  %v413 = vshll.u32 2475754826, %v407
  %v414 = vshrl.u32 2131351028, %v408
  %v415 = vor.u32 %v413, %v414
  %v416 = vshll.u32 2131351028, %v407
  %v417 = vshrl.u32 2102212464, %v408
  %v418 = vor.u32 %v416, %v417
  %v419 = vshll.u32 2102212464, %v407
  %v420 = vshrl.u32 920167782, %v408
  %v421 = vor.u32 %v419, %v420
  %v422 = vshll.u32 920167782, %v407
  %v423 = vshrl.u32 1326507024, %v408
  %v424 = vor.u32 %v422, %v423
  %vm425 = vcmp.lt.s32.totalorder %v406, 1
  %vm426 = vcmp.lt.s32.totalorder %v406, 2
  %vm427 = vcmp.lt.s32.totalorder %v406, 3
  %vm428 = vcmp.lt.s32.totalorder %v406, 4
  %v429 = vsel %vm425, %v409, %v412
  %v430 = vsel %vm428, %v418, 2102212464
  %v431 = vsel %vm427, %v415, %v430
  %v432 = vsel %vm426, %v429, %v431
  %v433 = vsel %vm425, %v412, %v415
  %v434 = vsel %vm428, %v421, 920167782
  %v435 = vsel %vm427, %v418, %v434
  %v436 = vsel %vm426, %v433, %v435
  %v437 = vsel %vm425, %v415, %v418
  %v438 = vsel %vm428, %v424, 1326507024
  %v439 = vsel %vm427, %v421, %v438
  %v440 = vsel %vm426, %v437, %v439
  %v441 = vshll.u32 %v401, 8
  %v442 = vand.u32 %v441, 65535
  %v443 = vshrl.u32 %v441, 16
  %v444 = vand.u32 %v440, 65535
  %v445 = vshrl.u32 %v440, 16
  %v446 = vmul.u32 %v442, %v444
  %v447 = vmul.u32 %v442, %v445
  %v448 = vmul.u32 %v443, %v444
  %v449 = vmul.u32 %v443, %v445
  %v450 = vshll.u32 %v447, 16
  %v451 = vshrl.u32 %v447, 16
  %v452 = vshll.u32 %v448, 16
  %v453 = vshrl.u32 %v448, 16
  %vm454 = vc.u32 %v446, %v450
  %v455 = vsel %vm454, 1, 0
  %v456 = vadd.s32 %v446, %v450
  %v457 = vadd.s32 %v449, %v455
  %vm458 = vc.u32 %v456, %v452
  %v459 = vsel %vm458, 1, 0
  %v460 = vadd.s32 %v456, %v452
  %v461 = vadd.s32 %v457, %v459
  %v462 = vadd.s32 %v461, %v451
  %v463 = vadd.s32 %v462, %v453
  %v464 = vand.u32 %v441, 65535
  %v465 = vshrl.u32 %v441, 16
  %v466 = vand.u32 %v436, 65535
  %v467 = vshrl.u32 %v436, 16
  %v468 = vmul.u32 %v464, %v466
  %v469 = vmul.u32 %v464, %v467
  %v470 = vmul.u32 %v465, %v466
  %v471 = vmul.u32 %v465, %v467
  %v472 = vshll.u32 %v469, 16
  %v473 = vshrl.u32 %v469, 16
  %v474 = vshll.u32 %v470, 16
  %v475 = vshrl.u32 %v470, 16
  %vm476 = vc.u32 %v468, %v472
  %v477 = vsel %vm476, 1, 0
  %v478 = vadd.s32 %v468, %v472
  %v479 = vadd.s32 %v471, %v477
  %vm480 = vc.u32 %v478, %v474
  %v481 = vsel %vm480, 1, 0
  %v482 = vadd.s32 %v478, %v474
  %v483 = vadd.s32 %v479, %v481
  %v484 = vadd.s32 %v483, %v473
  %v485 = vadd.s32 %v484, %v475
  %v486 = vmul.u32 %v441, %v432
  %v487 = vadd.s32 %v463, %v482
  %vm488 = vc.u32 %v463, %v482
  %v489 = vadd.s32 %v485, 1
  %v490 = vsel %vm488, %v489, %v485
  %v491 = vadd.s32 %v486, %v490
  %v492 = vadd.s32 %v491, 536870912
  %v493 = vshrl.u32 %v492, 30
  %v494 = vshll.u32 %v493, 30
  %v495 = vsub.s32 %v491, %v494
  %vm496 = vcmp.lt.s32.totalorder %v495, 0
  %v497 = vsub.s32 0, %v495
  %v498 = vsel %vm496, %v497, %v495
  %v499 = vclz %v498
  %v500 = vsub.s32 %v499, 2
  %vm501 = vcmp.gt.s32.totalorder 0, %v500
  %v502 = vsel %vm501, 0, %v500
  %v503 = vsub.s32 32, %v502
  %v504 = vshll.u32 %v495, %v502
  %v505 = vshrl.u32 %v487, %v503
  %v506 = vor.u32 %v504, %v505
  %v507 = vsub.s32 4294967266, %v502
  %v508 = vadd.s32 %v507, 127
  %v509 = vshll.u32 %v508, 23
  %v510 = vor.u32 4788187, %v509
  %v511 = vand.u32 2147483647, %v510
  %v513 = vcvt.s32.f32 %v506
  %v514 = vmul.f32 %v513, %v511
  %v515 = vxor.u32 %v514, 2147483648
  %v516 = vsel %vm395, %v515, %v514
  %v517 = vsub.s32 4, %v493
  %v518 = vsel %vm395, %v517, %v493
  %v519 = vsel %vm394, %v77, %v516
  %v520 = vsel %vm394, 0, %v518
  %v521 = vmul.f32 %v519, %v519
  %v522 = vmul.f32 %v521, -0.001358992
  %v523 = vadd.f32 %v522, 0.041655596
  %v524 = vmul.f32 %v521, %v523
  %v525 = vadd.f32 %v524, -0.4999988
  %v526 = vmul.f32 %v521, %v525
  %v527 = vadd.f32 1.0, %v526
  %v528 = vmul.f32 %v519, %v519
  %v529 = vmul.f32 %v528, -0.00019511016
  %v530 = vadd.f32 %v529, 0.008332121
  %v531 = vmul.f32 %v528, %v530
  %v532 = vadd.f32 %v531, -0.16666654
  %v533 = vmul.f32 %v528, %v532
  %v534 = vadd.f32 %v533, 1.0
  %v535 = vmul.f32 %v534, %v519
  %vm536 = vweird.f32 %v77
  %v537 = vadd.s32 %v520, 3
  %v538 = vand.u32 %v537, 3
  %vm539 = vcmp.lt.s32.totalorder %v538, 2
  %vm540 = vcmp.eq.s32.totalorder %v538, 0
  %v541 = vxor.u32 %v535, 2147483648
  %v542 = vsel %vm540, %v527, %v541
  %vm543 = vcmp.eq.s32.totalorder %v538, 2
  %v544 = vxor.u32 %v527, 2147483648
  %v545 = vsel %vm543, %v544, %v535
  %v546 = vsel %vm539, %v542, %v545
  %v547 = vsel %vm536, nan, %v546
  %v548 = vand.u32 2147483647, %v78
  %vm549 = vcmp.le.f32.partialorder %v548, 0.7853982
  %vm550 = vcmp.lt.s32.totalorder %v78, 0
  %v551 = vand.u32 %v78, 2139095040
  %v552 = vshrl.u32 %v551, 23
  %v553 = vsub.s32 %v552, 127
  %v554 = vand.u32 2147483647, %v78
  %v555 = vand.u32 %v554, 8388607
  %v556 = vor.u32 %v555, 8388608
  %v557 = vsub.s32 0, %v556
  %v558 = vadd.s32 %v553, 1
  %vm559 = vcmp.gt.s32.totalorder %v558, 0
  %v560 = vsel %vm559, %v558, 0
  %v561 = vshrl.u32 %v560, 5
  %v562 = vand.u32 %v560, 31
  %v563 = vsub.s32 32, %v562
  %v564 = vshrl.u32 683565275, %v563
  %v565 = vshll.u32 683565275, %v562
  %v566 = vshrl.u32 2475754826, %v563
  %v567 = vor.u32 %v565, %v566
  %v568 = vshll.u32 2475754826, %v562
  %v569 = vshrl.u32 2131351028, %v563
  %v570 = vor.u32 %v568, %v569
  %v571 = vshll.u32 2131351028, %v562
  %v572 = vshrl.u32 2102212464, %v563
  %v573 = vor.u32 %v571, %v572
  %v574 = vshll.u32 2102212464, %v562
  %v575 = vshrl.u32 920167782, %v563
  %v576 = vor.u32 %v574, %v575
  %v577 = vshll.u32 920167782, %v562
  %v578 = vshrl.u32 1326507024, %v563
  %v579 = vor.u32 %v577, %v578
  %vm580 = vcmp.lt.s32.totalorder %v561, 1
  %vm581 = vcmp.lt.s32.totalorder %v561, 2
  %vm582 = vcmp.lt.s32.totalorder %v561, 3
  %vm583 = vcmp.lt.s32.totalorder %v561, 4
  %v584 = vsel %vm580, %v564, %v567
  %v585 = vsel %vm583, %v573, 2102212464
  %v586 = vsel %vm582, %v570, %v585
  %v587 = vsel %vm581, %v584, %v586
  %v588 = vsel %vm580, %v567, %v570
  %v589 = vsel %vm583, %v576, 920167782
  %v590 = vsel %vm582, %v573, %v589
  %v591 = vsel %vm581, %v588, %v590
  %v592 = vsel %vm580, %v570, %v573
  %v593 = vsel %vm583, %v579, 1326507024
  %v594 = vsel %vm582, %v576, %v593
  %v595 = vsel %vm581, %v592, %v594
  %v596 = vshll.u32 %v556, 8
  %v597 = vand.u32 %v596, 65535
  %v598 = vshrl.u32 %v596, 16
  %v599 = vand.u32 %v595, 65535
  %v600 = vshrl.u32 %v595, 16
  %v601 = vmul.u32 %v597, %v599
  %v602 = vmul.u32 %v597, %v600
  %v603 = vmul.u32 %v598, %v599
  %v604 = vmul.u32 %v598, %v600
  %v605 = vshll.u32 %v602, 16
  %v606 = vshrl.u32 %v602, 16
  %v607 = vshll.u32 %v603, 16
  %v608 = vshrl.u32 %v603, 16
  %vm609 = vc.u32 %v601, %v605
  %v610 = vsel %vm609, 1, 0
  %v611 = vadd.s32 %v601, %v605
  %v612 = vadd.s32 %v604, %v610
  %vm613 = vc.u32 %v611, %v607
  %v614 = vsel %vm613, 1, 0
  %v615 = vadd.s32 %v611, %v607
  %v616 = vadd.s32 %v612, %v614
  %v617 = vadd.s32 %v616, %v606
  %v618 = vadd.s32 %v617, %v608
  %v619 = vand.u32 %v596, 65535
  %v620 = vshrl.u32 %v596, 16
  %v621 = vand.u32 %v591, 65535
  %v622 = vshrl.u32 %v591, 16
  %v623 = vmul.u32 %v619, %v621
  %v624 = vmul.u32 %v619, %v622
  %v625 = vmul.u32 %v620, %v621
  %v626 = vmul.u32 %v620, %v622
  %v627 = vshll.u32 %v624, 16
  %v628 = vshrl.u32 %v624, 16
  %v629 = vshll.u32 %v625, 16
  %v630 = vshrl.u32 %v625, 16
  %vm631 = vc.u32 %v623, %v627
  %v632 = vsel %vm631, 1, 0
  %v633 = vadd.s32 %v623, %v627
  %v634 = vadd.s32 %v626, %v632
  %vm635 = vc.u32 %v633, %v629
  %v636 = vsel %vm635, 1, 0
  %v637 = vadd.s32 %v633, %v629
  %v638 = vadd.s32 %v634, %v636
  %v639 = vadd.s32 %v638, %v628
  %v640 = vadd.s32 %v639, %v630
  %v641 = vmul.u32 %v596, %v587
  %v642 = vadd.s32 %v618, %v637
  %vm643 = vc.u32 %v618, %v637
  %v644 = vadd.s32 %v640, 1
  %v645 = vsel %vm643, %v644, %v640
  %v646 = vadd.s32 %v641, %v645
  %v647 = vadd.s32 %v646, 536870912
  %v648 = vshrl.u32 %v647, 30
  %v649 = vshll.u32 %v648, 30
  %v650 = vsub.s32 %v646, %v649
  %vm651 = vcmp.lt.s32.totalorder %v650, 0
  %v652 = vsub.s32 0, %v650
  %v653 = vsel %vm651, %v652, %v650
  %v654 = vclz %v653
  %v655 = vsub.s32 %v654, 2
  %vm656 = vcmp.gt.s32.totalorder 0, %v655
  %v657 = vsel %vm656, 0, %v655
  %v658 = vsub.s32 32, %v657
  %v659 = vshll.u32 %v650, %v657
  %v660 = vshrl.u32 %v642, %v658
  %v661 = vor.u32 %v659, %v660
  %v662 = vsub.s32 4294967266, %v657
  %v663 = vadd.s32 %v662, 127
  %v664 = vshll.u32 %v663, 23
  %v665 = vor.u32 4788187, %v664
  %v666 = vand.u32 2147483647, %v665
  %v668 = vcvt.s32.f32 %v661
  %v669 = vmul.f32 %v668, %v666
  %v670 = vxor.u32 %v669, 2147483648
  %v671 = vsel %vm550, %v670, %v669
  %v672 = vsub.s32 4, %v648
  %v673 = vsel %vm550, %v672, %v648
  %v674 = vsel %vm549, %v78, %v671
  %v675 = vsel %vm549, 0, %v673
  %v676 = vmul.f32 %v674, %v674
  %v677 = vmul.f32 %v676, -0.001358992
  %v678 = vadd.f32 %v677, 0.041655596
  %v679 = vmul.f32 %v676, %v678
  %v680 = vadd.f32 %v679, -0.4999988
  %v681 = vmul.f32 %v676, %v680
  %v682 = vadd.f32 1.0, %v681
  %v683 = vmul.f32 %v674, %v674
  %v684 = vmul.f32 %v683, -0.00019511016
  %v685 = vadd.f32 %v684, 0.008332121
  %v686 = vmul.f32 %v683, %v685
  %v687 = vadd.f32 %v686, -0.16666654
  %v688 = vmul.f32 %v683, %v687
  %v689 = vadd.f32 %v688, 1.0
  %v690 = vmul.f32 %v689, %v674
  %vm691 = vweird.f32 %v78
  %v692 = vadd.s32 %v675, 3
  %v693 = vand.u32 %v692, 3
  %vm694 = vcmp.lt.s32.totalorder %v693, 2
  %vm695 = vcmp.eq.s32.totalorder %v693, 0
  %v696 = vxor.u32 %v690, 2147483648
  %v697 = vsel %vm695, %v682, %v696
  %vm698 = vcmp.eq.s32.totalorder %v693, 2
  %v699 = vxor.u32 %v682, 2147483648
  %v700 = vsel %vm698, %v699, %v690
  %v701 = vsel %vm694, %v697, %v700
  %v702 = vsel %vm691, nan, %v701
  %v703 = vand.u32 2147483647, %v79
  %vm704 = vcmp.le.f32.partialorder %v703, 0.7853982
  %vm705 = vcmp.lt.s32.totalorder %v79, 0
  %v706 = vand.u32 %v79, 2139095040
  %v707 = vshrl.u32 %v706, 23
  %v708 = vsub.s32 %v707, 127
  %v709 = vand.u32 2147483647, %v79
  %v710 = vand.u32 %v709, 8388607
  %v711 = vor.u32 %v710, 8388608
  %v712 = vsub.s32 0, %v711
  %v713 = vadd.s32 %v708, 1
  %vm714 = vcmp.gt.s32.totalorder %v713, 0
  %v715 = vsel %vm714, %v713, 0
  %v716 = vshrl.u32 %v715, 5
  %v717 = vand.u32 %v715, 31
  %v718 = vsub.s32 32, %v717
  %v719 = vshrl.u32 683565275, %v718
  %v720 = vshll.u32 683565275, %v717
  %v721 = vshrl.u32 2475754826, %v718
  %v722 = vor.u32 %v720, %v721
  %v723 = vshll.u32 2475754826, %v717
  %v724 = vshrl.u32 2131351028, %v718
  %v725 = vor.u32 %v723, %v724
  %v726 = vshll.u32 2131351028, %v717
  %v727 = vshrl.u32 2102212464, %v718
  %v728 = vor.u32 %v726, %v727
  %v729 = vshll.u32 2102212464, %v717
  %v730 = vshrl.u32 920167782, %v718
  %v731 = vor.u32 %v729, %v730
  %v732 = vshll.u32 920167782, %v717
  %v733 = vshrl.u32 1326507024, %v718
  %v734 = vor.u32 %v732, %v733
  %vm735 = vcmp.lt.s32.totalorder %v716, 1
  %vm736 = vcmp.lt.s32.totalorder %v716, 2
  %vm737 = vcmp.lt.s32.totalorder %v716, 3
  %vm738 = vcmp.lt.s32.totalorder %v716, 4
  %v739 = vsel %vm735, %v719, %v722
  %v740 = vsel %vm738, %v728, 2102212464
  %v741 = vsel %vm737, %v725, %v740
  %v742 = vsel %vm736, %v739, %v741
  %v743 = vsel %vm735, %v722, %v725
  %v744 = vsel %vm738, %v731, 920167782
  %v745 = vsel %vm737, %v728, %v744
  %v746 = vsel %vm736, %v743, %v745
  %v747 = vsel %vm735, %v725, %v728
  %v748 = vsel %vm738, %v734, 1326507024
  %v749 = vsel %vm737, %v731, %v748
  %v750 = vsel %vm736, %v747, %v749
  %v751 = vshll.u32 %v711, 8
  %v752 = vand.u32 %v751, 65535
  %v753 = vshrl.u32 %v751, 16
  %v754 = vand.u32 %v750, 65535
  %v755 = vshrl.u32 %v750, 16
  %v756 = vmul.u32 %v752, %v754
  %v757 = vmul.u32 %v752, %v755
  %v758 = vmul.u32 %v753, %v754
  %v759 = vmul.u32 %v753, %v755
  %v760 = vshll.u32 %v757, 16
  %v761 = vshrl.u32 %v757, 16
  %v762 = vshll.u32 %v758, 16
  %v763 = vshrl.u32 %v758, 16
  %vm764 = vc.u32 %v756, %v760
  %v765 = vsel %vm764, 1, 0
  %v766 = vadd.s32 %v756, %v760
  %v767 = vadd.s32 %v759, %v765
  %vm768 = vc.u32 %v766, %v762
  %v769 = vsel %vm768, 1, 0
  %v770 = vadd.s32 %v766, %v762
  %v771 = vadd.s32 %v767, %v769
  %v772 = vadd.s32 %v771, %v761
  %v773 = vadd.s32 %v772, %v763
  %v774 = vand.u32 %v751, 65535
  %v775 = vshrl.u32 %v751, 16
  %v776 = vand.u32 %v746, 65535
  %v777 = vshrl.u32 %v746, 16
  %v778 = vmul.u32 %v774, %v776
  %v779 = vmul.u32 %v774, %v777
  %v780 = vmul.u32 %v775, %v776
  %v781 = vmul.u32 %v775, %v777
  %v782 = vshll.u32 %v779, 16
  %v783 = vshrl.u32 %v779, 16
  %v784 = vshll.u32 %v780, 16
  %v785 = vshrl.u32 %v780, 16
  %vm786 = vc.u32 %v778, %v782
  %v787 = vsel %vm786, 1, 0
  %v788 = vadd.s32 %v778, %v782
  %v789 = vadd.s32 %v781, %v787
  %vm790 = vc.u32 %v788, %v784
  %v791 = vsel %vm790, 1, 0
  %v792 = vadd.s32 %v788, %v784
  %v793 = vadd.s32 %v789, %v791
  %v794 = vadd.s32 %v793, %v783
  %v795 = vadd.s32 %v794, %v785
  %v796 = vmul.u32 %v751, %v742
  %v797 = vadd.s32 %v773, %v792
  %vm798 = vc.u32 %v773, %v792
  %v799 = vadd.s32 %v795, 1
  %v800 = vsel %vm798, %v799, %v795
  %v801 = vadd.s32 %v796, %v800
  %v802 = vadd.s32 %v801, 536870912
  %v803 = vshrl.u32 %v802, 30
  %v804 = vshll.u32 %v803, 30
  %v805 = vsub.s32 %v801, %v804
  %vm806 = vcmp.lt.s32.totalorder %v805, 0
  %v807 = vsub.s32 0, %v805
  %v808 = vsel %vm806, %v807, %v805
  %v809 = vclz %v808
  %v810 = vsub.s32 %v809, 2
  %vm811 = vcmp.gt.s32.totalorder 0, %v810
  %v812 = vsel %vm811, 0, %v810
  %v813 = vsub.s32 32, %v812
  %v814 = vshll.u32 %v805, %v812
  %v815 = vshrl.u32 %v797, %v813
  %v816 = vor.u32 %v814, %v815
  %v817 = vsub.s32 4294967266, %v812
  %v818 = vadd.s32 %v817, 127
  %v819 = vshll.u32 %v818, 23
  %v820 = vor.u32 4788187, %v819
  %v821 = vand.u32 2147483647, %v820
  %v823 = vcvt.s32.f32 %v816
  %v824 = vmul.f32 %v823, %v821
  %v825 = vxor.u32 %v824, 2147483648
  %v826 = vsel %vm705, %v825, %v824
  %v827 = vsub.s32 4, %v803
  %v828 = vsel %vm705, %v827, %v803
  %v829 = vsel %vm704, %v79, %v826
  %v830 = vsel %vm704, 0, %v828
  %v831 = vmul.f32 %v829, %v829
  %v832 = vmul.f32 %v831, -0.001358992
  %v833 = vadd.f32 %v832, 0.041655596
  %v834 = vmul.f32 %v831, %v833
  %v835 = vadd.f32 %v834, -0.4999988
  %v836 = vmul.f32 %v831, %v835
  %v837 = vadd.f32 1.0, %v836
  %v838 = vmul.f32 %v829, %v829
  %v839 = vmul.f32 %v838, -0.00019511016
  %v840 = vadd.f32 %v839, 0.008332121
  %v841 = vmul.f32 %v838, %v840
  %v842 = vadd.f32 %v841, -0.16666654
  %v843 = vmul.f32 %v838, %v842
  %v844 = vadd.f32 %v843, 1.0
  %v845 = vmul.f32 %v844, %v829
  %vm846 = vweird.f32 %v79
  %v847 = vadd.s32 %v830, 3
  %v848 = vand.u32 %v847, 3
  %vm849 = vcmp.lt.s32.totalorder %v848, 2
  %vm850 = vcmp.eq.s32.totalorder %v848, 0
  %v851 = vxor.u32 %v845, 2147483648
  %v852 = vsel %vm850, %v837, %v851
  %vm853 = vcmp.eq.s32.totalorder %v848, 2
  %v854 = vxor.u32 %v837, 2147483648
  %v855 = vsel %vm853, %v854, %v845
  %v856 = vsel %vm849, %v852, %v855
  %v857 = vsel %vm846, nan, %v856
  %v858 = vand.u32 2147483647, %v80
  %vm859 = vcmp.le.f32.partialorder %v858, 0.7853982
  %vm860 = vcmp.lt.s32.totalorder %v80, 0
  %v861 = vand.u32 %v80, 2139095040
  %v862 = vshrl.u32 %v861, 23
  %v863 = vsub.s32 %v862, 127
  %v864 = vand.u32 2147483647, %v80
  %v865 = vand.u32 %v864, 8388607
  %v866 = vor.u32 %v865, 8388608
  %v867 = vsub.s32 0, %v866
  %v868 = vadd.s32 %v863, 1
  %vm869 = vcmp.gt.s32.totalorder %v868, 0
  %v870 = vsel %vm869, %v868, 0
  %v871 = vshrl.u32 %v870, 5
  %v872 = vand.u32 %v870, 31
  %v873 = vsub.s32 32, %v872
  %v874 = vshrl.u32 683565275, %v873
  %v875 = vshll.u32 683565275, %v872
  %v876 = vshrl.u32 2475754826, %v873
  %v877 = vor.u32 %v875, %v876
  %v878 = vshll.u32 2475754826, %v872
  %v879 = vshrl.u32 2131351028, %v873
  %v880 = vor.u32 %v878, %v879
  %v881 = vshll.u32 2131351028, %v872
  %v882 = vshrl.u32 2102212464, %v873
  %v883 = vor.u32 %v881, %v882
  %v884 = vshll.u32 2102212464, %v872
  %v885 = vshrl.u32 920167782, %v873
  %v886 = vor.u32 %v884, %v885
  %v887 = vshll.u32 920167782, %v872
  %v888 = vshrl.u32 1326507024, %v873
  %v889 = vor.u32 %v887, %v888
  %vm890 = vcmp.lt.s32.totalorder %v871, 1
  %vm891 = vcmp.lt.s32.totalorder %v871, 2
  %vm892 = vcmp.lt.s32.totalorder %v871, 3
  %vm893 = vcmp.lt.s32.totalorder %v871, 4
  %v894 = vsel %vm890, %v874, %v877
  %v895 = vsel %vm893, %v883, 2102212464
  %v896 = vsel %vm892, %v880, %v895
  %v897 = vsel %vm891, %v894, %v896
  %v898 = vsel %vm890, %v877, %v880
  %v899 = vsel %vm893, %v886, 920167782
  %v900 = vsel %vm892, %v883, %v899
  %v901 = vsel %vm891, %v898, %v900
  %v902 = vsel %vm890, %v880, %v883
  %v903 = vsel %vm893, %v889, 1326507024
  %v904 = vsel %vm892, %v886, %v903
  %v905 = vsel %vm891, %v902, %v904
  %v906 = vshll.u32 %v866, 8
  %v907 = vand.u32 %v906, 65535
  %v908 = vshrl.u32 %v906, 16
  %v909 = vand.u32 %v905, 65535
  %v910 = vshrl.u32 %v905, 16
  %v911 = vmul.u32 %v907, %v909
  %v912 = vmul.u32 %v907, %v910
  %v913 = vmul.u32 %v908, %v909
  %v914 = vmul.u32 %v908, %v910
  %v915 = vshll.u32 %v912, 16
  %v916 = vshrl.u32 %v912, 16
  %v917 = vshll.u32 %v913, 16
  %v918 = vshrl.u32 %v913, 16
  %vm919 = vc.u32 %v911, %v915
  %v920 = vsel %vm919, 1, 0
  %v921 = vadd.s32 %v911, %v915
  %v922 = vadd.s32 %v914, %v920
  %vm923 = vc.u32 %v921, %v917
  %v924 = vsel %vm923, 1, 0
  %v925 = vadd.s32 %v921, %v917
  %v926 = vadd.s32 %v922, %v924
  %v927 = vadd.s32 %v926, %v916
  %v928 = vadd.s32 %v927, %v918
  %v929 = vand.u32 %v906, 65535
  %v930 = vshrl.u32 %v906, 16
  %v931 = vand.u32 %v901, 65535
  %v932 = vshrl.u32 %v901, 16
  %v933 = vmul.u32 %v929, %v931
  %v934 = vmul.u32 %v929, %v932
  %v935 = vmul.u32 %v930, %v931
  %v936 = vmul.u32 %v930, %v932
  %v937 = vshll.u32 %v934, 16
  %v938 = vshrl.u32 %v934, 16
  %v939 = vshll.u32 %v935, 16
  %v940 = vshrl.u32 %v935, 16
  %vm941 = vc.u32 %v933, %v937
  %v942 = vsel %vm941, 1, 0
  %v943 = vadd.s32 %v933, %v937
  %v944 = vadd.s32 %v936, %v942
  %vm945 = vc.u32 %v943, %v939
  %v946 = vsel %vm945, 1, 0
  %v947 = vadd.s32 %v943, %v939
  %v948 = vadd.s32 %v944, %v946
  %v949 = vadd.s32 %v948, %v938
  %v950 = vadd.s32 %v949, %v940
  %v951 = vmul.u32 %v906, %v897
  %v952 = vadd.s32 %v928, %v947
  %vm953 = vc.u32 %v928, %v947
  %v954 = vadd.s32 %v950, 1
  %v955 = vsel %vm953, %v954, %v950
  %v956 = vadd.s32 %v951, %v955
  %v957 = vadd.s32 %v956, 536870912
  %v958 = vshrl.u32 %v957, 30
  %v959 = vshll.u32 %v958, 30
  %v960 = vsub.s32 %v956, %v959
  %vm961 = vcmp.lt.s32.totalorder %v960, 0
  %v962 = vsub.s32 0, %v960
  %v963 = vsel %vm961, %v962, %v960
  %v964 = vclz %v963
  %v965 = vsub.s32 %v964, 2
  %vm966 = vcmp.gt.s32.totalorder 0, %v965
  %v967 = vsel %vm966, 0, %v965
  %v968 = vsub.s32 32, %v967
  %v969 = vshll.u32 %v960, %v967
  %v970 = vshrl.u32 %v952, %v968
  %v971 = vor.u32 %v969, %v970
  %v972 = vsub.s32 4294967266, %v967
  %v973 = vadd.s32 %v972, 127
  %v974 = vshll.u32 %v973, 23
  %v975 = vor.u32 4788187, %v974
  %v976 = vand.u32 2147483647, %v975
  %v978 = vcvt.s32.f32 %v971
  %v979 = vmul.f32 %v978, %v976
  %v980 = vxor.u32 %v979, 2147483648
  %v981 = vsel %vm860, %v980, %v979
  %v982 = vsub.s32 4, %v958
  %v983 = vsel %vm860, %v982, %v958
  %v984 = vsel %vm859, %v80, %v981
  %v985 = vsel %vm859, 0, %v983
  %v986 = vmul.f32 %v984, %v984
  %v987 = vmul.f32 %v986, -0.001358992
  %v988 = vadd.f32 %v987, 0.041655596
  %v989 = vmul.f32 %v986, %v988
  %v990 = vadd.f32 %v989, -0.4999988
  %v991 = vmul.f32 %v986, %v990
  %v992 = vadd.f32 1.0, %v991
  %v993 = vmul.f32 %v984, %v984
  %v994 = vmul.f32 %v993, -0.00019511016
  %v995 = vadd.f32 %v994, 0.008332121
  %v996 = vmul.f32 %v993, %v995
  %v997 = vadd.f32 %v996, -0.16666654
  %v998 = vmul.f32 %v993, %v997
  %v999 = vadd.f32 %v998, 1.0
  %v1000 = vmul.f32 %v999, %v984
  %vm1001 = vweird.f32 %v80
  %v1002 = vadd.s32 %v985, 3
  %v1003 = vand.u32 %v1002, 3
  %vm1004 = vcmp.lt.s32.totalorder %v1003, 2
  %vm1005 = vcmp.eq.s32.totalorder %v1003, 0
  %v1006 = vxor.u32 %v1000, 2147483648
  %v1007 = vsel %vm1005, %v992, %v1006
  %vm1008 = vcmp.eq.s32.totalorder %v1003, 2
  %v1009 = vxor.u32 %v992, 2147483648
  %v1010 = vsel %vm1008, %v1009, %v1000
  %v1011 = vsel %vm1004, %v1007, %v1010
  %v1012 = vsel %vm1001, nan, %v1011
  %v1013 = vand.u32 2147483647, %v81
  %vm1014 = vcmp.le.f32.partialorder %v1013, 0.7853982
  %vm1015 = vcmp.lt.s32.totalorder %v81, 0
  %v1016 = vand.u32 %v81, 2139095040
  %v1017 = vshrl.u32 %v1016, 23
  %v1018 = vsub.s32 %v1017, 127
  %v1019 = vand.u32 2147483647, %v81
  %v1020 = vand.u32 %v1019, 8388607
  %v1021 = vor.u32 %v1020, 8388608
  %v1022 = vsub.s32 0, %v1021
  %v1023 = vadd.s32 %v1018, 1
  %vm1024 = vcmp.gt.s32.totalorder %v1023, 0
  %v1025 = vsel %vm1024, %v1023, 0
  %v1026 = vshrl.u32 %v1025, 5
  %v1027 = vand.u32 %v1025, 31
  %v1028 = vsub.s32 32, %v1027
  %v1029 = vshrl.u32 683565275, %v1028
  %v1030 = vshll.u32 683565275, %v1027
  %v1031 = vshrl.u32 2475754826, %v1028
  %v1032 = vor.u32 %v1030, %v1031
  %v1033 = vshll.u32 2475754826, %v1027
  %v1034 = vshrl.u32 2131351028, %v1028
  %v1035 = vor.u32 %v1033, %v1034
  %v1036 = vshll.u32 2131351028, %v1027
  %v1037 = vshrl.u32 2102212464, %v1028
  %v1038 = vor.u32 %v1036, %v1037
  %v1039 = vshll.u32 2102212464, %v1027
  %v1040 = vshrl.u32 920167782, %v1028
  %v1041 = vor.u32 %v1039, %v1040
  %v1042 = vshll.u32 920167782, %v1027
  %v1043 = vshrl.u32 1326507024, %v1028
  %v1044 = vor.u32 %v1042, %v1043
  %vm1045 = vcmp.lt.s32.totalorder %v1026, 1
  %vm1046 = vcmp.lt.s32.totalorder %v1026, 2
  %vm1047 = vcmp.lt.s32.totalorder %v1026, 3
  %vm1048 = vcmp.lt.s32.totalorder %v1026, 4
  %v1049 = vsel %vm1045, %v1029, %v1032
  %v1050 = vsel %vm1048, %v1038, 2102212464
  %v1051 = vsel %vm1047, %v1035, %v1050
  %v1052 = vsel %vm1046, %v1049, %v1051
  %v1053 = vsel %vm1045, %v1032, %v1035
  %v1054 = vsel %vm1048, %v1041, 920167782
  %v1055 = vsel %vm1047, %v1038, %v1054
  %v1056 = vsel %vm1046, %v1053, %v1055
  %v1057 = vsel %vm1045, %v1035, %v1038
  %v1058 = vsel %vm1048, %v1044, 1326507024
  %v1059 = vsel %vm1047, %v1041, %v1058
  %v1060 = vsel %vm1046, %v1057, %v1059
  %v1061 = vshll.u32 %v1021, 8
  %v1062 = vand.u32 %v1061, 65535
  %v1063 = vshrl.u32 %v1061, 16
  %v1064 = vand.u32 %v1060, 65535
  %v1065 = vshrl.u32 %v1060, 16
  %v1066 = vmul.u32 %v1062, %v1064
  %v1067 = vmul.u32 %v1062, %v1065
  %v1068 = vmul.u32 %v1063, %v1064
  %v1069 = vmul.u32 %v1063, %v1065
  %v1070 = vshll.u32 %v1067, 16
  %v1071 = vshrl.u32 %v1067, 16
  %v1072 = vshll.u32 %v1068, 16
  %v1073 = vshrl.u32 %v1068, 16
  %vm1074 = vc.u32 %v1066, %v1070
  %v1075 = vsel %vm1074, 1, 0
  %v1076 = vadd.s32 %v1066, %v1070
  %v1077 = vadd.s32 %v1069, %v1075
  %vm1078 = vc.u32 %v1076, %v1072
  %v1079 = vsel %vm1078, 1, 0
  %v1080 = vadd.s32 %v1076, %v1072
  %v1081 = vadd.s32 %v1077, %v1079
  %v1082 = vadd.s32 %v1081, %v1071
  %v1083 = vadd.s32 %v1082, %v1073
  %v1084 = vand.u32 %v1061, 65535
  %v1085 = vshrl.u32 %v1061, 16
  %v1086 = vand.u32 %v1056, 65535
  %v1087 = vshrl.u32 %v1056, 16
  %v1088 = vmul.u32 %v1084, %v1086
  %v1089 = vmul.u32 %v1084, %v1087
  %v1090 = vmul.u32 %v1085, %v1086
  %v1091 = vmul.u32 %v1085, %v1087
  %v1092 = vshll.u32 %v1089, 16
  %v1093 = vshrl.u32 %v1089, 16
  %v1094 = vshll.u32 %v1090, 16
  %v1095 = vshrl.u32 %v1090, 16
  %vm1096 = vc.u32 %v1088, %v1092
  %v1097 = vsel %vm1096, 1, 0
  %v1098 = vadd.s32 %v1088, %v1092
  %v1099 = vadd.s32 %v1091, %v1097
  %vm1100 = vc.u32 %v1098, %v1094
  %v1101 = vsel %vm1100, 1, 0
  %v1102 = vadd.s32 %v1098, %v1094
  %v1103 = vadd.s32 %v1099, %v1101
  %v1104 = vadd.s32 %v1103, %v1093
  %v1105 = vadd.s32 %v1104, %v1095
  %v1106 = vmul.u32 %v1061, %v1052
  %v1107 = vadd.s32 %v1083, %v1102
  %vm1108 = vc.u32 %v1083, %v1102
  %v1109 = vadd.s32 %v1105, 1
  %v1110 = vsel %vm1108, %v1109, %v1105
  %v1111 = vadd.s32 %v1106, %v1110
  %v1112 = vadd.s32 %v1111, 536870912
  %v1113 = vshrl.u32 %v1112, 30
  %v1114 = vshll.u32 %v1113, 30
  %v1115 = vsub.s32 %v1111, %v1114
  %vm1116 = vcmp.lt.s32.totalorder %v1115, 0
  %v1117 = vsub.s32 0, %v1115
  %v1118 = vsel %vm1116, %v1117, %v1115
  %v1119 = vclz %v1118
  %v1120 = vsub.s32 %v1119, 2
  %vm1121 = vcmp.gt.s32.totalorder 0, %v1120
  %v1122 = vsel %vm1121, 0, %v1120
  %v1123 = vsub.s32 32, %v1122
  %v1124 = vshll.u32 %v1115, %v1122
  %v1125 = vshrl.u32 %v1107, %v1123
  %v1126 = vor.u32 %v1124, %v1125
  %v1127 = vsub.s32 4294967266, %v1122
  %v1128 = vadd.s32 %v1127, 127
  %v1129 = vshll.u32 %v1128, 23
  %v1130 = vor.u32 4788187, %v1129
  %v1131 = vand.u32 2147483647, %v1130
  %v1133 = vcvt.s32.f32 %v1126
  %v1134 = vmul.f32 %v1133, %v1131
  %v1135 = vxor.u32 %v1134, 2147483648
  %v1136 = vsel %vm1015, %v1135, %v1134
  %v1137 = vsub.s32 4, %v1113
  %v1138 = vsel %vm1015, %v1137, %v1113
  %v1139 = vsel %vm1014, %v81, %v1136
  %v1140 = vsel %vm1014, 0, %v1138
  %v1141 = vmul.f32 %v1139, %v1139
  %v1142 = vmul.f32 %v1141, -0.001358992
  %v1143 = vadd.f32 %v1142, 0.041655596
  %v1144 = vmul.f32 %v1141, %v1143
  %v1145 = vadd.f32 %v1144, -0.4999988
  %v1146 = vmul.f32 %v1141, %v1145
  %v1147 = vadd.f32 1.0, %v1146
  %v1148 = vmul.f32 %v1139, %v1139
  %v1149 = vmul.f32 %v1148, -0.00019511016
  %v1150 = vadd.f32 %v1149, 0.008332121
  %v1151 = vmul.f32 %v1148, %v1150
  %v1152 = vadd.f32 %v1151, -0.16666654
  %v1153 = vmul.f32 %v1148, %v1152
  %v1154 = vadd.f32 %v1153, 1.0
  %v1155 = vmul.f32 %v1154, %v1139
  %vm1156 = vweird.f32 %v81
  %v1157 = vadd.s32 %v1140, 3
  %v1158 = vand.u32 %v1157, 3
  %vm1159 = vcmp.lt.s32.totalorder %v1158, 2
  %vm1160 = vcmp.eq.s32.totalorder %v1158, 0
  %v1161 = vxor.u32 %v1155, 2147483648
  %v1162 = vsel %vm1160, %v1147, %v1161
  %vm1163 = vcmp.eq.s32.totalorder %v1158, 2
  %v1164 = vxor.u32 %v1147, 2147483648
  %v1165 = vsel %vm1163, %v1164, %v1155
  %v1166 = vsel %vm1159, %v1162, %v1165
  %v1167 = vsel %vm1156, nan, %v1166
  %v1168 = vand.u32 2147483647, %v82
  %vm1169 = vcmp.le.f32.partialorder %v1168, 0.7853982
  %vm1170 = vcmp.lt.s32.totalorder %v82, 0
  %v1171 = vand.u32 %v82, 2139095040
  %v1172 = vshrl.u32 %v1171, 23
  %v1173 = vsub.s32 %v1172, 127
  %v1174 = vand.u32 2147483647, %v82
  %v1175 = vand.u32 %v1174, 8388607
  %v1176 = vor.u32 %v1175, 8388608
  %v1177 = vsub.s32 0, %v1176
  %v1178 = vadd.s32 %v1173, 1
  %vm1179 = vcmp.gt.s32.totalorder %v1178, 0
  %v1180 = vsel %vm1179, %v1178, 0
  %v1181 = vshrl.u32 %v1180, 5
  %v1182 = vand.u32 %v1180, 31
  %v1183 = vsub.s32 32, %v1182
  %v1184 = vshrl.u32 683565275, %v1183
  %v1185 = vshll.u32 683565275, %v1182
  %v1186 = vshrl.u32 2475754826, %v1183
  %v1187 = vor.u32 %v1185, %v1186
  %v1188 = vshll.u32 2475754826, %v1182
  %v1189 = vshrl.u32 2131351028, %v1183
  %v1190 = vor.u32 %v1188, %v1189
  %v1191 = vshll.u32 2131351028, %v1182
  %v1192 = vshrl.u32 2102212464, %v1183
  %v1193 = vor.u32 %v1191, %v1192
  %v1194 = vshll.u32 2102212464, %v1182
  %v1195 = vshrl.u32 920167782, %v1183
  %v1196 = vor.u32 %v1194, %v1195
  %v1197 = vshll.u32 920167782, %v1182
  %v1198 = vshrl.u32 1326507024, %v1183
  %v1199 = vor.u32 %v1197, %v1198
  %vm1200 = vcmp.lt.s32.totalorder %v1181, 1
  %vm1201 = vcmp.lt.s32.totalorder %v1181, 2
  %vm1202 = vcmp.lt.s32.totalorder %v1181, 3
  %vm1203 = vcmp.lt.s32.totalorder %v1181, 4
  %v1204 = vsel %vm1200, %v1184, %v1187
  %v1205 = vsel %vm1203, %v1193, 2102212464
  %v1206 = vsel %vm1202, %v1190, %v1205
  %v1207 = vsel %vm1201, %v1204, %v1206
  %v1208 = vsel %vm1200, %v1187, %v1190
  %v1209 = vsel %vm1203, %v1196, 920167782
  %v1210 = vsel %vm1202, %v1193, %v1209
  %v1211 = vsel %vm1201, %v1208, %v1210
  %v1212 = vsel %vm1200, %v1190, %v1193
  %v1213 = vsel %vm1203, %v1199, 1326507024
  %v1214 = vsel %vm1202, %v1196, %v1213
  %v1215 = vsel %vm1201, %v1212, %v1214
  %v1216 = vshll.u32 %v1176, 8
  %v1217 = vand.u32 %v1216, 65535
  %v1218 = vshrl.u32 %v1216, 16
  %v1219 = vand.u32 %v1215, 65535
  %v1220 = vshrl.u32 %v1215, 16
  %v1221 = vmul.u32 %v1217, %v1219
  %v1222 = vmul.u32 %v1217, %v1220
  %v1223 = vmul.u32 %v1218, %v1219
  %v1224 = vmul.u32 %v1218, %v1220
  %v1225 = vshll.u32 %v1222, 16
  %v1226 = vshrl.u32 %v1222, 16
  %v1227 = vshll.u32 %v1223, 16
  %v1228 = vshrl.u32 %v1223, 16
  %vm1229 = vc.u32 %v1221, %v1225
  %v1230 = vsel %vm1229, 1, 0
  %v1231 = vadd.s32 %v1221, %v1225
  %v1232 = vadd.s32 %v1224, %v1230
  %vm1233 = vc.u32 %v1231, %v1227
  %v1234 = vsel %vm1233, 1, 0
  %v1235 = vadd.s32 %v1231, %v1227
  %v1236 = vadd.s32 %v1232, %v1234
  %v1237 = vadd.s32 %v1236, %v1226
  %v1238 = vadd.s32 %v1237, %v1228
  %v1239 = vand.u32 %v1216, 65535
  %v1240 = vshrl.u32 %v1216, 16
  %v1241 = vand.u32 %v1211, 65535
  %v1242 = vshrl.u32 %v1211, 16
  %v1243 = vmul.u32 %v1239, %v1241
  %v1244 = vmul.u32 %v1239, %v1242
  %v1245 = vmul.u32 %v1240, %v1241
  %v1246 = vmul.u32 %v1240, %v1242
  %v1247 = vshll.u32 %v1244, 16
  %v1248 = vshrl.u32 %v1244, 16
  %v1249 = vshll.u32 %v1245, 16
  %v1250 = vshrl.u32 %v1245, 16
  %vm1251 = vc.u32 %v1243, %v1247
  %v1252 = vsel %vm1251, 1, 0
  %v1253 = vadd.s32 %v1243, %v1247
  %v1254 = vadd.s32 %v1246, %v1252
  %vm1255 = vc.u32 %v1253, %v1249
  %v1256 = vsel %vm1255, 1, 0
  %v1257 = vadd.s32 %v1253, %v1249
  %v1258 = vadd.s32 %v1254, %v1256
  %v1259 = vadd.s32 %v1258, %v1248
  %v1260 = vadd.s32 %v1259, %v1250
  %v1261 = vmul.u32 %v1216, %v1207
  %v1262 = vadd.s32 %v1238, %v1257
  %vm1263 = vc.u32 %v1238, %v1257
  %v1264 = vadd.s32 %v1260, 1
  %v1265 = vsel %vm1263, %v1264, %v1260
  %v1266 = vadd.s32 %v1261, %v1265
  %v1267 = vadd.s32 %v1266, 536870912
  %v1268 = vshrl.u32 %v1267, 30
  %v1269 = vshll.u32 %v1268, 30
  %v1270 = vsub.s32 %v1266, %v1269
  %vm1271 = vcmp.lt.s32.totalorder %v1270, 0
  %v1272 = vsub.s32 0, %v1270
  %v1273 = vsel %vm1271, %v1272, %v1270
  %v1274 = vclz %v1273
  %v1275 = vsub.s32 %v1274, 2
  %vm1276 = vcmp.gt.s32.totalorder 0, %v1275
  %v1277 = vsel %vm1276, 0, %v1275
  %v1278 = vsub.s32 32, %v1277
  %v1279 = vshll.u32 %v1270, %v1277
  %v1280 = vshrl.u32 %v1262, %v1278
  %v1281 = vor.u32 %v1279, %v1280
  %v1282 = vsub.s32 4294967266, %v1277
  %v1283 = vadd.s32 %v1282, 127
  %v1284 = vshll.u32 %v1283, 23
  %v1285 = vor.u32 4788187, %v1284
  %v1286 = vand.u32 2147483647, %v1285
  %v1288 = vcvt.s32.f32 %v1281
  %v1289 = vmul.f32 %v1288, %v1286
  %v1290 = vxor.u32 %v1289, 2147483648
  %v1291 = vsel %vm1170, %v1290, %v1289
  %v1292 = vsub.s32 4, %v1268
  %v1293 = vsel %vm1170, %v1292, %v1268
  %v1294 = vsel %vm1169, %v82, %v1291
  %v1295 = vsel %vm1169, 0, %v1293
  %v1296 = vmul.f32 %v1294, %v1294
  %v1297 = vmul.f32 %v1296, -0.001358992
  %v1298 = vadd.f32 %v1297, 0.041655596
  %v1299 = vmul.f32 %v1296, %v1298
  %v1300 = vadd.f32 %v1299, -0.4999988
  %v1301 = vmul.f32 %v1296, %v1300
  %v1302 = vadd.f32 1.0, %v1301
  %v1303 = vmul.f32 %v1294, %v1294
  %v1304 = vmul.f32 %v1303, -0.00019511016
  %v1305 = vadd.f32 %v1304, 0.008332121
  %v1306 = vmul.f32 %v1303, %v1305
  %v1307 = vadd.f32 %v1306, -0.16666654
  %v1308 = vmul.f32 %v1303, %v1307
  %v1309 = vadd.f32 %v1308, 1.0
  %v1310 = vmul.f32 %v1309, %v1294
  %vm1311 = vweird.f32 %v82
  %v1312 = vadd.s32 %v1295, 3
  %v1313 = vand.u32 %v1312, 3
  %vm1314 = vcmp.lt.s32.totalorder %v1313, 2
  %vm1315 = vcmp.eq.s32.totalorder %v1313, 0
  %v1316 = vxor.u32 %v1310, 2147483648
  %v1317 = vsel %vm1315, %v1302, %v1316
  %vm1318 = vcmp.eq.s32.totalorder %v1313, 2
  %v1319 = vxor.u32 %v1302, 2147483648
  %v1320 = vsel %vm1318, %v1319, %v1310
  %v1321 = vsel %vm1314, %v1317, %v1320
  %v1322 = vsel %vm1311, nan, %v1321
  %v1323 = vld [vmem:[%s2] sm:$0xff]
  %v1324 = vld [vmem:[%s2 + $0x8] sm:$0xff]
  %vm1325 = vcmask 64512
  %v1327 = vsel %vm1325, %v237, 0
  %v1330 = vsel %vm1325, %v392, 0
  %v1333 = vsel %vm1325, %v547, 0
  %v1336 = vsel %vm1325, %v702, 0
  %v1339 = vsel %vm1325, %v857, 0
  %v1342 = vsel %vm1325, %v1012, 0
  %v1345 = vsel %vm1325, %v1167, 0
  %v1348 = vsel %vm1325, %v1322, 0
  %1350 = vmatpush.msra.mxu0 0.0
  %1351 = vmatpush.msra.mxu0 0.0
  %1352 = vmatpush.msra.mxu0 0.0
  %1353 = vmatpush.msra.mxu0 0.0
  %1354 = vmatpush.msra.mxu0 0.0
  %1355 = vmatpush.msra.mxu0 0.0
  %1356 = vmatpush.msra.mxu0 0.0
  %1357 = vmatpush.msra.mxu0 0.0
  %1358 = vmatpush.msra.mxu0 0.0
  %1359 = vmatpush.msra.mxu0 0.0
  %1360 = vmatpush.msra.mxu0 0.0
  %1361 = vmatpush.msra.mxu0 0.0
  %1362 = vmatpush.msra.mxu0 0.0
  %1363 = vmatpush.msra.mxu0 0.0
  %1364 = vmatpush.msra.mxu0 0.0
  %1365 = vmatpush.msra.mxu0 %v1324
  %1366 = vmatmul.f32.gmra.mxu0 %v1327
  %v1367 = vpop.f32.mrf.mxu0
  %v1368 = vadd.f32 0.0, %v1367
  %1369 = vmatmul.f32.gmra.mxu0 %v1330
  %v1370 = vpop.f32.mrf.mxu0
  %v1371 = vadd.f32 0.0, %v1370
  %1372 = vmatmul.f32.gmra.mxu0 %v1333
  %v1373 = vpop.f32.mrf.mxu0
  %v1374 = vadd.f32 0.0, %v1373
  %1375 = vmatmul.f32.gmra.mxu0 %v1336
  %v1376 = vpop.f32.mrf.mxu0
  %v1377 = vadd.f32 0.0, %v1376
  %1378 = vmatmul.f32.gmra.mxu0 %v1339
  %v1379 = vpop.f32.mrf.mxu0
  %v1380 = vadd.f32 0.0, %v1379
  %1381 = vmatmul.f32.gmra.mxu0 %v1342
  %v1382 = vpop.f32.mrf.mxu0
  %v1383 = vadd.f32 0.0, %v1382
  %1384 = vmatmul.f32.gmra.mxu0 %v1345
  %v1385 = vpop.f32.mrf.mxu0
  %v1386 = vadd.f32 0.0, %v1385
  %1387 = vmatmul.f32.gmra.mxu0 %v1348
  %v1388 = vpop.f32.mrf.mxu0
  %v1389 = vadd.f32 0.0, %v1388
  %1390 = vdwg.mxu0
  %v1391 = vsel %vm1325, %v14, 0
  %v1393 = vsel %vm1325, %v15, 0
  %v1395 = vsel %vm1325, %v16, 0
  %v1397 = vsel %vm1325, %v17, 0
  %v1399 = vsel %vm1325, %v18, 0
  %v1401 = vsel %vm1325, %v19, 0
  %v1403 = vsel %vm1325, %v20, 0
  %v1405 = vsel %vm1325, %v21, 0
  %1407 = vmatpush.msra.mxu0 0.0
  %1408 = vmatpush.msra.mxu0 0.0
  %1409 = vmatpush.msra.mxu0 0.0
  %1410 = vmatpush.msra.mxu0 0.0
  %1411 = vmatpush.msra.mxu0 0.0
  %1412 = vmatpush.msra.mxu0 0.0
  %1413 = vmatpush.msra.mxu0 0.0
  %1414 = vmatpush.msra.mxu0 0.0
  %1415 = vmatpush.msra.mxu0 0.0
  %1416 = vmatpush.msra.mxu0 0.0
  %1417 = vmatpush.msra.mxu0 0.0
  %1418 = vmatpush.msra.mxu0 0.0
  %1419 = vmatpush.msra.mxu0 0.0
  %1420 = vmatpush.msra.mxu0 0.0
  %1421 = vmatpush.msra.mxu0 0.0
  %1422 = vmatpush.msra.mxu0 %v1323
  %1423 = vmatmul.f32.gmra.mxu0 %v1391
  %v1424 = vpop.f32.mrf.mxu0
  %v1425 = vadd.f32 %v1368, %v1424
  %1426 = vmatmul.f32.gmra.mxu0 %v1393
  %v1427 = vpop.f32.mrf.mxu0
  %v1428 = vadd.f32 %v1371, %v1427
  %1429 = vmatmul.f32.gmra.mxu0 %v1395
  %v1430 = vpop.f32.mrf.mxu0
  %v1431 = vadd.f32 %v1374, %v1430
  %1432 = vmatmul.f32.gmra.mxu0 %v1397
  %v1433 = vpop.f32.mrf.mxu0
  %v1434 = vadd.f32 %v1377, %v1433
  %1435 = vmatmul.f32.gmra.mxu0 %v1399
  %v1436 = vpop.f32.mrf.mxu0
  %v1437 = vadd.f32 %v1380, %v1436
  %1438 = vmatmul.f32.gmra.mxu0 %v1401
  %v1439 = vpop.f32.mrf.mxu0
  %v1440 = vadd.f32 %v1383, %v1439
  %1441 = vmatmul.f32.gmra.mxu0 %v1403
  %v1442 = vpop.f32.mrf.mxu0
  %v1443 = vadd.f32 %v1386, %v1442
  %1444 = vmatmul.f32.gmra.mxu0 %v1405
  %v1445 = vpop.f32.mrf.mxu0
  %v1446 = vadd.f32 %v1389, %v1445
  %1447 = vdwg.mxu0
  %v1448 = vld [vmem:[%s2 + $0xd8] sm:$0x1]
  %v1449 = vperm.slane %v1448, 0
  %v1450 = vadd.f32 %v1425, %v1449
  %v1451 = vadd.f32 %v1428, %v1449
  %v1452 = vadd.f32 %v1431, %v1449
  %v1453 = vadd.f32 %v1434, %v1449
  %v1454 = vadd.f32 %v1437, %v1449
  %v1455 = vadd.f32 %v1440, %v1449
  %v1456 = vadd.f32 %v1443, %v1449
  %v1457 = vadd.f32 %v1446, %v1449
  %v1458 = vmax.f32 %v1450, 0.0
  %v1459 = vmax.f32 %v1451, 0.0
  %v1460 = vmax.f32 %v1452, 0.0
  %v1461 = vmax.f32 %v1453, 0.0
  %v1462 = vmax.f32 %v1454, 0.0
  %v1463 = vmax.f32 %v1455, 0.0
  %v1464 = vmax.f32 %v1456, 0.0
  %v1465 = vmax.f32 %v1457, 0.0
  %v1466 = vld [vmem:[%s2 + $0x10] sm:$0xff]
  %v1467 = vld [vmem:[%s2 + $0x18] sm:$0xff]
  %v1468 = vld [vmem:[%s2 + $0x20] sm:$0xff]
  %v1469 = vld [vmem:[%s2 + $0x28] sm:$0xff]
  %v1470 = vld [vmem:[%s2 + $0xd9] sm:$0x1]
  %v1471 = vperm.slane %v1470, 0
  %vm1472 = vcmask 261120
  %v1474 = vsel %vm1472, %v1458, 0
  %v1477 = vsel %vm1472, %v1459, 0
  %v1480 = vsel %vm1472, %v1460, 0
  %v1483 = vsel %vm1472, %v1461, 0
  %v1486 = vsel %vm1472, %v1462, 0
  %v1489 = vsel %vm1472, %v1463, 0
  %v1492 = vsel %vm1472, %v1464, 0
  %v1495 = vsel %vm1472, %v1465, 0
  %1497 = vmatpush.msra.mxu0 0.0
  %1498 = vmatpush.msra.mxu0 0.0
  %1499 = vmatpush.msra.mxu0 0.0
  %1500 = vmatpush.msra.mxu0 0.0
  %1501 = vmatpush.msra.mxu0 0.0
  %1502 = vmatpush.msra.mxu0 0.0
  %1503 = vmatpush.msra.mxu0 0.0
  %1504 = vmatpush.msra.mxu0 0.0
  %1505 = vmatpush.msra.mxu0 0.0
  %1506 = vmatpush.msra.mxu0 0.0
  %1507 = vmatpush.msra.mxu0 0.0
  %1508 = vmatpush.msra.mxu0 0.0
  %1509 = vmatpush.msra.mxu0 %v1469
  %1510 = vmatpush.msra.mxu0 %v1468
  %1511 = vmatpush.msra.mxu0 %v1467
  %1512 = vmatpush.msra.mxu0 %v1466
  %1513 = vmatmul.f32.gmra.mxu0 %v1474
  %v1514 = vpop.f32.mrf.mxu0
  %v1515 = vadd.f32 %v1471, %v1514
  %1516 = vmatmul.f32.gmra.mxu0 %v1477
  %v1517 = vpop.f32.mrf.mxu0
  %v1518 = vadd.f32 %v1471, %v1517
  %1519 = vmatmul.f32.gmra.mxu0 %v1480
  %v1520 = vpop.f32.mrf.mxu0
  %v1521 = vadd.f32 %v1471, %v1520
  %1522 = vmatmul.f32.gmra.mxu0 %v1483
  %v1523 = vpop.f32.mrf.mxu0
  %v1524 = vadd.f32 %v1471, %v1523
  %1525 = vmatmul.f32.gmra.mxu0 %v1486
  %v1526 = vpop.f32.mrf.mxu0
  %v1527 = vadd.f32 %v1471, %v1526
  %1528 = vmatmul.f32.gmra.mxu0 %v1489
  %v1529 = vpop.f32.mrf.mxu0
  %v1530 = vadd.f32 %v1471, %v1529
  %1531 = vmatmul.f32.gmra.mxu0 %v1492
  %v1532 = vpop.f32.mrf.mxu0
  %v1533 = vadd.f32 %v1471, %v1532
  %1534 = vmatmul.f32.gmra.mxu0 %v1495
  %v1535 = vpop.f32.mrf.mxu0
  %v1536 = vadd.f32 %v1471, %v1535
  %1537 = vdwg.mxu0
  %v1538 = vmax.f32 %v1515, 0.0
  %v1539 = vmax.f32 %v1518, 0.0
  %v1540 = vmax.f32 %v1521, 0.0
  %v1541 = vmax.f32 %v1524, 0.0
  %v1542 = vmax.f32 %v1527, 0.0
  %v1543 = vmax.f32 %v1530, 0.0
  %v1544 = vmax.f32 %v1533, 0.0
  %v1545 = vmax.f32 %v1536, 0.0
  %v1546 = vld [vmem:[%s2 + $0x30] sm:$0xff]
  %v1547 = vld [vmem:[%s2 + $0x38] sm:$0xff]
  %v1548 = vld [vmem:[%s2 + $0x40] sm:$0xff]
  %v1549 = vld [vmem:[%s2 + $0x48] sm:$0xff]
  %v1550 = vld [vmem:[%s2 + $0xda] sm:$0x1]
  %v1551 = vperm.slane %v1550, 0
  %v1553 = vsel %vm1472, %v1538, 0
  %v1556 = vsel %vm1472, %v1539, 0
  %v1559 = vsel %vm1472, %v1540, 0
  %v1562 = vsel %vm1472, %v1541, 0
  %v1565 = vsel %vm1472, %v1542, 0
  %v1568 = vsel %vm1472, %v1543, 0
  %v1571 = vsel %vm1472, %v1544, 0
  %v1574 = vsel %vm1472, %v1545, 0
  %1576 = vmatpush.msra.mxu0 0.0
  %1577 = vmatpush.msra.mxu0 0.0
  %1578 = vmatpush.msra.mxu0 0.0
  %1579 = vmatpush.msra.mxu0 0.0
  %1580 = vmatpush.msra.mxu0 0.0
  %1581 = vmatpush.msra.mxu0 0.0
  %1582 = vmatpush.msra.mxu0 0.0
  %1583 = vmatpush.msra.mxu0 0.0
  %1584 = vmatpush.msra.mxu0 0.0
  %1585 = vmatpush.msra.mxu0 0.0
  %1586 = vmatpush.msra.mxu0 0.0
  %1587 = vmatpush.msra.mxu0 0.0
  %1588 = vmatpush.msra.mxu0 %v1549
  %1589 = vmatpush.msra.mxu0 %v1548
  %1590 = vmatpush.msra.mxu0 %v1547
  %1591 = vmatpush.msra.mxu0 %v1546
  %1592 = vmatmul.f32.gmra.mxu0 %v1553
  %v1593 = vpop.f32.mrf.mxu0
  %v1594 = vadd.f32 %v1551, %v1593
  %1595 = vmatmul.f32.gmra.mxu0 %v1556
  %v1596 = vpop.f32.mrf.mxu0
  %v1597 = vadd.f32 %v1551, %v1596
  %1598 = vmatmul.f32.gmra.mxu0 %v1559
  %v1599 = vpop.f32.mrf.mxu0
  %v1600 = vadd.f32 %v1551, %v1599
  %1601 = vmatmul.f32.gmra.mxu0 %v1562
  %v1602 = vpop.f32.mrf.mxu0
  %v1603 = vadd.f32 %v1551, %v1602
  %1604 = vmatmul.f32.gmra.mxu0 %v1565
  %v1605 = vpop.f32.mrf.mxu0
  %v1606 = vadd.f32 %v1551, %v1605
  %1607 = vmatmul.f32.gmra.mxu0 %v1568
  %v1608 = vpop.f32.mrf.mxu0
  %v1609 = vadd.f32 %v1551, %v1608
  %1610 = vmatmul.f32.gmra.mxu0 %v1571
  %v1611 = vpop.f32.mrf.mxu0
  %v1612 = vadd.f32 %v1551, %v1611
  %1613 = vmatmul.f32.gmra.mxu0 %v1574
  %v1614 = vpop.f32.mrf.mxu0
  %v1615 = vadd.f32 %v1551, %v1614
  %1616 = vdwg.mxu0
  %v1617 = vtanh.pop %v1594
  %v1618 = vtanh.pop %v1597
  %v1619 = vtanh.pop %v1600
  %v1620 = vtanh.pop %v1603
  %v1621 = vtanh.pop %v1606
  %v1622 = vtanh.pop %v1609
  %v1623 = vtanh.pop %v1612
  %v1624 = vtanh.pop %v1615
  %v1625 = vmul.f32 %v1594, %v1594
  %v1626 = vmul.f32 %v1597, %v1597
  %v1627 = vmul.f32 %v1600, %v1600
  %v1628 = vmul.f32 %v1603, %v1603
  %v1629 = vmul.f32 %v1606, %v1606
  %v1630 = vmul.f32 %v1609, %v1609
  %v1631 = vmul.f32 %v1612, %v1612
  %v1632 = vmul.f32 %v1615, %v1615
  %v1633 = vsel %vm1472, %v1625, 0.0
  %1634 = vadd.xlane.f32.xlu0 %v1633
  %v1635 = vpop.xlane.xlu0 %1634
  %v1636 = vsel %vm1472, %v1626, 0.0
  %1637 = vadd.xlane.f32.xlu0 %v1636
  %v1638 = vpop.xlane.xlu0 %1637
  %v1639 = vsel %vm1472, %v1627, 0.0
  %1640 = vadd.xlane.f32.xlu0 %v1639
  %v1641 = vpop.xlane.xlu0 %1640
  %v1642 = vsel %vm1472, %v1628, 0.0
  %1643 = vadd.xlane.f32.xlu0 %v1642
  %v1644 = vpop.xlane.xlu0 %1643
  %v1645 = vsel %vm1472, %v1629, 0.0
  %1646 = vadd.xlane.f32.xlu0 %v1645
  %v1647 = vpop.xlane.xlu0 %1646
  %v1648 = vsel %vm1472, %v1630, 0.0
  %1649 = vadd.xlane.f32.xlu0 %v1648
  %v1650 = vpop.xlane.xlu0 %1649
  %v1651 = vsel %vm1472, %v1631, 0.0
  %1652 = vadd.xlane.f32.xlu0 %v1651
  %v1653 = vpop.xlane.xlu0 %1652
  %v1654 = vsel %vm1472, %v1632, 0.0
  %1655 = vadd.xlane.f32.xlu0 %v1654
  %v1656 = vpop.xlane.xlu0 %1655
  %v1657 = vadd.f32 %v1635, 1e-12
  %v1658 = vadd.f32 %v1638, 1e-12
  %v1659 = vadd.f32 %v1641, 1e-12
  %v1660 = vadd.f32 %v1644, 1e-12
  %v1661 = vadd.f32 %v1647, 1e-12
  %v1662 = vadd.f32 %v1650, 1e-12
  %v1663 = vadd.f32 %v1653, 1e-12
  %v1664 = vadd.f32 %v1656, 1e-12
  %v1665 = vrsqrt.pop %v1657
  %v1666 = vmul.f32 %v1665, %v1657
  %v1667 = vmul.f32 %v1666, %v1665
  %v1668 = vmul.f32 0.5, %v1667
  %v1669 = vsub.f32 1.5, %v1668
  %v1670 = vmul.f32 %v1665, %v1669
  %vm1671 = vweird.f32 %v1657
  %vm1672 = vweird.f32 %v1665
  %vm1673 = vmor %vm1671, %vm1672
  %v1674 = vsel %vm1673, %v1665, %v1670
  %v1675 = vrsqrt.pop %v1658
  %v1676 = vmul.f32 %v1675, %v1658
  %v1677 = vmul.f32 %v1676, %v1675
  %v1678 = vmul.f32 0.5, %v1677
  %v1679 = vsub.f32 1.5, %v1678
  %v1680 = vmul.f32 %v1675, %v1679
  %vm1681 = vweird.f32 %v1658
  %vm1682 = vweird.f32 %v1675
  %vm1683 = vmor %vm1681, %vm1682
  %v1684 = vsel %vm1683, %v1675, %v1680
  %v1685 = vrsqrt.pop %v1659
  %v1686 = vmul.f32 %v1685, %v1659
  %v1687 = vmul.f32 %v1686, %v1685
  %v1688 = vmul.f32 0.5, %v1687
  %v1689 = vsub.f32 1.5, %v1688
  %v1690 = vmul.f32 %v1685, %v1689
  %vm1691 = vweird.f32 %v1659
  %vm1692 = vweird.f32 %v1685
  %vm1693 = vmor %vm1691, %vm1692
  %v1694 = vsel %vm1693, %v1685, %v1690
  %v1695 = vrsqrt.pop %v1660
  %v1696 = vmul.f32 %v1695, %v1660
  %v1697 = vmul.f32 %v1696, %v1695
  %v1698 = vmul.f32 0.5, %v1697
  %v1699 = vsub.f32 1.5, %v1698
  %v1700 = vmul.f32 %v1695, %v1699
  %vm1701 = vweird.f32 %v1660
  %vm1702 = vweird.f32 %v1695
  %vm1703 = vmor %vm1701, %vm1702
  %v1704 = vsel %vm1703, %v1695, %v1700
  %v1705 = vrsqrt.pop %v1661
  %v1706 = vmul.f32 %v1705, %v1661
  %v1707 = vmul.f32 %v1706, %v1705
  %v1708 = vmul.f32 0.5, %v1707
  %v1709 = vsub.f32 1.5, %v1708
  %v1710 = vmul.f32 %v1705, %v1709
  %vm1711 = vweird.f32 %v1661
  %vm1712 = vweird.f32 %v1705
  %vm1713 = vmor %vm1711, %vm1712
  %v1714 = vsel %vm1713, %v1705, %v1710
  %v1715 = vrsqrt.pop %v1662
  %v1716 = vmul.f32 %v1715, %v1662
  %v1717 = vmul.f32 %v1716, %v1715
  %v1718 = vmul.f32 0.5, %v1717
  %v1719 = vsub.f32 1.5, %v1718
  %v1720 = vmul.f32 %v1715, %v1719
  %vm1721 = vweird.f32 %v1662
  %vm1722 = vweird.f32 %v1715
  %vm1723 = vmor %vm1721, %vm1722
  %v1724 = vsel %vm1723, %v1715, %v1720
  %v1725 = vrsqrt.pop %v1663
  %v1726 = vmul.f32 %v1725, %v1663
  %v1727 = vmul.f32 %v1726, %v1725
  %v1728 = vmul.f32 0.5, %v1727
  %v1729 = vsub.f32 1.5, %v1728
  %v1730 = vmul.f32 %v1725, %v1729
  %vm1731 = vweird.f32 %v1663
  %vm1732 = vweird.f32 %v1725
  %vm1733 = vmor %vm1731, %vm1732
  %v1734 = vsel %vm1733, %v1725, %v1730
  %v1735 = vrsqrt.pop %v1664
  %v1736 = vmul.f32 %v1735, %v1664
  %v1737 = vmul.f32 %v1736, %v1735
  %v1738 = vmul.f32 0.5, %v1737
  %v1739 = vsub.f32 1.5, %v1738
  %v1740 = vmul.f32 %v1735, %v1739
  %vm1741 = vweird.f32 %v1664
  %vm1742 = vweird.f32 %v1735
  %vm1743 = vmor %vm1741, %vm1742
  %v1744 = vsel %vm1743, %v1735, %v1740
  %v1745 = vmul.f32 %v1674, 11.313708
  %v1746 = vmul.f32 %v1684, 11.313708
  %v1747 = vmul.f32 %v1694, 11.313708
  %v1748 = vmul.f32 %v1704, 11.313708
  %v1749 = vmul.f32 %v1714, 11.313708
  %v1750 = vmul.f32 %v1724, 11.313708
  %v1751 = vmul.f32 %v1734, 11.313708
  %v1752 = vmul.f32 %v1744, 11.313708
  %v1753 = vld [vmem:[%s2 + $0xe0] sm:$0xf]
  %vm1754 = vcmask 31744
  %v1755 = vsel %vm1754, %v14, 0
  %v1757 = vsel %vm1754, %v15, 0
  %v1759 = vsel %vm1754, %v16, 0
  %v1761 = vsel %vm1754, %v17, 0
  %v1763 = vsel %vm1754, %v18, 0
  %v1765 = vsel %vm1754, %v19, 0
  %v1767 = vsel %vm1754, %v20, 0
  %v1769 = vsel %vm1754, %v21, 0
  %vm1771 = vcmask 1043456
  %v1773 = vsel %vm1771, %v1753, 0
  %1775 = vmatpush.msra.mxu0 0.0
  %1776 = vmatpush.msra.mxu0 0.0
  %1777 = vmatpush.msra.mxu0 0.0
  %1778 = vmatpush.msra.mxu0 0.0
  %1779 = vmatpush.msra.mxu0 0.0
  %1780 = vmatpush.msra.mxu0 0.0
  %1781 = vmatpush.msra.mxu0 0.0
  %1782 = vmatpush.msra.mxu0 0.0
  %1783 = vmatpush.msra.mxu0 0.0
  %1784 = vmatpush.msra.mxu0 0.0
  %1785 = vmatpush.msra.mxu0 0.0
  %1786 = vmatpush.msra.mxu0 0.0
  %1787 = vmatpush.msra.mxu0 0.0
  %1788 = vmatpush.msra.mxu0 0.0
  %1789 = vmatpush.msra.mxu0 0.0
  %1790 = vmatpush.msra.mxu0 %v1773
  %1791 = vmatmul.f32.gmra.mxu0 %v1755
  %v1792 = vpop.f32.mrf.mxu0
  %v1793 = vadd.f32 0.0, %v1792
  %1794 = vmatmul.f32.gmra.mxu0 %v1757
  %v1795 = vpop.f32.mrf.mxu0
  %v1796 = vadd.f32 0.0, %v1795
  %1797 = vmatmul.f32.gmra.mxu0 %v1759
  %v1798 = vpop.f32.mrf.mxu0
  %v1799 = vadd.f32 0.0, %v1798
  %1800 = vmatmul.f32.gmra.mxu0 %v1761
  %v1801 = vpop.f32.mrf.mxu0
  %v1802 = vadd.f32 0.0, %v1801
  %1803 = vmatmul.f32.gmra.mxu0 %v1763
  %v1804 = vpop.f32.mrf.mxu0
  %v1805 = vadd.f32 0.0, %v1804
  %1806 = vmatmul.f32.gmra.mxu0 %v1765
  %v1807 = vpop.f32.mrf.mxu0
  %v1808 = vadd.f32 0.0, %v1807
  %1809 = vmatmul.f32.gmra.mxu0 %v1767
  %v1810 = vpop.f32.mrf.mxu0
  %v1811 = vadd.f32 0.0, %v1810
  %1812 = vmatmul.f32.gmra.mxu0 %v1769
  %v1813 = vpop.f32.mrf.mxu0
  %v1814 = vadd.f32 0.0, %v1813
  %1815 = vdwg.mxu0
  %v1816 = vmul.f32 %v1594, %v1793
  %v1817 = vmul.f32 %v1597, %v1796
  %v1818 = vmul.f32 %v1600, %v1799
  %v1819 = vmul.f32 %v1603, %v1802
  %v1820 = vmul.f32 %v1606, %v1805
  %v1821 = vmul.f32 %v1609, %v1808
  %v1822 = vmul.f32 %v1612, %v1811
  %v1823 = vmul.f32 %v1615, %v1814
  %v1824 = vld [vmem:[%s2 + $0xe8] sm:$0xff]
  %v1825 = vld [vmem:[%s2 + $0xf0] sm:$0xff]
  %v1826 = vld [vmem:[%s2 + $0xf8] sm:$0xff]
  %v1827 = vld [vmem:[%s2 + $0x100] sm:$0xff]
  %v1829 = vsel %vm1472, %v1816, 0
  %v1832 = vsel %vm1472, %v1817, 0
  %v1835 = vsel %vm1472, %v1818, 0
  %v1838 = vsel %vm1472, %v1819, 0
  %v1841 = vsel %vm1472, %v1820, 0
  %v1844 = vsel %vm1472, %v1821, 0
  %v1847 = vsel %vm1472, %v1822, 0
  %v1850 = vsel %vm1472, %v1823, 0
  %1852 = vmatpush.msra.mxu0 0.0
  %1853 = vmatpush.msra.mxu0 0.0
  %1854 = vmatpush.msra.mxu0 0.0
  %1855 = vmatpush.msra.mxu0 0.0
  %1856 = vmatpush.msra.mxu0 0.0
  %1857 = vmatpush.msra.mxu0 0.0
  %1858 = vmatpush.msra.mxu0 0.0
  %1859 = vmatpush.msra.mxu0 0.0
  %1860 = vmatpush.msra.mxu0 0.0
  %1861 = vmatpush.msra.mxu0 0.0
  %1862 = vmatpush.msra.mxu0 0.0
  %1863 = vmatpush.msra.mxu0 0.0
  %1864 = vmatpush.msra.mxu0 %v1827
  %1865 = vmatpush.msra.mxu0 %v1826
  %1866 = vmatpush.msra.mxu0 %v1825
  %1867 = vmatpush.msra.mxu0 %v1824
  %1868 = vmatmul.f32.gmra.mxu0 %v1829
  %v1869 = vpop.f32.mrf.mxu0
  %v1870 = vadd.f32 0.0, %v1869
  %1871 = vmatmul.f32.gmra.mxu0 %v1832
  %v1872 = vpop.f32.mrf.mxu0
  %v1873 = vadd.f32 0.0, %v1872
  %1874 = vmatmul.f32.gmra.mxu0 %v1835
  %v1875 = vpop.f32.mrf.mxu0
  %v1876 = vadd.f32 0.0, %v1875
  %1877 = vmatmul.f32.gmra.mxu0 %v1838
  %v1878 = vpop.f32.mrf.mxu0
  %v1879 = vadd.f32 0.0, %v1878
  %1880 = vmatmul.f32.gmra.mxu0 %v1841
  %v1881 = vpop.f32.mrf.mxu0
  %v1882 = vadd.f32 0.0, %v1881
  %1883 = vmatmul.f32.gmra.mxu0 %v1844
  %v1884 = vpop.f32.mrf.mxu0
  %v1885 = vadd.f32 0.0, %v1884
  %1886 = vmatmul.f32.gmra.mxu0 %v1847
  %v1887 = vpop.f32.mrf.mxu0
  %v1888 = vadd.f32 0.0, %v1887
  %1889 = vmatmul.f32.gmra.mxu0 %v1850
  %v1890 = vpop.f32.mrf.mxu0
  %v1891 = vadd.f32 0.0, %v1890
  %1892 = vdwg.mxu0
  %v1893 = vmul.f32 %v1870, %v1745
  %v1894 = vmul.f32 %v1873, %v1746
  %v1895 = vmul.f32 %v1876, %v1747
  %v1896 = vmul.f32 %v1879, %v1748
  %v1897 = vmul.f32 %v1882, %v1749
  %v1898 = vmul.f32 %v1885, %v1750
  %v1899 = vmul.f32 %v1888, %v1751
  %v1900 = vmul.f32 %v1891, %v1752
  %1909 = vrot.lane.b32.xlu0 %v1617, 96
  %v1910 = vpop.permute.xlu0 %1909
  %1911 = vrot.lane.b32.xlu0 %v1618, 96
  %v1912 = vpop.permute.xlu0 %1911
  %1913 = vrot.lane.b32.xlu0 %v1619, 96
  %v1914 = vpop.permute.xlu0 %1913
  %1915 = vrot.lane.b32.xlu0 %v1620, 96
  %v1916 = vpop.permute.xlu0 %1915
  %1917 = vrot.lane.b32.xlu0 %v1621, 96
  %v1918 = vpop.permute.xlu0 %1917
  %1919 = vrot.lane.b32.xlu0 %v1622, 96
  %v1920 = vpop.permute.xlu0 %1919
  %1921 = vrot.lane.b32.xlu0 %v1623, 96
  %v1922 = vpop.permute.xlu0 %1921
  %1923 = vrot.lane.b32.xlu0 %v1624, 96
  %v1924 = vpop.permute.xlu0 %1923
  %v1933 = vadd.f32 %v1893, %v1910
  %v1934 = vadd.f32 %v1894, %v1912
  %v1935 = vadd.f32 %v1895, %v1914
  %v1936 = vadd.f32 %v1896, %v1916
  %v1937 = vadd.f32 %v1897, %v1918
  %v1938 = vadd.f32 %v1898, %v1920
  %v1939 = vadd.f32 %v1899, %v1922
  %v1940 = vadd.f32 %v1900, %v1924
  %v1941 = vld [vmem:[%s2 + $0x108] sm:$0xff]
  %v1942 = vld [vmem:[%s2 + $0x112] sm:$0x1]
  %v1943 = vperm.slane %v1942, 0
  %v1945 = vsel %vm1325, %v1933, 0
  %v1948 = vsel %vm1325, %v1934, 0
  %v1951 = vsel %vm1325, %v1935, 0
  %v1954 = vsel %vm1325, %v1936, 0
  %v1957 = vsel %vm1325, %v1937, 0
  %v1960 = vsel %vm1325, %v1938, 0
  %v1963 = vsel %vm1325, %v1939, 0
  %v1966 = vsel %vm1325, %v1940, 0
  %1968 = vmatpush.msra.mxu0 0.0
  %1969 = vmatpush.msra.mxu0 0.0
  %1970 = vmatpush.msra.mxu0 0.0
  %1971 = vmatpush.msra.mxu0 0.0
  %1972 = vmatpush.msra.mxu0 0.0
  %1973 = vmatpush.msra.mxu0 0.0
  %1974 = vmatpush.msra.mxu0 0.0
  %1975 = vmatpush.msra.mxu0 0.0
  %1976 = vmatpush.msra.mxu0 0.0
  %1977 = vmatpush.msra.mxu0 0.0
  %1978 = vmatpush.msra.mxu0 0.0
  %1979 = vmatpush.msra.mxu0 0.0
  %1980 = vmatpush.msra.mxu0 0.0
  %1981 = vmatpush.msra.mxu0 0.0
  %1982 = vmatpush.msra.mxu0 0.0
  %1983 = vmatpush.msra.mxu0 %v1941
  %1984 = vmatmul.f32.gmra.mxu0 %v1945
  %v1985 = vpop.f32.mrf.mxu0
  %v1986 = vadd.f32 %v1943, %v1985
  %1987 = vmatmul.f32.gmra.mxu0 %v1948
  %v1988 = vpop.f32.mrf.mxu0
  %v1989 = vadd.f32 %v1943, %v1988
  %1990 = vmatmul.f32.gmra.mxu0 %v1951
  %v1991 = vpop.f32.mrf.mxu0
  %v1992 = vadd.f32 %v1943, %v1991
  %1993 = vmatmul.f32.gmra.mxu0 %v1954
  %v1994 = vpop.f32.mrf.mxu0
  %v1995 = vadd.f32 %v1943, %v1994
  %1996 = vmatmul.f32.gmra.mxu0 %v1957
  %v1997 = vpop.f32.mrf.mxu0
  %v1998 = vadd.f32 %v1943, %v1997
  %1999 = vmatmul.f32.gmra.mxu0 %v1960
  %v2000 = vpop.f32.mrf.mxu0
  %v2001 = vadd.f32 %v1943, %v2000
  %2002 = vmatmul.f32.gmra.mxu0 %v1963
  %v2003 = vpop.f32.mrf.mxu0
  %v2004 = vadd.f32 %v1943, %v2003
  %2005 = vmatmul.f32.gmra.mxu0 %v1966
  %v2006 = vpop.f32.mrf.mxu0
  %v2007 = vadd.f32 %v1943, %v2006
  %2008 = vdwg.mxu0
  %v2009 = vand.u32 2147483647, %v1986
  %vm2010 = vcmp.le.f32.partialorder %v2009, 0.7853982
  %vm2011 = vcmp.lt.s32.totalorder %v1986, 0
  %v2012 = vand.u32 %v1986, 2139095040
  %v2013 = vshrl.u32 %v2012, 23
  %v2014 = vsub.s32 %v2013, 127
  %v2015 = vand.u32 2147483647, %v1986
  %v2016 = vand.u32 %v2015, 8388607
  %v2017 = vor.u32 %v2016, 8388608
  %v2018 = vsub.s32 0, %v2017
  %v2019 = vadd.s32 %v2014, 1
  %vm2020 = vcmp.gt.s32.totalorder %v2019, 0
  %v2021 = vsel %vm2020, %v2019, 0
  %v2022 = vshrl.u32 %v2021, 5
  %v2023 = vand.u32 %v2021, 31
  %v2024 = vsub.s32 32, %v2023
  %v2025 = vshrl.u32 683565275, %v2024
  %v2026 = vshll.u32 683565275, %v2023
  %v2027 = vshrl.u32 2475754826, %v2024
  %v2028 = vor.u32 %v2026, %v2027
  %v2029 = vshll.u32 2475754826, %v2023
  %v2030 = vshrl.u32 2131351028, %v2024
  %v2031 = vor.u32 %v2029, %v2030
  %v2032 = vshll.u32 2131351028, %v2023
  %v2033 = vshrl.u32 2102212464, %v2024
  %v2034 = vor.u32 %v2032, %v2033
  %v2035 = vshll.u32 2102212464, %v2023
  %v2036 = vshrl.u32 920167782, %v2024
  %v2037 = vor.u32 %v2035, %v2036
  %v2038 = vshll.u32 920167782, %v2023
  %v2039 = vshrl.u32 1326507024, %v2024
  %v2040 = vor.u32 %v2038, %v2039
  %vm2041 = vcmp.lt.s32.totalorder %v2022, 1
  %vm2042 = vcmp.lt.s32.totalorder %v2022, 2
  %vm2043 = vcmp.lt.s32.totalorder %v2022, 3
  %vm2044 = vcmp.lt.s32.totalorder %v2022, 4
  %v2045 = vsel %vm2041, %v2025, %v2028
  %v2046 = vsel %vm2044, %v2034, 2102212464
  %v2047 = vsel %vm2043, %v2031, %v2046
  %v2048 = vsel %vm2042, %v2045, %v2047
  %v2049 = vsel %vm2041, %v2028, %v2031
  %v2050 = vsel %vm2044, %v2037, 920167782
  %v2051 = vsel %vm2043, %v2034, %v2050
  %v2052 = vsel %vm2042, %v2049, %v2051
  %v2053 = vsel %vm2041, %v2031, %v2034
  %v2054 = vsel %vm2044, %v2040, 1326507024
  %v2055 = vsel %vm2043, %v2037, %v2054
  %v2056 = vsel %vm2042, %v2053, %v2055
  %v2057 = vshll.u32 %v2017, 8
  %v2058 = vand.u32 %v2057, 65535
  %v2059 = vshrl.u32 %v2057, 16
  %v2060 = vand.u32 %v2056, 65535
  %v2061 = vshrl.u32 %v2056, 16
  %v2062 = vmul.u32 %v2058, %v2060
  %v2063 = vmul.u32 %v2058, %v2061
  %v2064 = vmul.u32 %v2059, %v2060
  %v2065 = vmul.u32 %v2059, %v2061
  %v2066 = vshll.u32 %v2063, 16
  %v2067 = vshrl.u32 %v2063, 16
  %v2068 = vshll.u32 %v2064, 16
  %v2069 = vshrl.u32 %v2064, 16
  %vm2070 = vc.u32 %v2062, %v2066
  %v2071 = vsel %vm2070, 1, 0
  %v2072 = vadd.s32 %v2062, %v2066
  %v2073 = vadd.s32 %v2065, %v2071
  %vm2074 = vc.u32 %v2072, %v2068
  %v2075 = vsel %vm2074, 1, 0
  %v2076 = vadd.s32 %v2072, %v2068
  %v2077 = vadd.s32 %v2073, %v2075
  %v2078 = vadd.s32 %v2077, %v2067
  %v2079 = vadd.s32 %v2078, %v2069
  %v2080 = vand.u32 %v2057, 65535
  %v2081 = vshrl.u32 %v2057, 16
  %v2082 = vand.u32 %v2052, 65535
  %v2083 = vshrl.u32 %v2052, 16
  %v2084 = vmul.u32 %v2080, %v2082
  %v2085 = vmul.u32 %v2080, %v2083
  %v2086 = vmul.u32 %v2081, %v2082
  %v2087 = vmul.u32 %v2081, %v2083
  %v2088 = vshll.u32 %v2085, 16
  %v2089 = vshrl.u32 %v2085, 16
  %v2090 = vshll.u32 %v2086, 16
  %v2091 = vshrl.u32 %v2086, 16
  %vm2092 = vc.u32 %v2084, %v2088
  %v2093 = vsel %vm2092, 1, 0
  %v2094 = vadd.s32 %v2084, %v2088
  %v2095 = vadd.s32 %v2087, %v2093
  %vm2096 = vc.u32 %v2094, %v2090
  %v2097 = vsel %vm2096, 1, 0
  %v2098 = vadd.s32 %v2094, %v2090
  %v2099 = vadd.s32 %v2095, %v2097
  %v2100 = vadd.s32 %v2099, %v2089
  %v2101 = vadd.s32 %v2100, %v2091
  %v2102 = vmul.u32 %v2057, %v2048
  %v2103 = vadd.s32 %v2079, %v2098
  %vm2104 = vc.u32 %v2079, %v2098
  %v2105 = vadd.s32 %v2101, 1
  %v2106 = vsel %vm2104, %v2105, %v2101
  %v2107 = vadd.s32 %v2102, %v2106
  %v2108 = vadd.s32 %v2107, 536870912
  %v2109 = vshrl.u32 %v2108, 30
  %v2110 = vshll.u32 %v2109, 30
  %v2111 = vsub.s32 %v2107, %v2110
  %vm2112 = vcmp.lt.s32.totalorder %v2111, 0
  %v2113 = vsub.s32 0, %v2111
  %v2114 = vsel %vm2112, %v2113, %v2111
  %v2115 = vclz %v2114
  %v2116 = vsub.s32 %v2115, 2
  %vm2117 = vcmp.gt.s32.totalorder 0, %v2116
  %v2118 = vsel %vm2117, 0, %v2116
  %v2119 = vsub.s32 32, %v2118
  %v2120 = vshll.u32 %v2111, %v2118
  %v2121 = vshrl.u32 %v2103, %v2119
  %v2122 = vor.u32 %v2120, %v2121
  %v2123 = vsub.s32 4294967266, %v2118
  %v2124 = vadd.s32 %v2123, 127
  %v2125 = vshll.u32 %v2124, 23
  %v2126 = vor.u32 4788187, %v2125
  %v2127 = vand.u32 2147483647, %v2126
  %v2129 = vcvt.s32.f32 %v2122
  %v2130 = vmul.f32 %v2129, %v2127
  %v2131 = vxor.u32 %v2130, 2147483648
  %v2132 = vsel %vm2011, %v2131, %v2130
  %v2133 = vsub.s32 4, %v2109
  %v2134 = vsel %vm2011, %v2133, %v2109
  %v2135 = vsel %vm2010, %v1986, %v2132
  %v2136 = vsel %vm2010, 0, %v2134
  %v2137 = vmul.f32 %v2135, %v2135
  %v2138 = vmul.f32 %v2137, -0.001358992
  %v2139 = vadd.f32 %v2138, 0.041655596
  %v2140 = vmul.f32 %v2137, %v2139
  %v2141 = vadd.f32 %v2140, -0.4999988
  %v2142 = vmul.f32 %v2137, %v2141
  %v2143 = vadd.f32 1.0, %v2142
  %v2144 = vmul.f32 %v2135, %v2135
  %v2145 = vmul.f32 %v2144, -0.00019511016
  %v2146 = vadd.f32 %v2145, 0.008332121
  %v2147 = vmul.f32 %v2144, %v2146
  %v2148 = vadd.f32 %v2147, -0.16666654
  %v2149 = vmul.f32 %v2144, %v2148
  %v2150 = vadd.f32 %v2149, 1.0
  %v2151 = vmul.f32 %v2150, %v2135
  %vm2152 = vweird.f32 %v1986
  %v2153 = vadd.s32 %v2136, 3
  %v2154 = vand.u32 %v2153, 3
  %vm2155 = vcmp.lt.s32.totalorder %v2154, 2
  %vm2156 = vcmp.eq.s32.totalorder %v2154, 0
  %v2157 = vxor.u32 %v2151, 2147483648
  %v2158 = vsel %vm2156, %v2143, %v2157
  %vm2159 = vcmp.eq.s32.totalorder %v2154, 2
  %v2160 = vxor.u32 %v2143, 2147483648
  %v2161 = vsel %vm2159, %v2160, %v2151
  %v2162 = vsel %vm2155, %v2158, %v2161
  %v2163 = vsel %vm2152, nan, %v2162
  %v2164 = vand.u32 2147483647, %v1989
  %vm2165 = vcmp.le.f32.partialorder %v2164, 0.7853982
  %vm2166 = vcmp.lt.s32.totalorder %v1989, 0
  %v2167 = vand.u32 %v1989, 2139095040
  %v2168 = vshrl.u32 %v2167, 23
  %v2169 = vsub.s32 %v2168, 127
  %v2170 = vand.u32 2147483647, %v1989
  %v2171 = vand.u32 %v2170, 8388607
  %v2172 = vor.u32 %v2171, 8388608
  %v2173 = vsub.s32 0, %v2172
  %v2174 = vadd.s32 %v2169, 1
  %vm2175 = vcmp.gt.s32.totalorder %v2174, 0
  %v2176 = vsel %vm2175, %v2174, 0
  %v2177 = vshrl.u32 %v2176, 5
  %v2178 = vand.u32 %v2176, 31
  %v2179 = vsub.s32 32, %v2178
  %v2180 = vshrl.u32 683565275, %v2179
  %v2181 = vshll.u32 683565275, %v2178
  %v2182 = vshrl.u32 2475754826, %v2179
  %v2183 = vor.u32 %v2181, %v2182
  %v2184 = vshll.u32 2475754826, %v2178
  %v2185 = vshrl.u32 2131351028, %v2179
  %v2186 = vor.u32 %v2184, %v2185
  %v2187 = vshll.u32 2131351028, %v2178
  %v2188 = vshrl.u32 2102212464, %v2179
  %v2189 = vor.u32 %v2187, %v2188
  %v2190 = vshll.u32 2102212464, %v2178
  %v2191 = vshrl.u32 920167782, %v2179
  %v2192 = vor.u32 %v2190, %v2191
  %v2193 = vshll.u32 920167782, %v2178
  %v2194 = vshrl.u32 1326507024, %v2179
  %v2195 = vor.u32 %v2193, %v2194
  %vm2196 = vcmp.lt.s32.totalorder %v2177, 1
  %vm2197 = vcmp.lt.s32.totalorder %v2177, 2
  %vm2198 = vcmp.lt.s32.totalorder %v2177, 3
  %vm2199 = vcmp.lt.s32.totalorder %v2177, 4
  %v2200 = vsel %vm2196, %v2180, %v2183
  %v2201 = vsel %vm2199, %v2189, 2102212464
  %v2202 = vsel %vm2198, %v2186, %v2201
  %v2203 = vsel %vm2197, %v2200, %v2202
  %v2204 = vsel %vm2196, %v2183, %v2186
  %v2205 = vsel %vm2199, %v2192, 920167782
  %v2206 = vsel %vm2198, %v2189, %v2205
  %v2207 = vsel %vm2197, %v2204, %v2206
  %v2208 = vsel %vm2196, %v2186, %v2189
  %v2209 = vsel %vm2199, %v2195, 1326507024
  %v2210 = vsel %vm2198, %v2192, %v2209
  %v2211 = vsel %vm2197, %v2208, %v2210
  %v2212 = vshll.u32 %v2172, 8
  %v2213 = vand.u32 %v2212, 65535
  %v2214 = vshrl.u32 %v2212, 16
  %v2215 = vand.u32 %v2211, 65535
  %v2216 = vshrl.u32 %v2211, 16
  %v2217 = vmul.u32 %v2213, %v2215
  %v2218 = vmul.u32 %v2213, %v2216
  %v2219 = vmul.u32 %v2214, %v2215
  %v2220 = vmul.u32 %v2214, %v2216
  %v2221 = vshll.u32 %v2218, 16
  %v2222 = vshrl.u32 %v2218, 16
  %v2223 = vshll.u32 %v2219, 16
  %v2224 = vshrl.u32 %v2219, 16
  %vm2225 = vc.u32 %v2217, %v2221
  %v2226 = vsel %vm2225, 1, 0
  %v2227 = vadd.s32 %v2217, %v2221
  %v2228 = vadd.s32 %v2220, %v2226
  %vm2229 = vc.u32 %v2227, %v2223
  %v2230 = vsel %vm2229, 1, 0
  %v2231 = vadd.s32 %v2227, %v2223
  %v2232 = vadd.s32 %v2228, %v2230
  %v2233 = vadd.s32 %v2232, %v2222
  %v2234 = vadd.s32 %v2233, %v2224
  %v2235 = vand.u32 %v2212, 65535
  %v2236 = vshrl.u32 %v2212, 16
  %v2237 = vand.u32 %v2207, 65535
  %v2238 = vshrl.u32 %v2207, 16
  %v2239 = vmul.u32 %v2235, %v2237
  %v2240 = vmul.u32 %v2235, %v2238
  %v2241 = vmul.u32 %v2236, %v2237
  %v2242 = vmul.u32 %v2236, %v2238
  %v2243 = vshll.u32 %v2240, 16
  %v2244 = vshrl.u32 %v2240, 16
  %v2245 = vshll.u32 %v2241, 16
  %v2246 = vshrl.u32 %v2241, 16
  %vm2247 = vc.u32 %v2239, %v2243
  %v2248 = vsel %vm2247, 1, 0
  %v2249 = vadd.s32 %v2239, %v2243
  %v2250 = vadd.s32 %v2242, %v2248
  %vm2251 = vc.u32 %v2249, %v2245
  %v2252 = vsel %vm2251, 1, 0
  %v2253 = vadd.s32 %v2249, %v2245
  %v2254 = vadd.s32 %v2250, %v2252
  %v2255 = vadd.s32 %v2254, %v2244
  %v2256 = vadd.s32 %v2255, %v2246
  %v2257 = vmul.u32 %v2212, %v2203
  %v2258 = vadd.s32 %v2234, %v2253
  %vm2259 = vc.u32 %v2234, %v2253
  %v2260 = vadd.s32 %v2256, 1
  %v2261 = vsel %vm2259, %v2260, %v2256
  %v2262 = vadd.s32 %v2257, %v2261
  %v2263 = vadd.s32 %v2262, 536870912
  %v2264 = vshrl.u32 %v2263, 30
  %v2265 = vshll.u32 %v2264, 30
  %v2266 = vsub.s32 %v2262, %v2265
  %vm2267 = vcmp.lt.s32.totalorder %v2266, 0
  %v2268 = vsub.s32 0, %v2266
  %v2269 = vsel %vm2267, %v2268, %v2266
  %v2270 = vclz %v2269
  %v2271 = vsub.s32 %v2270, 2
  %vm2272 = vcmp.gt.s32.totalorder 0, %v2271
  %v2273 = vsel %vm2272, 0, %v2271
  %v2274 = vsub.s32 32, %v2273
  %v2275 = vshll.u32 %v2266, %v2273
  %v2276 = vshrl.u32 %v2258, %v2274
  %v2277 = vor.u32 %v2275, %v2276
  %v2278 = vsub.s32 4294967266, %v2273
  %v2279 = vadd.s32 %v2278, 127
  %v2280 = vshll.u32 %v2279, 23
  %v2281 = vor.u32 4788187, %v2280
  %v2282 = vand.u32 2147483647, %v2281
  %v2284 = vcvt.s32.f32 %v2277
  %v2285 = vmul.f32 %v2284, %v2282
  %v2286 = vxor.u32 %v2285, 2147483648
  %v2287 = vsel %vm2166, %v2286, %v2285
  %v2288 = vsub.s32 4, %v2264
  %v2289 = vsel %vm2166, %v2288, %v2264
  %v2290 = vsel %vm2165, %v1989, %v2287
  %v2291 = vsel %vm2165, 0, %v2289
  %v2292 = vmul.f32 %v2290, %v2290
  %v2293 = vmul.f32 %v2292, -0.001358992
  %v2294 = vadd.f32 %v2293, 0.041655596
  %v2295 = vmul.f32 %v2292, %v2294
  %v2296 = vadd.f32 %v2295, -0.4999988
  %v2297 = vmul.f32 %v2292, %v2296
  %v2298 = vadd.f32 1.0, %v2297
  %v2299 = vmul.f32 %v2290, %v2290
  %v2300 = vmul.f32 %v2299, -0.00019511016
  %v2301 = vadd.f32 %v2300, 0.008332121
  %v2302 = vmul.f32 %v2299, %v2301
  %v2303 = vadd.f32 %v2302, -0.16666654
  %v2304 = vmul.f32 %v2299, %v2303
  %v2305 = vadd.f32 %v2304, 1.0
  %v2306 = vmul.f32 %v2305, %v2290
  %vm2307 = vweird.f32 %v1989
  %v2308 = vadd.s32 %v2291, 3
  %v2309 = vand.u32 %v2308, 3
  %vm2310 = vcmp.lt.s32.totalorder %v2309, 2
  %vm2311 = vcmp.eq.s32.totalorder %v2309, 0
  %v2312 = vxor.u32 %v2306, 2147483648
  %v2313 = vsel %vm2311, %v2298, %v2312
  %vm2314 = vcmp.eq.s32.totalorder %v2309, 2
  %v2315 = vxor.u32 %v2298, 2147483648
  %v2316 = vsel %vm2314, %v2315, %v2306
  %v2317 = vsel %vm2310, %v2313, %v2316
  %v2318 = vsel %vm2307, nan, %v2317
  %v2319 = vand.u32 2147483647, %v1992
  %vm2320 = vcmp.le.f32.partialorder %v2319, 0.7853982
  %vm2321 = vcmp.lt.s32.totalorder %v1992, 0
  %v2322 = vand.u32 %v1992, 2139095040
  %v2323 = vshrl.u32 %v2322, 23
  %v2324 = vsub.s32 %v2323, 127
  %v2325 = vand.u32 2147483647, %v1992
  %v2326 = vand.u32 %v2325, 8388607
  %v2327 = vor.u32 %v2326, 8388608
  %v2328 = vsub.s32 0, %v2327
  %v2329 = vadd.s32 %v2324, 1
  %vm2330 = vcmp.gt.s32.totalorder %v2329, 0
  %v2331 = vsel %vm2330, %v2329, 0
  %v2332 = vshrl.u32 %v2331, 5
  %v2333 = vand.u32 %v2331, 31
  %v2334 = vsub.s32 32, %v2333
  %v2335 = vshrl.u32 683565275, %v2334
  %v2336 = vshll.u32 683565275, %v2333
  %v2337 = vshrl.u32 2475754826, %v2334
  %v2338 = vor.u32 %v2336, %v2337
  %v2339 = vshll.u32 2475754826, %v2333
  %v2340 = vshrl.u32 2131351028, %v2334
  %v2341 = vor.u32 %v2339, %v2340
  %v2342 = vshll.u32 2131351028, %v2333
  %v2343 = vshrl.u32 2102212464, %v2334
  %v2344 = vor.u32 %v2342, %v2343
  %v2345 = vshll.u32 2102212464, %v2333
  %v2346 = vshrl.u32 920167782, %v2334
  %v2347 = vor.u32 %v2345, %v2346
  %v2348 = vshll.u32 920167782, %v2333
  %v2349 = vshrl.u32 1326507024, %v2334
  %v2350 = vor.u32 %v2348, %v2349
  %vm2351 = vcmp.lt.s32.totalorder %v2332, 1
  %vm2352 = vcmp.lt.s32.totalorder %v2332, 2
  %vm2353 = vcmp.lt.s32.totalorder %v2332, 3
  %vm2354 = vcmp.lt.s32.totalorder %v2332, 4
  %v2355 = vsel %vm2351, %v2335, %v2338
  %v2356 = vsel %vm2354, %v2344, 2102212464
  %v2357 = vsel %vm2353, %v2341, %v2356
  %v2358 = vsel %vm2352, %v2355, %v2357
  %v2359 = vsel %vm2351, %v2338, %v2341
  %v2360 = vsel %vm2354, %v2347, 920167782
  %v2361 = vsel %vm2353, %v2344, %v2360
  %v2362 = vsel %vm2352, %v2359, %v2361
  %v2363 = vsel %vm2351, %v2341, %v2344
  %v2364 = vsel %vm2354, %v2350, 1326507024
  %v2365 = vsel %vm2353, %v2347, %v2364
  %v2366 = vsel %vm2352, %v2363, %v2365
  %v2367 = vshll.u32 %v2327, 8
  %v2368 = vand.u32 %v2367, 65535
  %v2369 = vshrl.u32 %v2367, 16
  %v2370 = vand.u32 %v2366, 65535
  %v2371 = vshrl.u32 %v2366, 16
  %v2372 = vmul.u32 %v2368, %v2370
  %v2373 = vmul.u32 %v2368, %v2371
  %v2374 = vmul.u32 %v2369, %v2370
  %v2375 = vmul.u32 %v2369, %v2371
  %v2376 = vshll.u32 %v2373, 16
  %v2377 = vshrl.u32 %v2373, 16
  %v2378 = vshll.u32 %v2374, 16
  %v2379 = vshrl.u32 %v2374, 16
  %vm2380 = vc.u32 %v2372, %v2376
  %v2381 = vsel %vm2380, 1, 0
  %v2382 = vadd.s32 %v2372, %v2376
  %v2383 = vadd.s32 %v2375, %v2381
  %vm2384 = vc.u32 %v2382, %v2378
  %v2385 = vsel %vm2384, 1, 0
  %v2386 = vadd.s32 %v2382, %v2378
  %v2387 = vadd.s32 %v2383, %v2385
  %v2388 = vadd.s32 %v2387, %v2377
  %v2389 = vadd.s32 %v2388, %v2379
  %v2390 = vand.u32 %v2367, 65535
  %v2391 = vshrl.u32 %v2367, 16
  %v2392 = vand.u32 %v2362, 65535
  %v2393 = vshrl.u32 %v2362, 16
  %v2394 = vmul.u32 %v2390, %v2392
  %v2395 = vmul.u32 %v2390, %v2393
  %v2396 = vmul.u32 %v2391, %v2392
  %v2397 = vmul.u32 %v2391, %v2393
  %v2398 = vshll.u32 %v2395, 16
  %v2399 = vshrl.u32 %v2395, 16
  %v2400 = vshll.u32 %v2396, 16
  %v2401 = vshrl.u32 %v2396, 16
  %vm2402 = vc.u32 %v2394, %v2398
  %v2403 = vsel %vm2402, 1, 0
  %v2404 = vadd.s32 %v2394, %v2398
  %v2405 = vadd.s32 %v2397, %v2403
  %vm2406 = vc.u32 %v2404, %v2400
  %v2407 = vsel %vm2406, 1, 0
  %v2408 = vadd.s32 %v2404, %v2400
  %v2409 = vadd.s32 %v2405, %v2407
  %v2410 = vadd.s32 %v2409, %v2399
  %v2411 = vadd.s32 %v2410, %v2401
  %v2412 = vmul.u32 %v2367, %v2358
  %v2413 = vadd.s32 %v2389, %v2408
  %vm2414 = vc.u32 %v2389, %v2408
  %v2415 = vadd.s32 %v2411, 1
  %v2416 = vsel %vm2414, %v2415, %v2411
  %v2417 = vadd.s32 %v2412, %v2416
  %v2418 = vadd.s32 %v2417, 536870912
  %v2419 = vshrl.u32 %v2418, 30
  %v2420 = vshll.u32 %v2419, 30
  %v2421 = vsub.s32 %v2417, %v2420
  %vm2422 = vcmp.lt.s32.totalorder %v2421, 0
  %v2423 = vsub.s32 0, %v2421
  %v2424 = vsel %vm2422, %v2423, %v2421
  %v2425 = vclz %v2424
  %v2426 = vsub.s32 %v2425, 2
  %vm2427 = vcmp.gt.s32.totalorder 0, %v2426
  %v2428 = vsel %vm2427, 0, %v2426
  %v2429 = vsub.s32 32, %v2428
  %v2430 = vshll.u32 %v2421, %v2428
  %v2431 = vshrl.u32 %v2413, %v2429
  %v2432 = vor.u32 %v2430, %v2431
  %v2433 = vsub.s32 4294967266, %v2428
  %v2434 = vadd.s32 %v2433, 127
  %v2435 = vshll.u32 %v2434, 23
  %v2436 = vor.u32 4788187, %v2435
  %v2437 = vand.u32 2147483647, %v2436
  %v2439 = vcvt.s32.f32 %v2432
  %v2440 = vmul.f32 %v2439, %v2437
  %v2441 = vxor.u32 %v2440, 2147483648
  %v2442 = vsel %vm2321, %v2441, %v2440
  %v2443 = vsub.s32 4, %v2419
  %v2444 = vsel %vm2321, %v2443, %v2419
  %v2445 = vsel %vm2320, %v1992, %v2442
  %v2446 = vsel %vm2320, 0, %v2444
  %v2447 = vmul.f32 %v2445, %v2445
  %v2448 = vmul.f32 %v2447, -0.001358992
  %v2449 = vadd.f32 %v2448, 0.041655596
  %v2450 = vmul.f32 %v2447, %v2449
  %v2451 = vadd.f32 %v2450, -0.4999988
  %v2452 = vmul.f32 %v2447, %v2451
  %v2453 = vadd.f32 1.0, %v2452
  %v2454 = vmul.f32 %v2445, %v2445
  %v2455 = vmul.f32 %v2454, -0.00019511016
  %v2456 = vadd.f32 %v2455, 0.008332121
  %v2457 = vmul.f32 %v2454, %v2456
  %v2458 = vadd.f32 %v2457, -0.16666654
  %v2459 = vmul.f32 %v2454, %v2458
  %v2460 = vadd.f32 %v2459, 1.0
  %v2461 = vmul.f32 %v2460, %v2445
  %vm2462 = vweird.f32 %v1992
  %v2463 = vadd.s32 %v2446, 3
  %v2464 = vand.u32 %v2463, 3
  %vm2465 = vcmp.lt.s32.totalorder %v2464, 2
  %vm2466 = vcmp.eq.s32.totalorder %v2464, 0
  %v2467 = vxor.u32 %v2461, 2147483648
  %v2468 = vsel %vm2466, %v2453, %v2467
  %vm2469 = vcmp.eq.s32.totalorder %v2464, 2
  %v2470 = vxor.u32 %v2453, 2147483648
  %v2471 = vsel %vm2469, %v2470, %v2461
  %v2472 = vsel %vm2465, %v2468, %v2471
  %v2473 = vsel %vm2462, nan, %v2472
  %v2474 = vand.u32 2147483647, %v1995
  %vm2475 = vcmp.le.f32.partialorder %v2474, 0.7853982
  %vm2476 = vcmp.lt.s32.totalorder %v1995, 0
  %v2477 = vand.u32 %v1995, 2139095040
  %v2478 = vshrl.u32 %v2477, 23
  %v2479 = vsub.s32 %v2478, 127
  %v2480 = vand.u32 2147483647, %v1995
  %v2481 = vand.u32 %v2480, 8388607
  %v2482 = vor.u32 %v2481, 8388608
  %v2483 = vsub.s32 0, %v2482
  %v2484 = vadd.s32 %v2479, 1
  %vm2485 = vcmp.gt.s32.totalorder %v2484, 0
  %v2486 = vsel %vm2485, %v2484, 0
  %v2487 = vshrl.u32 %v2486, 5
  %v2488 = vand.u32 %v2486, 31
  %v2489 = vsub.s32 32, %v2488
  %v2490 = vshrl.u32 683565275, %v2489
  %v2491 = vshll.u32 683565275, %v2488
  %v2492 = vshrl.u32 2475754826, %v2489
  %v2493 = vor.u32 %v2491, %v2492
  %v2494 = vshll.u32 2475754826, %v2488
  %v2495 = vshrl.u32 2131351028, %v2489
  %v2496 = vor.u32 %v2494, %v2495
  %v2497 = vshll.u32 2131351028, %v2488
  %v2498 = vshrl.u32 2102212464, %v2489
  %v2499 = vor.u32 %v2497, %v2498
  %v2500 = vshll.u32 2102212464, %v2488
  %v2501 = vshrl.u32 920167782, %v2489
  %v2502 = vor.u32 %v2500, %v2501
  %v2503 = vshll.u32 920167782, %v2488
  %v2504 = vshrl.u32 1326507024, %v2489
  %v2505 = vor.u32 %v2503, %v2504
  %vm2506 = vcmp.lt.s32.totalorder %v2487, 1
  %vm2507 = vcmp.lt.s32.totalorder %v2487, 2
  %vm2508 = vcmp.lt.s32.totalorder %v2487, 3
  %vm2509 = vcmp.lt.s32.totalorder %v2487, 4
  %v2510 = vsel %vm2506, %v2490, %v2493
  %v2511 = vsel %vm2509, %v2499, 2102212464
  %v2512 = vsel %vm2508, %v2496, %v2511
  %v2513 = vsel %vm2507, %v2510, %v2512
  %v2514 = vsel %vm2506, %v2493, %v2496
  %v2515 = vsel %vm2509, %v2502, 920167782
  %v2516 = vsel %vm2508, %v2499, %v2515
  %v2517 = vsel %vm2507, %v2514, %v2516
  %v2518 = vsel %vm2506, %v2496, %v2499
  %v2519 = vsel %vm2509, %v2505, 1326507024
  %v2520 = vsel %vm2508, %v2502, %v2519
  %v2521 = vsel %vm2507, %v2518, %v2520
  %v2522 = vshll.u32 %v2482, 8
  %v2523 = vand.u32 %v2522, 65535
  %v2524 = vshrl.u32 %v2522, 16
  %v2525 = vand.u32 %v2521, 65535
  %v2526 = vshrl.u32 %v2521, 16
  %v2527 = vmul.u32 %v2523, %v2525
  %v2528 = vmul.u32 %v2523, %v2526
  %v2529 = vmul.u32 %v2524, %v2525
  %v2530 = vmul.u32 %v2524, %v2526
  %v2531 = vshll.u32 %v2528, 16
  %v2532 = vshrl.u32 %v2528, 16
  %v2533 = vshll.u32 %v2529, 16
  %v2534 = vshrl.u32 %v2529, 16
  %vm2535 = vc.u32 %v2527, %v2531
  %v2536 = vsel %vm2535, 1, 0
  %v2537 = vadd.s32 %v2527, %v2531
  %v2538 = vadd.s32 %v2530, %v2536
  %vm2539 = vc.u32 %v2537, %v2533
  %v2540 = vsel %vm2539, 1, 0
  %v2541 = vadd.s32 %v2537, %v2533
  %v2542 = vadd.s32 %v2538, %v2540
  %v2543 = vadd.s32 %v2542, %v2532
  %v2544 = vadd.s32 %v2543, %v2534
  %v2545 = vand.u32 %v2522, 65535
  %v2546 = vshrl.u32 %v2522, 16
  %v2547 = vand.u32 %v2517, 65535
  %v2548 = vshrl.u32 %v2517, 16
  %v2549 = vmul.u32 %v2545, %v2547
  %v2550 = vmul.u32 %v2545, %v2548
  %v2551 = vmul.u32 %v2546, %v2547
  %v2552 = vmul.u32 %v2546, %v2548
  %v2553 = vshll.u32 %v2550, 16
  %v2554 = vshrl.u32 %v2550, 16
  %v2555 = vshll.u32 %v2551, 16
  %v2556 = vshrl.u32 %v2551, 16
  %vm2557 = vc.u32 %v2549, %v2553
  %v2558 = vsel %vm2557, 1, 0
  %v2559 = vadd.s32 %v2549, %v2553
  %v2560 = vadd.s32 %v2552, %v2558
  %vm2561 = vc.u32 %v2559, %v2555
  %v2562 = vsel %vm2561, 1, 0
  %v2563 = vadd.s32 %v2559, %v2555
  %v2564 = vadd.s32 %v2560, %v2562
  %v2565 = vadd.s32 %v2564, %v2554
  %v2566 = vadd.s32 %v2565, %v2556
  %v2567 = vmul.u32 %v2522, %v2513
  %v2568 = vadd.s32 %v2544, %v2563
  %vm2569 = vc.u32 %v2544, %v2563
  %v2570 = vadd.s32 %v2566, 1
  %v2571 = vsel %vm2569, %v2570, %v2566
  %v2572 = vadd.s32 %v2567, %v2571
  %v2573 = vadd.s32 %v2572, 536870912
  %v2574 = vshrl.u32 %v2573, 30
  %v2575 = vshll.u32 %v2574, 30
  %v2576 = vsub.s32 %v2572, %v2575
  %vm2577 = vcmp.lt.s32.totalorder %v2576, 0
  %v2578 = vsub.s32 0, %v2576
  %v2579 = vsel %vm2577, %v2578, %v2576
  %v2580 = vclz %v2579
  %v2581 = vsub.s32 %v2580, 2
  %vm2582 = vcmp.gt.s32.totalorder 0, %v2581
  %v2583 = vsel %vm2582, 0, %v2581
  %v2584 = vsub.s32 32, %v2583
  %v2585 = vshll.u32 %v2576, %v2583
  %v2586 = vshrl.u32 %v2568, %v2584
  %v2587 = vor.u32 %v2585, %v2586
  %v2588 = vsub.s32 4294967266, %v2583
  %v2589 = vadd.s32 %v2588, 127
  %v2590 = vshll.u32 %v2589, 23
  %v2591 = vor.u32 4788187, %v2590
  %v2592 = vand.u32 2147483647, %v2591
  %v2594 = vcvt.s32.f32 %v2587
  %v2595 = vmul.f32 %v2594, %v2592
  %v2596 = vxor.u32 %v2595, 2147483648
  %v2597 = vsel %vm2476, %v2596, %v2595
  %v2598 = vsub.s32 4, %v2574
  %v2599 = vsel %vm2476, %v2598, %v2574
  %v2600 = vsel %vm2475, %v1995, %v2597
  %v2601 = vsel %vm2475, 0, %v2599
  %v2602 = vmul.f32 %v2600, %v2600
  %v2603 = vmul.f32 %v2602, -0.001358992
  %v2604 = vadd.f32 %v2603, 0.041655596
  %v2605 = vmul.f32 %v2602, %v2604
  %v2606 = vadd.f32 %v2605, -0.4999988
  %v2607 = vmul.f32 %v2602, %v2606
  %v2608 = vadd.f32 1.0, %v2607
  %v2609 = vmul.f32 %v2600, %v2600
  %v2610 = vmul.f32 %v2609, -0.00019511016
  %v2611 = vadd.f32 %v2610, 0.008332121
  %v2612 = vmul.f32 %v2609, %v2611
  %v2613 = vadd.f32 %v2612, -0.16666654
  %v2614 = vmul.f32 %v2609, %v2613
  %v2615 = vadd.f32 %v2614, 1.0
  %v2616 = vmul.f32 %v2615, %v2600
  %vm2617 = vweird.f32 %v1995
  %v2618 = vadd.s32 %v2601, 3
  %v2619 = vand.u32 %v2618, 3
  %vm2620 = vcmp.lt.s32.totalorder %v2619, 2
  %vm2621 = vcmp.eq.s32.totalorder %v2619, 0
  %v2622 = vxor.u32 %v2616, 2147483648
  %v2623 = vsel %vm2621, %v2608, %v2622
  %vm2624 = vcmp.eq.s32.totalorder %v2619, 2
  %v2625 = vxor.u32 %v2608, 2147483648
  %v2626 = vsel %vm2624, %v2625, %v2616
  %v2627 = vsel %vm2620, %v2623, %v2626
  %v2628 = vsel %vm2617, nan, %v2627
  %v2629 = vand.u32 2147483647, %v1998
  %vm2630 = vcmp.le.f32.partialorder %v2629, 0.7853982
  %vm2631 = vcmp.lt.s32.totalorder %v1998, 0
  %v2632 = vand.u32 %v1998, 2139095040
  %v2633 = vshrl.u32 %v2632, 23
  %v2634 = vsub.s32 %v2633, 127
  %v2635 = vand.u32 2147483647, %v1998
  %v2636 = vand.u32 %v2635, 8388607
  %v2637 = vor.u32 %v2636, 8388608
  %v2638 = vsub.s32 0, %v2637
  %v2639 = vadd.s32 %v2634, 1
  %vm2640 = vcmp.gt.s32.totalorder %v2639, 0
  %v2641 = vsel %vm2640, %v2639, 0
  %v2642 = vshrl.u32 %v2641, 5
  %v2643 = vand.u32 %v2641, 31
  %v2644 = vsub.s32 32, %v2643
  %v2645 = vshrl.u32 683565275, %v2644
  %v2646 = vshll.u32 683565275, %v2643
  %v2647 = vshrl.u32 2475754826, %v2644
  %v2648 = vor.u32 %v2646, %v2647
  %v2649 = vshll.u32 2475754826, %v2643
  %v2650 = vshrl.u32 2131351028, %v2644
  %v2651 = vor.u32 %v2649, %v2650
  %v2652 = vshll.u32 2131351028, %v2643
  %v2653 = vshrl.u32 2102212464, %v2644
  %v2654 = vor.u32 %v2652, %v2653
  %v2655 = vshll.u32 2102212464, %v2643
  %v2656 = vshrl.u32 920167782, %v2644
  %v2657 = vor.u32 %v2655, %v2656
  %v2658 = vshll.u32 920167782, %v2643
  %v2659 = vshrl.u32 1326507024, %v2644
  %v2660 = vor.u32 %v2658, %v2659
  %vm2661 = vcmp.lt.s32.totalorder %v2642, 1
  %vm2662 = vcmp.lt.s32.totalorder %v2642, 2
  %vm2663 = vcmp.lt.s32.totalorder %v2642, 3
  %vm2664 = vcmp.lt.s32.totalorder %v2642, 4
  %v2665 = vsel %vm2661, %v2645, %v2648
  %v2666 = vsel %vm2664, %v2654, 2102212464
  %v2667 = vsel %vm2663, %v2651, %v2666
  %v2668 = vsel %vm2662, %v2665, %v2667
  %v2669 = vsel %vm2661, %v2648, %v2651
  %v2670 = vsel %vm2664, %v2657, 920167782
  %v2671 = vsel %vm2663, %v2654, %v2670
  %v2672 = vsel %vm2662, %v2669, %v2671
  %v2673 = vsel %vm2661, %v2651, %v2654
  %v2674 = vsel %vm2664, %v2660, 1326507024
  %v2675 = vsel %vm2663, %v2657, %v2674
  %v2676 = vsel %vm2662, %v2673, %v2675
  %v2677 = vshll.u32 %v2637, 8
  %v2678 = vand.u32 %v2677, 65535
  %v2679 = vshrl.u32 %v2677, 16
  %v2680 = vand.u32 %v2676, 65535
  %v2681 = vshrl.u32 %v2676, 16
  %v2682 = vmul.u32 %v2678, %v2680
  %v2683 = vmul.u32 %v2678, %v2681
  %v2684 = vmul.u32 %v2679, %v2680
  %v2685 = vmul.u32 %v2679, %v2681
  %v2686 = vshll.u32 %v2683, 16
  %v2687 = vshrl.u32 %v2683, 16
  %v2688 = vshll.u32 %v2684, 16
  %v2689 = vshrl.u32 %v2684, 16
  %vm2690 = vc.u32 %v2682, %v2686
  %v2691 = vsel %vm2690, 1, 0
  %v2692 = vadd.s32 %v2682, %v2686
  %v2693 = vadd.s32 %v2685, %v2691
  %vm2694 = vc.u32 %v2692, %v2688
  %v2695 = vsel %vm2694, 1, 0
  %v2696 = vadd.s32 %v2692, %v2688
  %v2697 = vadd.s32 %v2693, %v2695
  %v2698 = vadd.s32 %v2697, %v2687
  %v2699 = vadd.s32 %v2698, %v2689
  %v2700 = vand.u32 %v2677, 65535
  %v2701 = vshrl.u32 %v2677, 16
  %v2702 = vand.u32 %v2672, 65535
  %v2703 = vshrl.u32 %v2672, 16
  %v2704 = vmul.u32 %v2700, %v2702
  %v2705 = vmul.u32 %v2700, %v2703
  %v2706 = vmul.u32 %v2701, %v2702
  %v2707 = vmul.u32 %v2701, %v2703
  %v2708 = vshll.u32 %v2705, 16
  %v2709 = vshrl.u32 %v2705, 16
  %v2710 = vshll.u32 %v2706, 16
  %v2711 = vshrl.u32 %v2706, 16
  %vm2712 = vc.u32 %v2704, %v2708
  %v2713 = vsel %vm2712, 1, 0
  %v2714 = vadd.s32 %v2704, %v2708
  %v2715 = vadd.s32 %v2707, %v2713
  %vm2716 = vc.u32 %v2714, %v2710
  %v2717 = vsel %vm2716, 1, 0
  %v2718 = vadd.s32 %v2714, %v2710
  %v2719 = vadd.s32 %v2715, %v2717
  %v2720 = vadd.s32 %v2719, %v2709
  %v2721 = vadd.s32 %v2720, %v2711
  %v2722 = vmul.u32 %v2677, %v2668
  %v2723 = vadd.s32 %v2699, %v2718
  %vm2724 = vc.u32 %v2699, %v2718
  %v2725 = vadd.s32 %v2721, 1
  %v2726 = vsel %vm2724, %v2725, %v2721
  %v2727 = vadd.s32 %v2722, %v2726
  %v2728 = vadd.s32 %v2727, 536870912
  %v2729 = vshrl.u32 %v2728, 30
  %v2730 = vshll.u32 %v2729, 30
  %v2731 = vsub.s32 %v2727, %v2730
  %vm2732 = vcmp.lt.s32.totalorder %v2731, 0
  %v2733 = vsub.s32 0, %v2731
  %v2734 = vsel %vm2732, %v2733, %v2731
  %v2735 = vclz %v2734
  %v2736 = vsub.s32 %v2735, 2
  %vm2737 = vcmp.gt.s32.totalorder 0, %v2736
  %v2738 = vsel %vm2737, 0, %v2736
  %v2739 = vsub.s32 32, %v2738
  %v2740 = vshll.u32 %v2731, %v2738
  %v2741 = vshrl.u32 %v2723, %v2739
  %v2742 = vor.u32 %v2740, %v2741
  %v2743 = vsub.s32 4294967266, %v2738
  %v2744 = vadd.s32 %v2743, 127
  %v2745 = vshll.u32 %v2744, 23
  %v2746 = vor.u32 4788187, %v2745
  %v2747 = vand.u32 2147483647, %v2746
  %v2749 = vcvt.s32.f32 %v2742
  %v2750 = vmul.f32 %v2749, %v2747
  %v2751 = vxor.u32 %v2750, 2147483648
  %v2752 = vsel %vm2631, %v2751, %v2750
  %v2753 = vsub.s32 4, %v2729
  %v2754 = vsel %vm2631, %v2753, %v2729
  %v2755 = vsel %vm2630, %v1998, %v2752
  %v2756 = vsel %vm2630, 0, %v2754
  %v2757 = vmul.f32 %v2755, %v2755
  %v2758 = vmul.f32 %v2757, -0.001358992
  %v2759 = vadd.f32 %v2758, 0.041655596
  %v2760 = vmul.f32 %v2757, %v2759
  %v2761 = vadd.f32 %v2760, -0.4999988
  %v2762 = vmul.f32 %v2757, %v2761
  %v2763 = vadd.f32 1.0, %v2762
  %v2764 = vmul.f32 %v2755, %v2755
  %v2765 = vmul.f32 %v2764, -0.00019511016
  %v2766 = vadd.f32 %v2765, 0.008332121
  %v2767 = vmul.f32 %v2764, %v2766
  %v2768 = vadd.f32 %v2767, -0.16666654
  %v2769 = vmul.f32 %v2764, %v2768
  %v2770 = vadd.f32 %v2769, 1.0
  %v2771 = vmul.f32 %v2770, %v2755
  %vm2772 = vweird.f32 %v1998
  %v2773 = vadd.s32 %v2756, 3
  %v2774 = vand.u32 %v2773, 3
  %vm2775 = vcmp.lt.s32.totalorder %v2774, 2
  %vm2776 = vcmp.eq.s32.totalorder %v2774, 0
  %v2777 = vxor.u32 %v2771, 2147483648
  %v2778 = vsel %vm2776, %v2763, %v2777
  %vm2779 = vcmp.eq.s32.totalorder %v2774, 2
  %v2780 = vxor.u32 %v2763, 2147483648
  %v2781 = vsel %vm2779, %v2780, %v2771
  %v2782 = vsel %vm2775, %v2778, %v2781
  %v2783 = vsel %vm2772, nan, %v2782
  %v2784 = vand.u32 2147483647, %v2001
  %vm2785 = vcmp.le.f32.partialorder %v2784, 0.7853982
  %vm2786 = vcmp.lt.s32.totalorder %v2001, 0
  %v2787 = vand.u32 %v2001, 2139095040
  %v2788 = vshrl.u32 %v2787, 23
  %v2789 = vsub.s32 %v2788, 127
  %v2790 = vand.u32 2147483647, %v2001
  %v2791 = vand.u32 %v2790, 8388607
  %v2792 = vor.u32 %v2791, 8388608
  %v2793 = vsub.s32 0, %v2792
  %v2794 = vadd.s32 %v2789, 1
  %vm2795 = vcmp.gt.s32.totalorder %v2794, 0
  %v2796 = vsel %vm2795, %v2794, 0
  %v2797 = vshrl.u32 %v2796, 5
  %v2798 = vand.u32 %v2796, 31
  %v2799 = vsub.s32 32, %v2798
  %v2800 = vshrl.u32 683565275, %v2799
  %v2801 = vshll.u32 683565275, %v2798
  %v2802 = vshrl.u32 2475754826, %v2799
  %v2803 = vor.u32 %v2801, %v2802
  %v2804 = vshll.u32 2475754826, %v2798
  %v2805 = vshrl.u32 2131351028, %v2799
  %v2806 = vor.u32 %v2804, %v2805
  %v2807 = vshll.u32 2131351028, %v2798
  %v2808 = vshrl.u32 2102212464, %v2799
  %v2809 = vor.u32 %v2807, %v2808
  %v2810 = vshll.u32 2102212464, %v2798
  %v2811 = vshrl.u32 920167782, %v2799
  %v2812 = vor.u32 %v2810, %v2811
  %v2813 = vshll.u32 920167782, %v2798
  %v2814 = vshrl.u32 1326507024, %v2799
  %v2815 = vor.u32 %v2813, %v2814
  %vm2816 = vcmp.lt.s32.totalorder %v2797, 1
  %vm2817 = vcmp.lt.s32.totalorder %v2797, 2
  %vm2818 = vcmp.lt.s32.totalorder %v2797, 3
  %vm2819 = vcmp.lt.s32.totalorder %v2797, 4
  %v2820 = vsel %vm2816, %v2800, %v2803
  %v2821 = vsel %vm2819, %v2809, 2102212464
  %v2822 = vsel %vm2818, %v2806, %v2821
  %v2823 = vsel %vm2817, %v2820, %v2822
  %v2824 = vsel %vm2816, %v2803, %v2806
  %v2825 = vsel %vm2819, %v2812, 920167782
  %v2826 = vsel %vm2818, %v2809, %v2825
  %v2827 = vsel %vm2817, %v2824, %v2826
  %v2828 = vsel %vm2816, %v2806, %v2809
  %v2829 = vsel %vm2819, %v2815, 1326507024
  %v2830 = vsel %vm2818, %v2812, %v2829
  %v2831 = vsel %vm2817, %v2828, %v2830
  %v2832 = vshll.u32 %v2792, 8
  %v2833 = vand.u32 %v2832, 65535
  %v2834 = vshrl.u32 %v2832, 16
  %v2835 = vand.u32 %v2831, 65535
  %v2836 = vshrl.u32 %v2831, 16
  %v2837 = vmul.u32 %v2833, %v2835
  %v2838 = vmul.u32 %v2833, %v2836
  %v2839 = vmul.u32 %v2834, %v2835
  %v2840 = vmul.u32 %v2834, %v2836
  %v2841 = vshll.u32 %v2838, 16
  %v2842 = vshrl.u32 %v2838, 16
  %v2843 = vshll.u32 %v2839, 16
  %v2844 = vshrl.u32 %v2839, 16
  %vm2845 = vc.u32 %v2837, %v2841
  %v2846 = vsel %vm2845, 1, 0
  %v2847 = vadd.s32 %v2837, %v2841
  %v2848 = vadd.s32 %v2840, %v2846
  %vm2849 = vc.u32 %v2847, %v2843
  %v2850 = vsel %vm2849, 1, 0
  %v2851 = vadd.s32 %v2847, %v2843
  %v2852 = vadd.s32 %v2848, %v2850
  %v2853 = vadd.s32 %v2852, %v2842
  %v2854 = vadd.s32 %v2853, %v2844
  %v2855 = vand.u32 %v2832, 65535
  %v2856 = vshrl.u32 %v2832, 16
  %v2857 = vand.u32 %v2827, 65535
  %v2858 = vshrl.u32 %v2827, 16
  %v2859 = vmul.u32 %v2855, %v2857
  %v2860 = vmul.u32 %v2855, %v2858
  %v2861 = vmul.u32 %v2856, %v2857
  %v2862 = vmul.u32 %v2856, %v2858
  %v2863 = vshll.u32 %v2860, 16
  %v2864 = vshrl.u32 %v2860, 16
  %v2865 = vshll.u32 %v2861, 16
  %v2866 = vshrl.u32 %v2861, 16
  %vm2867 = vc.u32 %v2859, %v2863
  %v2868 = vsel %vm2867, 1, 0
  %v2869 = vadd.s32 %v2859, %v2863
  %v2870 = vadd.s32 %v2862, %v2868
  %vm2871 = vc.u32 %v2869, %v2865
  %v2872 = vsel %vm2871, 1, 0
  %v2873 = vadd.s32 %v2869, %v2865
  %v2874 = vadd.s32 %v2870, %v2872
  %v2875 = vadd.s32 %v2874, %v2864
  %v2876 = vadd.s32 %v2875, %v2866
  %v2877 = vmul.u32 %v2832, %v2823
  %v2878 = vadd.s32 %v2854, %v2873
  %vm2879 = vc.u32 %v2854, %v2873
  %v2880 = vadd.s32 %v2876, 1
  %v2881 = vsel %vm2879, %v2880, %v2876
  %v2882 = vadd.s32 %v2877, %v2881
  %v2883 = vadd.s32 %v2882, 536870912
  %v2884 = vshrl.u32 %v2883, 30
  %v2885 = vshll.u32 %v2884, 30
  %v2886 = vsub.s32 %v2882, %v2885
  %vm2887 = vcmp.lt.s32.totalorder %v2886, 0
  %v2888 = vsub.s32 0, %v2886
  %v2889 = vsel %vm2887, %v2888, %v2886
  %v2890 = vclz %v2889
  %v2891 = vsub.s32 %v2890, 2
  %vm2892 = vcmp.gt.s32.totalorder 0, %v2891
  %v2893 = vsel %vm2892, 0, %v2891
  %v2894 = vsub.s32 32, %v2893
  %v2895 = vshll.u32 %v2886, %v2893
  %v2896 = vshrl.u32 %v2878, %v2894
  %v2897 = vor.u32 %v2895, %v2896
  %v2898 = vsub.s32 4294967266, %v2893
  %v2899 = vadd.s32 %v2898, 127
  %v2900 = vshll.u32 %v2899, 23
  %v2901 = vor.u32 4788187, %v2900
  %v2902 = vand.u32 2147483647, %v2901
  %v2904 = vcvt.s32.f32 %v2897
  %v2905 = vmul.f32 %v2904, %v2902
  %v2906 = vxor.u32 %v2905, 2147483648
  %v2907 = vsel %vm2786, %v2906, %v2905
  %v2908 = vsub.s32 4, %v2884
  %v2909 = vsel %vm2786, %v2908, %v2884
  %v2910 = vsel %vm2785, %v2001, %v2907
  %v2911 = vsel %vm2785, 0, %v2909
  %v2912 = vmul.f32 %v2910, %v2910
  %v2913 = vmul.f32 %v2912, -0.001358992
  %v2914 = vadd.f32 %v2913, 0.041655596
  %v2915 = vmul.f32 %v2912, %v2914
  %v2916 = vadd.f32 %v2915, -0.4999988
  %v2917 = vmul.f32 %v2912, %v2916
  %v2918 = vadd.f32 1.0, %v2917
  %v2919 = vmul.f32 %v2910, %v2910
  %v2920 = vmul.f32 %v2919, -0.00019511016
  %v2921 = vadd.f32 %v2920, 0.008332121
  %v2922 = vmul.f32 %v2919, %v2921
  %v2923 = vadd.f32 %v2922, -0.16666654
  %v2924 = vmul.f32 %v2919, %v2923
  %v2925 = vadd.f32 %v2924, 1.0
  %v2926 = vmul.f32 %v2925, %v2910
  %vm2927 = vweird.f32 %v2001
  %v2928 = vadd.s32 %v2911, 3
  %v2929 = vand.u32 %v2928, 3
  %vm2930 = vcmp.lt.s32.totalorder %v2929, 2
  %vm2931 = vcmp.eq.s32.totalorder %v2929, 0
  %v2932 = vxor.u32 %v2926, 2147483648
  %v2933 = vsel %vm2931, %v2918, %v2932
  %vm2934 = vcmp.eq.s32.totalorder %v2929, 2
  %v2935 = vxor.u32 %v2918, 2147483648
  %v2936 = vsel %vm2934, %v2935, %v2926
  %v2937 = vsel %vm2930, %v2933, %v2936
  %v2938 = vsel %vm2927, nan, %v2937
  %v2939 = vand.u32 2147483647, %v2004
  %vm2940 = vcmp.le.f32.partialorder %v2939, 0.7853982
  %vm2941 = vcmp.lt.s32.totalorder %v2004, 0
  %v2942 = vand.u32 %v2004, 2139095040
  %v2943 = vshrl.u32 %v2942, 23
  %v2944 = vsub.s32 %v2943, 127
  %v2945 = vand.u32 2147483647, %v2004
  %v2946 = vand.u32 %v2945, 8388607
  %v2947 = vor.u32 %v2946, 8388608
  %v2948 = vsub.s32 0, %v2947
  %v2949 = vadd.s32 %v2944, 1
  %vm2950 = vcmp.gt.s32.totalorder %v2949, 0
  %v2951 = vsel %vm2950, %v2949, 0
  %v2952 = vshrl.u32 %v2951, 5
  %v2953 = vand.u32 %v2951, 31
  %v2954 = vsub.s32 32, %v2953
  %v2955 = vshrl.u32 683565275, %v2954
  %v2956 = vshll.u32 683565275, %v2953
  %v2957 = vshrl.u32 2475754826, %v2954
  %v2958 = vor.u32 %v2956, %v2957
  %v2959 = vshll.u32 2475754826, %v2953
  %v2960 = vshrl.u32 2131351028, %v2954
  %v2961 = vor.u32 %v2959, %v2960
  %v2962 = vshll.u32 2131351028, %v2953
  %v2963 = vshrl.u32 2102212464, %v2954
  %v2964 = vor.u32 %v2962, %v2963
  %v2965 = vshll.u32 2102212464, %v2953
  %v2966 = vshrl.u32 920167782, %v2954
  %v2967 = vor.u32 %v2965, %v2966
  %v2968 = vshll.u32 920167782, %v2953
  %v2969 = vshrl.u32 1326507024, %v2954
  %v2970 = vor.u32 %v2968, %v2969
  %vm2971 = vcmp.lt.s32.totalorder %v2952, 1
  %vm2972 = vcmp.lt.s32.totalorder %v2952, 2
  %vm2973 = vcmp.lt.s32.totalorder %v2952, 3
  %vm2974 = vcmp.lt.s32.totalorder %v2952, 4
  %v2975 = vsel %vm2971, %v2955, %v2958
  %v2976 = vsel %vm2974, %v2964, 2102212464
  %v2977 = vsel %vm2973, %v2961, %v2976
  %v2978 = vsel %vm2972, %v2975, %v2977
  %v2979 = vsel %vm2971, %v2958, %v2961
  %v2980 = vsel %vm2974, %v2967, 920167782
  %v2981 = vsel %vm2973, %v2964, %v2980
  %v2982 = vsel %vm2972, %v2979, %v2981
  %v2983 = vsel %vm2971, %v2961, %v2964
  %v2984 = vsel %vm2974, %v2970, 1326507024
  %v2985 = vsel %vm2973, %v2967, %v2984
  %v2986 = vsel %vm2972, %v2983, %v2985
  %v2987 = vshll.u32 %v2947, 8
  %v2988 = vand.u32 %v2987, 65535
  %v2989 = vshrl.u32 %v2987, 16
  %v2990 = vand.u32 %v2986, 65535
  %v2991 = vshrl.u32 %v2986, 16
  %v2992 = vmul.u32 %v2988, %v2990
  %v2993 = vmul.u32 %v2988, %v2991
  %v2994 = vmul.u32 %v2989, %v2990
  %v2995 = vmul.u32 %v2989, %v2991
  %v2996 = vshll.u32 %v2993, 16
  %v2997 = vshrl.u32 %v2993, 16
  %v2998 = vshll.u32 %v2994, 16
  %v2999 = vshrl.u32 %v2994, 16
  %vm3000 = vc.u32 %v2992, %v2996
  %v3001 = vsel %vm3000, 1, 0
  %v3002 = vadd.s32 %v2992, %v2996
  %v3003 = vadd.s32 %v2995, %v3001
  %vm3004 = vc.u32 %v3002, %v2998
  %v3005 = vsel %vm3004, 1, 0
  %v3006 = vadd.s32 %v3002, %v2998
  %v3007 = vadd.s32 %v3003, %v3005
  %v3008 = vadd.s32 %v3007, %v2997
  %v3009 = vadd.s32 %v3008, %v2999
  %v3010 = vand.u32 %v2987, 65535
  %v3011 = vshrl.u32 %v2987, 16
  %v3012 = vand.u32 %v2982, 65535
  %v3013 = vshrl.u32 %v2982, 16
  %v3014 = vmul.u32 %v3010, %v3012
  %v3015 = vmul.u32 %v3010, %v3013
  %v3016 = vmul.u32 %v3011, %v3012
  %v3017 = vmul.u32 %v3011, %v3013
  %v3018 = vshll.u32 %v3015, 16
  %v3019 = vshrl.u32 %v3015, 16
  %v3020 = vshll.u32 %v3016, 16
  %v3021 = vshrl.u32 %v3016, 16
  %vm3022 = vc.u32 %v3014, %v3018
  %v3023 = vsel %vm3022, 1, 0
  %v3024 = vadd.s32 %v3014, %v3018
  %v3025 = vadd.s32 %v3017, %v3023
  %vm3026 = vc.u32 %v3024, %v3020
  %v3027 = vsel %vm3026, 1, 0
  %v3028 = vadd.s32 %v3024, %v3020
  %v3029 = vadd.s32 %v3025, %v3027
  %v3030 = vadd.s32 %v3029, %v3019
  %v3031 = vadd.s32 %v3030, %v3021
  %v3032 = vmul.u32 %v2987, %v2978
  %v3033 = vadd.s32 %v3009, %v3028
  %vm3034 = vc.u32 %v3009, %v3028
  %v3035 = vadd.s32 %v3031, 1
  %v3036 = vsel %vm3034, %v3035, %v3031
  %v3037 = vadd.s32 %v3032, %v3036
  %v3038 = vadd.s32 %v3037, 536870912
  %v3039 = vshrl.u32 %v3038, 30
  %v3040 = vshll.u32 %v3039, 30
  %v3041 = vsub.s32 %v3037, %v3040
  %vm3042 = vcmp.lt.s32.totalorder %v3041, 0
  %v3043 = vsub.s32 0, %v3041
  %v3044 = vsel %vm3042, %v3043, %v3041
  %v3045 = vclz %v3044
  %v3046 = vsub.s32 %v3045, 2
  %vm3047 = vcmp.gt.s32.totalorder 0, %v3046
  %v3048 = vsel %vm3047, 0, %v3046
  %v3049 = vsub.s32 32, %v3048
  %v3050 = vshll.u32 %v3041, %v3048
  %v3051 = vshrl.u32 %v3033, %v3049
  %v3052 = vor.u32 %v3050, %v3051
  %v3053 = vsub.s32 4294967266, %v3048
  %v3054 = vadd.s32 %v3053, 127
  %v3055 = vshll.u32 %v3054, 23
  %v3056 = vor.u32 4788187, %v3055
  %v3057 = vand.u32 2147483647, %v3056
  %v3059 = vcvt.s32.f32 %v3052
  %v3060 = vmul.f32 %v3059, %v3057
  %v3061 = vxor.u32 %v3060, 2147483648
  %v3062 = vsel %vm2941, %v3061, %v3060
  %v3063 = vsub.s32 4, %v3039
  %v3064 = vsel %vm2941, %v3063, %v3039
  %v3065 = vsel %vm2940, %v2004, %v3062
  %v3066 = vsel %vm2940, 0, %v3064
  %v3067 = vmul.f32 %v3065, %v3065
  %v3068 = vmul.f32 %v3067, -0.001358992
  %v3069 = vadd.f32 %v3068, 0.041655596
  %v3070 = vmul.f32 %v3067, %v3069
  %v3071 = vadd.f32 %v3070, -0.4999988
  %v3072 = vmul.f32 %v3067, %v3071
  %v3073 = vadd.f32 1.0, %v3072
  %v3074 = vmul.f32 %v3065, %v3065
  %v3075 = vmul.f32 %v3074, -0.00019511016
  %v3076 = vadd.f32 %v3075, 0.008332121
  %v3077 = vmul.f32 %v3074, %v3076
  %v3078 = vadd.f32 %v3077, -0.16666654
  %v3079 = vmul.f32 %v3074, %v3078
  %v3080 = vadd.f32 %v3079, 1.0
  %v3081 = vmul.f32 %v3080, %v3065
  %vm3082 = vweird.f32 %v2004
  %v3083 = vadd.s32 %v3066, 3
  %v3084 = vand.u32 %v3083, 3
  %vm3085 = vcmp.lt.s32.totalorder %v3084, 2
  %vm3086 = vcmp.eq.s32.totalorder %v3084, 0
  %v3087 = vxor.u32 %v3081, 2147483648
  %v3088 = vsel %vm3086, %v3073, %v3087
  %vm3089 = vcmp.eq.s32.totalorder %v3084, 2
  %v3090 = vxor.u32 %v3073, 2147483648
  %v3091 = vsel %vm3089, %v3090, %v3081
  %v3092 = vsel %vm3085, %v3088, %v3091
  %v3093 = vsel %vm3082, nan, %v3092
  %v3094 = vand.u32 2147483647, %v2007
  %vm3095 = vcmp.le.f32.partialorder %v3094, 0.7853982
  %vm3096 = vcmp.lt.s32.totalorder %v2007, 0
  %v3097 = vand.u32 %v2007, 2139095040
  %v3098 = vshrl.u32 %v3097, 23
  %v3099 = vsub.s32 %v3098, 127
  %v3100 = vand.u32 2147483647, %v2007
  %v3101 = vand.u32 %v3100, 8388607
  %v3102 = vor.u32 %v3101, 8388608
  %v3103 = vsub.s32 0, %v3102
  %v3104 = vadd.s32 %v3099, 1
  %vm3105 = vcmp.gt.s32.totalorder %v3104, 0
  %v3106 = vsel %vm3105, %v3104, 0
  %v3107 = vshrl.u32 %v3106, 5
  %v3108 = vand.u32 %v3106, 31
  %v3109 = vsub.s32 32, %v3108
  %v3110 = vshrl.u32 683565275, %v3109
  %v3111 = vshll.u32 683565275, %v3108
  %v3112 = vshrl.u32 2475754826, %v3109
  %v3113 = vor.u32 %v3111, %v3112
  %v3114 = vshll.u32 2475754826, %v3108
  %v3115 = vshrl.u32 2131351028, %v3109
  %v3116 = vor.u32 %v3114, %v3115
  %v3117 = vshll.u32 2131351028, %v3108
  %v3118 = vshrl.u32 2102212464, %v3109
  %v3119 = vor.u32 %v3117, %v3118
  %v3120 = vshll.u32 2102212464, %v3108
  %v3121 = vshrl.u32 920167782, %v3109
  %v3122 = vor.u32 %v3120, %v3121
  %v3123 = vshll.u32 920167782, %v3108
  %v3124 = vshrl.u32 1326507024, %v3109
  %v3125 = vor.u32 %v3123, %v3124
  %vm3126 = vcmp.lt.s32.totalorder %v3107, 1
  %vm3127 = vcmp.lt.s32.totalorder %v3107, 2
  %vm3128 = vcmp.lt.s32.totalorder %v3107, 3
  %vm3129 = vcmp.lt.s32.totalorder %v3107, 4
  %v3130 = vsel %vm3126, %v3110, %v3113
  %v3131 = vsel %vm3129, %v3119, 2102212464
  %v3132 = vsel %vm3128, %v3116, %v3131
  %v3133 = vsel %vm3127, %v3130, %v3132
  %v3134 = vsel %vm3126, %v3113, %v3116
  %v3135 = vsel %vm3129, %v3122, 920167782
  %v3136 = vsel %vm3128, %v3119, %v3135
  %v3137 = vsel %vm3127, %v3134, %v3136
  %v3138 = vsel %vm3126, %v3116, %v3119
  %v3139 = vsel %vm3129, %v3125, 1326507024
  %v3140 = vsel %vm3128, %v3122, %v3139
  %v3141 = vsel %vm3127, %v3138, %v3140
  %v3142 = vshll.u32 %v3102, 8
  %v3143 = vand.u32 %v3142, 65535
  %v3144 = vshrl.u32 %v3142, 16
  %v3145 = vand.u32 %v3141, 65535
  %v3146 = vshrl.u32 %v3141, 16
  %v3147 = vmul.u32 %v3143, %v3145
  %v3148 = vmul.u32 %v3143, %v3146
  %v3149 = vmul.u32 %v3144, %v3145
  %v3150 = vmul.u32 %v3144, %v3146
  %v3151 = vshll.u32 %v3148, 16
  %v3152 = vshrl.u32 %v3148, 16
  %v3153 = vshll.u32 %v3149, 16
  %v3154 = vshrl.u32 %v3149, 16
  %vm3155 = vc.u32 %v3147, %v3151
  %v3156 = vsel %vm3155, 1, 0
  %v3157 = vadd.s32 %v3147, %v3151
  %v3158 = vadd.s32 %v3150, %v3156
  %vm3159 = vc.u32 %v3157, %v3153
  %v3160 = vsel %vm3159, 1, 0
  %v3161 = vadd.s32 %v3157, %v3153
  %v3162 = vadd.s32 %v3158, %v3160
  %v3163 = vadd.s32 %v3162, %v3152
  %v3164 = vadd.s32 %v3163, %v3154
  %v3165 = vand.u32 %v3142, 65535
  %v3166 = vshrl.u32 %v3142, 16
  %v3167 = vand.u32 %v3137, 65535
  %v3168 = vshrl.u32 %v3137, 16
  %v3169 = vmul.u32 %v3165, %v3167
  %v3170 = vmul.u32 %v3165, %v3168
  %v3171 = vmul.u32 %v3166, %v3167
  %v3172 = vmul.u32 %v3166, %v3168
  %v3173 = vshll.u32 %v3170, 16
  %v3174 = vshrl.u32 %v3170, 16
  %v3175 = vshll.u32 %v3171, 16
  %v3176 = vshrl.u32 %v3171, 16
  %vm3177 = vc.u32 %v3169, %v3173
  %v3178 = vsel %vm3177, 1, 0
  %v3179 = vadd.s32 %v3169, %v3173
  %v3180 = vadd.s32 %v3172, %v3178
  %vm3181 = vc.u32 %v3179, %v3175
  %v3182 = vsel %vm3181, 1, 0
  %v3183 = vadd.s32 %v3179, %v3175
  %v3184 = vadd.s32 %v3180, %v3182
  %v3185 = vadd.s32 %v3184, %v3174
  %v3186 = vadd.s32 %v3185, %v3176
  %v3187 = vmul.u32 %v3142, %v3133
  %v3188 = vadd.s32 %v3164, %v3183
  %vm3189 = vc.u32 %v3164, %v3183
  %v3190 = vadd.s32 %v3186, 1
  %v3191 = vsel %vm3189, %v3190, %v3186
  %v3192 = vadd.s32 %v3187, %v3191
  %v3193 = vadd.s32 %v3192, 536870912
  %v3194 = vshrl.u32 %v3193, 30
  %v3195 = vshll.u32 %v3194, 30
  %v3196 = vsub.s32 %v3192, %v3195
  %vm3197 = vcmp.lt.s32.totalorder %v3196, 0
  %v3198 = vsub.s32 0, %v3196
  %v3199 = vsel %vm3197, %v3198, %v3196
  %v3200 = vclz %v3199
  %v3201 = vsub.s32 %v3200, 2
  %vm3202 = vcmp.gt.s32.totalorder 0, %v3201
  %v3203 = vsel %vm3202, 0, %v3201
  %v3204 = vsub.s32 32, %v3203
  %v3205 = vshll.u32 %v3196, %v3203
  %v3206 = vshrl.u32 %v3188, %v3204
  %v3207 = vor.u32 %v3205, %v3206
  %v3208 = vsub.s32 4294967266, %v3203
  %v3209 = vadd.s32 %v3208, 127
  %v3210 = vshll.u32 %v3209, 23
  %v3211 = vor.u32 4788187, %v3210
  %v3212 = vand.u32 2147483647, %v3211
  %v3214 = vcvt.s32.f32 %v3207
  %v3215 = vmul.f32 %v3214, %v3212
  %v3216 = vxor.u32 %v3215, 2147483648
  %v3217 = vsel %vm3096, %v3216, %v3215
  %v3218 = vsub.s32 4, %v3194
  %v3219 = vsel %vm3096, %v3218, %v3194
  %v3220 = vsel %vm3095, %v2007, %v3217
  %v3221 = vsel %vm3095, 0, %v3219
  %v3222 = vmul.f32 %v3220, %v3220
  %v3223 = vmul.f32 %v3222, -0.001358992
  %v3224 = vadd.f32 %v3223, 0.041655596
  %v3225 = vmul.f32 %v3222, %v3224
  %v3226 = vadd.f32 %v3225, -0.4999988
  %v3227 = vmul.f32 %v3222, %v3226
  %v3228 = vadd.f32 1.0, %v3227
  %v3229 = vmul.f32 %v3220, %v3220
  %v3230 = vmul.f32 %v3229, -0.00019511016
  %v3231 = vadd.f32 %v3230, 0.008332121
  %v3232 = vmul.f32 %v3229, %v3231
  %v3233 = vadd.f32 %v3232, -0.16666654
  %v3234 = vmul.f32 %v3229, %v3233
  %v3235 = vadd.f32 %v3234, 1.0
  %v3236 = vmul.f32 %v3235, %v3220
  %vm3237 = vweird.f32 %v2007
  %v3238 = vadd.s32 %v3221, 3
  %v3239 = vand.u32 %v3238, 3
  %vm3240 = vcmp.lt.s32.totalorder %v3239, 2
  %vm3241 = vcmp.eq.s32.totalorder %v3239, 0
  %v3242 = vxor.u32 %v3236, 2147483648
  %v3243 = vsel %vm3241, %v3228, %v3242
  %vm3244 = vcmp.eq.s32.totalorder %v3239, 2
  %v3245 = vxor.u32 %v3228, 2147483648
  %v3246 = vsel %vm3244, %v3245, %v3236
  %v3247 = vsel %vm3240, %v3243, %v3246
  %v3248 = vsel %vm3237, nan, %v3247
  %v3249 = vld [vmem:[%s2 + $0x50] sm:$0xff]
  %v3250 = vld [vmem:[%s2 + $0x58] sm:$0xff]
  %v3251 = vld [vmem:[%s2 + $0x60] sm:$0xff]
  %v3252 = vld [vmem:[%s2 + $0x68] sm:$0xff]
  %v3253 = vld [vmem:[%s2 + $0x70] sm:$0xff]
  %v3254 = vld [vmem:[%s2 + $0x78] sm:$0xff]
  %v3255 = vld [vmem:[%s2 + $0x80] sm:$0xff]
  %v3256 = vld [vmem:[%s2 + $0x88] sm:$0xff]
  %v3257 = vld [vmem:[%s2 + $0x90] sm:$0xff]
  %vm3258 = vcmask 523264
  %v3260 = vsel %vm3258, %v2163, 0
  %v3263 = vsel %vm3258, %v2318, 0
  %v3266 = vsel %vm3258, %v2473, 0
  %v3269 = vsel %vm3258, %v2628, 0
  %v3272 = vsel %vm3258, %v2783, 0
  %v3275 = vsel %vm3258, %v2938, 0
  %v3278 = vsel %vm3258, %v3093, 0
  %v3281 = vsel %vm3258, %v3248, 0
  %3283 = vmatpush.msra.mxu0 0.0
  %3284 = vmatpush.msra.mxu0 0.0
  %3285 = vmatpush.msra.mxu0 0.0
  %3286 = vmatpush.msra.mxu0 0.0
  %3287 = vmatpush.msra.mxu0 0.0
  %3288 = vmatpush.msra.mxu0 0.0
  %3289 = vmatpush.msra.mxu0 0.0
  %3290 = vmatpush.msra.mxu0 0.0
  %3291 = vmatpush.msra.mxu0 %v3257
  %3292 = vmatpush.msra.mxu0 %v3256
  %3293 = vmatpush.msra.mxu0 %v3255
  %3294 = vmatpush.msra.mxu0 %v3254
  %3295 = vmatpush.msra.mxu0 %v3253
  %3296 = vmatpush.msra.mxu0 %v3252
  %3297 = vmatpush.msra.mxu0 %v3251
  %3298 = vmatpush.msra.mxu0 %v3250
  %3299 = vmatmul.f32.gmra.mxu0 %v3260
  %v3300 = vpop.f32.mrf.mxu0
  %v3301 = vadd.f32 0.0, %v3300
  %3302 = vmatmul.f32.gmra.mxu0 %v3263
  %v3303 = vpop.f32.mrf.mxu0
  %v3304 = vadd.f32 0.0, %v3303
  %3305 = vmatmul.f32.gmra.mxu0 %v3266
  %v3306 = vpop.f32.mrf.mxu0
  %v3307 = vadd.f32 0.0, %v3306
  %3308 = vmatmul.f32.gmra.mxu0 %v3269
  %v3309 = vpop.f32.mrf.mxu0
  %v3310 = vadd.f32 0.0, %v3309
  %3311 = vmatmul.f32.gmra.mxu0 %v3272
  %v3312 = vpop.f32.mrf.mxu0
  %v3313 = vadd.f32 0.0, %v3312
  %3314 = vmatmul.f32.gmra.mxu0 %v3275
  %v3315 = vpop.f32.mrf.mxu0
  %v3316 = vadd.f32 0.0, %v3315
  %3317 = vmatmul.f32.gmra.mxu0 %v3278
  %v3318 = vpop.f32.mrf.mxu0
  %v3319 = vadd.f32 0.0, %v3318
  %3320 = vmatmul.f32.gmra.mxu0 %v3281
  %v3321 = vpop.f32.mrf.mxu0
  %v3322 = vadd.f32 0.0, %v3321
  %3323 = vdwg.mxu0
  %3324 = vmatpush.msra.mxu0 0.0
  %3325 = vmatpush.msra.mxu0 0.0
  %3326 = vmatpush.msra.mxu0 0.0
  %3327 = vmatpush.msra.mxu0 0.0
  %3328 = vmatpush.msra.mxu0 0.0
  %3329 = vmatpush.msra.mxu0 0.0
  %3330 = vmatpush.msra.mxu0 0.0
  %3331 = vmatpush.msra.mxu0 0.0
  %3332 = vmatpush.msra.mxu0 0.0
  %3333 = vmatpush.msra.mxu0 0.0
  %3334 = vmatpush.msra.mxu0 0.0
  %3335 = vmatpush.msra.mxu0 0.0
  %3336 = vmatpush.msra.mxu0 0.0
  %3337 = vmatpush.msra.mxu0 0.0
  %3338 = vmatpush.msra.mxu0 0.0
  %3339 = vmatpush.msra.mxu0 %v3249
  %3340 = vmatmul.f32.gmra.mxu0 %v1945
  %v3341 = vpop.f32.mrf.mxu0
  %v3342 = vadd.f32 %v3301, %v3341
  %3343 = vmatmul.f32.gmra.mxu0 %v1948
  %v3344 = vpop.f32.mrf.mxu0
  %v3345 = vadd.f32 %v3304, %v3344
  %3346 = vmatmul.f32.gmra.mxu0 %v1951
  %v3347 = vpop.f32.mrf.mxu0
  %v3348 = vadd.f32 %v3307, %v3347
  %3349 = vmatmul.f32.gmra.mxu0 %v1954
  %v3350 = vpop.f32.mrf.mxu0
  %v3351 = vadd.f32 %v3310, %v3350
  %3352 = vmatmul.f32.gmra.mxu0 %v1957
  %v3353 = vpop.f32.mrf.mxu0
  %v3354 = vadd.f32 %v3313, %v3353
  %3355 = vmatmul.f32.gmra.mxu0 %v1960
  %v3356 = vpop.f32.mrf.mxu0
  %v3357 = vadd.f32 %v3316, %v3356
  %3358 = vmatmul.f32.gmra.mxu0 %v1963
  %v3359 = vpop.f32.mrf.mxu0
  %v3360 = vadd.f32 %v3319, %v3359
  %3361 = vmatmul.f32.gmra.mxu0 %v1966
  %v3362 = vpop.f32.mrf.mxu0
  %v3363 = vadd.f32 %v3322, %v3362
  %3364 = vdwg.mxu0
  %v3365 = vld [vmem:[%s2 + $0xdb] sm:$0x1]
  %v3366 = vperm.slane %v3365, 0
  %v3367 = vadd.f32 %v3342, %v3366
  %v3368 = vadd.f32 %v3345, %v3366
  %v3369 = vadd.f32 %v3348, %v3366
  %v3370 = vadd.f32 %v3351, %v3366
  %v3371 = vadd.f32 %v3354, %v3366
  %v3372 = vadd.f32 %v3357, %v3366
  %v3373 = vadd.f32 %v3360, %v3366
  %v3374 = vadd.f32 %v3363, %v3366
  %v3375 = vmax.f32 %v3367, 0.0
  %v3376 = vmax.f32 %v3368, 0.0
  %v3377 = vmax.f32 %v3369, 0.0
  %v3378 = vmax.f32 %v3370, 0.0
  %v3379 = vmax.f32 %v3371, 0.0
  %v3380 = vmax.f32 %v3372, 0.0
  %v3381 = vmax.f32 %v3373, 0.0
  %v3382 = vmax.f32 %v3374, 0.0
  %v3383 = vld [vmem:[%s2 + $0x98] sm:$0xff]
  %v3384 = vld [vmem:[%s2 + $0xa0] sm:$0xff]
  %v3385 = vld [vmem:[%s2 + $0xa8] sm:$0xff]
  %v3386 = vld [vmem:[%s2 + $0xb0] sm:$0xff]
  %v3387 = vld [vmem:[%s2 + $0xdc] sm:$0x1]
  %v3388 = vperm.slane %v3387, 0
  %v3390 = vsel %vm1472, %v3375, 0
  %v3393 = vsel %vm1472, %v3376, 0
  %v3396 = vsel %vm1472, %v3377, 0
  %v3399 = vsel %vm1472, %v3378, 0
  %v3402 = vsel %vm1472, %v3379, 0
  %v3405 = vsel %vm1472, %v3380, 0
  %v3408 = vsel %vm1472, %v3381, 0
  %v3411 = vsel %vm1472, %v3382, 0
  %3413 = vmatpush.msra.mxu0 0.0
  %3414 = vmatpush.msra.mxu0 0.0
  %3415 = vmatpush.msra.mxu0 0.0
  %3416 = vmatpush.msra.mxu0 0.0
  %3417 = vmatpush.msra.mxu0 0.0
  %3418 = vmatpush.msra.mxu0 0.0
  %3419 = vmatpush.msra.mxu0 0.0
  %3420 = vmatpush.msra.mxu0 0.0
  %3421 = vmatpush.msra.mxu0 0.0
  %3422 = vmatpush.msra.mxu0 0.0
  %3423 = vmatpush.msra.mxu0 0.0
  %3424 = vmatpush.msra.mxu0 0.0
  %3425 = vmatpush.msra.mxu0 %v3386
  %3426 = vmatpush.msra.mxu0 %v3385
  %3427 = vmatpush.msra.mxu0 %v3384
  %3428 = vmatpush.msra.mxu0 %v3383
  %3429 = vmatmul.f32.gmra.mxu0 %v3390
  %v3430 = vpop.f32.mrf.mxu0
  %v3431 = vadd.f32 %v3388, %v3430
  %3432 = vmatmul.f32.gmra.mxu0 %v3393
  %v3433 = vpop.f32.mrf.mxu0
  %v3434 = vadd.f32 %v3388, %v3433
  %3435 = vmatmul.f32.gmra.mxu0 %v3396
  %v3436 = vpop.f32.mrf.mxu0
  %v3437 = vadd.f32 %v3388, %v3436
  %3438 = vmatmul.f32.gmra.mxu0 %v3399
  %v3439 = vpop.f32.mrf.mxu0
  %v3440 = vadd.f32 %v3388, %v3439
  %3441 = vmatmul.f32.gmra.mxu0 %v3402
  %v3442 = vpop.f32.mrf.mxu0
  %v3443 = vadd.f32 %v3388, %v3442
  %3444 = vmatmul.f32.gmra.mxu0 %v3405
  %v3445 = vpop.f32.mrf.mxu0
  %v3446 = vadd.f32 %v3388, %v3445
  %3447 = vmatmul.f32.gmra.mxu0 %v3408
  %v3448 = vpop.f32.mrf.mxu0
  %v3449 = vadd.f32 %v3388, %v3448
  %3450 = vmatmul.f32.gmra.mxu0 %v3411
  %v3451 = vpop.f32.mrf.mxu0
  %v3452 = vadd.f32 %v3388, %v3451
  %3453 = vdwg.mxu0
  %v3454 = vmax.f32 %v3431, 0.0
  %v3455 = vmax.f32 %v3434, 0.0
  %v3456 = vmax.f32 %v3437, 0.0
  %v3457 = vmax.f32 %v3440, 0.0
  %v3458 = vmax.f32 %v3443, 0.0
  %v3459 = vmax.f32 %v3446, 0.0
  %v3460 = vmax.f32 %v3449, 0.0
  %v3461 = vmax.f32 %v3452, 0.0
  %v3462 = vld [vmem:[%s2 + $0xb8] sm:$0xff]
  %v3463 = vld [vmem:[%s2 + $0xc0] sm:$0xff]
  %v3464 = vld [vmem:[%s2 + $0xc8] sm:$0xff]
  %v3465 = vld [vmem:[%s2 + $0xd0] sm:$0xff]
  %v3466 = vld [vmem:[%s2 + $0xdd] sm:$0x1]
  %v3467 = vperm.slane %v3466, 0
  %v3469 = vsel %vm1472, %v3454, 0
  %v3472 = vsel %vm1472, %v3455, 0
  %v3475 = vsel %vm1472, %v3456, 0
  %v3478 = vsel %vm1472, %v3457, 0
  %v3481 = vsel %vm1472, %v3458, 0
  %v3484 = vsel %vm1472, %v3459, 0
  %v3487 = vsel %vm1472, %v3460, 0
  %v3490 = vsel %vm1472, %v3461, 0
  %3492 = vmatpush.msra.mxu0 0.0
  %3493 = vmatpush.msra.mxu0 0.0
  %3494 = vmatpush.msra.mxu0 0.0
  %3495 = vmatpush.msra.mxu0 0.0
  %3496 = vmatpush.msra.mxu0 0.0
  %3497 = vmatpush.msra.mxu0 0.0
  %3498 = vmatpush.msra.mxu0 0.0
  %3499 = vmatpush.msra.mxu0 0.0
  %3500 = vmatpush.msra.mxu0 0.0
  %3501 = vmatpush.msra.mxu0 0.0
  %3502 = vmatpush.msra.mxu0 0.0
  %3503 = vmatpush.msra.mxu0 0.0
  %3504 = vmatpush.msra.mxu0 %v3465
  %3505 = vmatpush.msra.mxu0 %v3464
  %3506 = vmatpush.msra.mxu0 %v3463
  %3507 = vmatpush.msra.mxu0 %v3462
  %3508 = vmatmul.f32.gmra.mxu0 %v3469
  %v3509 = vpop.f32.mrf.mxu0
  %v3510 = vadd.f32 %v3467, %v3509
  %3511 = vmatmul.f32.gmra.mxu0 %v3472
  %v3512 = vpop.f32.mrf.mxu0
  %v3513 = vadd.f32 %v3467, %v3512
  %3514 = vmatmul.f32.gmra.mxu0 %v3475
  %v3515 = vpop.f32.mrf.mxu0
  %v3516 = vadd.f32 %v3467, %v3515
  %3517 = vmatmul.f32.gmra.mxu0 %v3478
  %v3518 = vpop.f32.mrf.mxu0
  %v3519 = vadd.f32 %v3467, %v3518
  %3520 = vmatmul.f32.gmra.mxu0 %v3481
  %v3521 = vpop.f32.mrf.mxu0
  %v3522 = vadd.f32 %v3467, %v3521
  %3523 = vmatmul.f32.gmra.mxu0 %v3484
  %v3524 = vpop.f32.mrf.mxu0
  %v3525 = vadd.f32 %v3467, %v3524
  %3526 = vmatmul.f32.gmra.mxu0 %v3487
  %v3527 = vpop.f32.mrf.mxu0
  %v3528 = vadd.f32 %v3467, %v3527
  %3529 = vmatmul.f32.gmra.mxu0 %v3490
  %v3530 = vpop.f32.mrf.mxu0
  %v3531 = vadd.f32 %v3467, %v3530
  %3532 = vdwg.mxu0
  %v3533 = vmul.f32 %v3510, 0.5
  %v3534 = vmul.f32 %v3513, 0.5
  %v3535 = vmul.f32 %v3516, 0.5
  %v3536 = vmul.f32 %v3519, 0.5
  %v3537 = vmul.f32 %v3522, 0.5
  %v3538 = vmul.f32 %v3525, 0.5
  %v3539 = vmul.f32 %v3528, 0.5
  %v3540 = vmul.f32 %v3531, 0.5
  %v3541 = vtanh.pop %v3533
  %v3542 = vtanh.pop %v3534
  %v3543 = vtanh.pop %v3535
  %v3544 = vtanh.pop %v3536
  %v3545 = vtanh.pop %v3537
  %v3546 = vtanh.pop %v3538
  %v3547 = vtanh.pop %v3539
  %v3548 = vtanh.pop %v3540
  %v3549 = vadd.f32 %v3541, 1.0
  %v3550 = vadd.f32 %v3542, 1.0
  %v3551 = vadd.f32 %v3543, 1.0
  %v3552 = vadd.f32 %v3544, 1.0
  %v3553 = vadd.f32 %v3545, 1.0
  %v3554 = vadd.f32 %v3546, 1.0
  %v3555 = vadd.f32 %v3547, 1.0
  %v3556 = vadd.f32 %v3548, 1.0
  %v3557 = vmul.f32 %v3549, 0.5
  %v3558 = vmul.f32 %v3550, 0.5
  %v3559 = vmul.f32 %v3551, 0.5
  %v3560 = vmul.f32 %v3552, 0.5
  %v3561 = vmul.f32 %v3553, 0.5
  %v3562 = vmul.f32 %v3554, 0.5
  %v3563 = vmul.f32 %v3555, 0.5
  %v3564 = vmul.f32 %v3556, 0.5
  %v3565 = vmul.f32 %v3510, 10.0
  %v3566 = vmul.f32 %v3513, 10.0
  %v3567 = vmul.f32 %v3516, 10.0
  %v3568 = vmul.f32 %v3519, 10.0
  %v3569 = vmul.f32 %v3522, 10.0
  %v3570 = vmul.f32 %v3525, 10.0
  %v3571 = vmul.f32 %v3528, 10.0
  %v3572 = vmul.f32 %v3531, 10.0
  %v3573 = vmin.f32 %v3565, 20.0
  %v3574 = vmin.f32 %v3566, 20.0
  %v3575 = vmin.f32 %v3567, 20.0
  %v3576 = vmin.f32 %v3568, 20.0
  %v3577 = vmin.f32 %v3569, 20.0
  %v3578 = vmin.f32 %v3570, 20.0
  %v3579 = vmin.f32 %v3571, 20.0
  %v3580 = vmin.f32 %v3572, 20.0
  %vm3581 = vcmp.gt.f32.partialorder %v3565, 20.0
  %vm3582 = vcmp.gt.f32.partialorder %v3566, 20.0
  %vm3583 = vcmp.gt.f32.partialorder %v3567, 20.0
  %vm3584 = vcmp.gt.f32.partialorder %v3568, 20.0
  %vm3585 = vcmp.gt.f32.partialorder %v3569, 20.0
  %vm3586 = vcmp.gt.f32.partialorder %v3570, 20.0
  %vm3587 = vcmp.gt.f32.partialorder %v3571, 20.0
  %vm3588 = vcmp.gt.f32.partialorder %v3572, 20.0
  %v3589 = vmul.f32 %v3573, 1.442695
  %v3590 = vpow.pop %v3589
  %v3591 = vmul.f32 %v3574, 1.442695
  %v3592 = vpow.pop %v3591
  %v3593 = vmul.f32 %v3575, 1.442695
  %v3594 = vpow.pop %v3593
  %v3595 = vmul.f32 %v3576, 1.442695
  %v3596 = vpow.pop %v3595
  %v3597 = vmul.f32 %v3577, 1.442695
  %v3598 = vpow.pop %v3597
  %v3599 = vmul.f32 %v3578, 1.442695
  %v3600 = vpow.pop %v3599
  %v3601 = vmul.f32 %v3579, 1.442695
  %v3602 = vpow.pop %v3601
  %v3603 = vmul.f32 %v3580, 1.442695
  %v3604 = vpow.pop %v3603
  %v3605 = vadd.f32 %v3590, 1.0
  %v3606 = vadd.f32 %v3592, 1.0
  %v3607 = vadd.f32 %v3594, 1.0
  %v3608 = vadd.f32 %v3596, 1.0
  %v3609 = vadd.f32 %v3598, 1.0
  %v3610 = vadd.f32 %v3600, 1.0
  %v3611 = vadd.f32 %v3602, 1.0
  %v3612 = vadd.f32 %v3604, 1.0
  %v3613 = vlog2.pop %v3605
  %v3614 = vmul.f32 %v3613, 0.6931472
  %v3615 = vlog2.pop %v3606
  %v3616 = vmul.f32 %v3615, 0.6931472
  %v3617 = vlog2.pop %v3607
  %v3618 = vmul.f32 %v3617, 0.6931472
  %v3619 = vlog2.pop %v3608
  %v3620 = vmul.f32 %v3619, 0.6931472
  %v3621 = vlog2.pop %v3609
  %v3622 = vmul.f32 %v3621, 0.6931472
  %v3623 = vlog2.pop %v3610
  %v3624 = vmul.f32 %v3623, 0.6931472
  %v3625 = vlog2.pop %v3611
  %v3626 = vmul.f32 %v3625, 0.6931472
  %v3627 = vlog2.pop %v3612
  %v3628 = vmul.f32 %v3627, 0.6931472
  %v3629 = vrcp.pop 10.0
  %v3630 = vmul.f32 10.0, %v3629
  %v3631 = vsub.f32 1.0, %v3630
  %v3632 = vmul.f32 %v3629, %v3631
  %v3633 = vadd.f32 %v3629, %v3632
  %vm3634 = vweird.f32 %v3629
  %v3635 = vsel %vm3634, %v3629, %v3633
  %v3636 = vmul.f32 %v3614, %v3635
  %v3637 = vmul.f32 %v3616, %v3635
  %v3638 = vmul.f32 %v3618, %v3635
  %v3639 = vmul.f32 %v3620, %v3635
  %v3640 = vmul.f32 %v3622, %v3635
  %v3641 = vmul.f32 %v3624, %v3635
  %v3642 = vmul.f32 %v3626, %v3635
  %v3643 = vmul.f32 %v3628, %v3635
  %v3644 = vsel %vm3581, %v3510, %v3636
  %v3645 = vsel %vm3582, %v3513, %v3637
  %v3646 = vsel %vm3583, %v3516, %v3638
  %v3647 = vsel %vm3584, %v3519, %v3639
  %v3648 = vsel %vm3585, %v3522, %v3640
  %v3649 = vsel %vm3586, %v3525, %v3641
  %v3650 = vsel %vm3587, %v3528, %v3642
  %v3651 = vsel %vm3588, %v3531, %v3643
  %v3652 = vsub.f32 0.0, %v3644
  %v3653 = vsub.f32 0.0, %v3645
  %v3654 = vsub.f32 0.0, %v3646
  %v3655 = vsub.f32 0.0, %v3647
  %v3656 = vsub.f32 0.0, %v3648
  %v3657 = vsub.f32 0.0, %v3649
  %v3658 = vsub.f32 0.0, %v3650
  %v3659 = vsub.f32 0.0, %v3651
  %v3660 = vmul.f32 %v3652, 1.442695
  %v3661 = vpow.pop %v3660
  %v3662 = vmul.f32 %v3653, 1.442695
  %v3663 = vpow.pop %v3662
  %v3664 = vmul.f32 %v3654, 1.442695
  %v3665 = vpow.pop %v3664
  %v3666 = vmul.f32 %v3655, 1.442695
  %v3667 = vpow.pop %v3666
  %v3668 = vmul.f32 %v3656, 1.442695
  %v3669 = vpow.pop %v3668
  %v3670 = vmul.f32 %v3657, 1.442695
  %v3671 = vpow.pop %v3670
  %v3672 = vmul.f32 %v3658, 1.442695
  %v3673 = vpow.pop %v3672
  %v3674 = vmul.f32 %v3659, 1.442695
  %v3675 = vpow.pop %v3674
  %v3676 = vsub.f32 1.0, %v3661
  %v3677 = vsub.f32 1.0, %v3663
  %v3678 = vsub.f32 1.0, %v3665
  %v3679 = vsub.f32 1.0, %v3667
  %v3680 = vsub.f32 1.0, %v3669
  %v3681 = vsub.f32 1.0, %v3671
  %v3682 = vsub.f32 1.0, %v3673
  %v3683 = vsub.f32 1.0, %v3675
  %v3684 = vsub.f32 1.0, %v3676
  %v3685 = vsub.f32 1.0, %v3677
  %v3686 = vsub.f32 1.0, %v3678
  %v3687 = vsub.f32 1.0, %v3679
  %v3688 = vsub.f32 1.0, %v3680
  %v3689 = vsub.f32 1.0, %v3681
  %v3690 = vsub.f32 1.0, %v3682
  %3692 = vset.pattern.permute.xlu0 3
  %3693 = vperm.xlu0 %3692, %v3676
  %v3694 = vpop.permute.xlu0 %3693
  %v3696 = vmul.f32 %v3557, %v3694
  %v3697 = vadd.f32 %v3696, 0.0
  %v3698 = vadd.f32 %v3676, 0.0
  %v3699 = vmul.f32 %v3684, %v3677
  %3701 = vset.pattern.permute.xlu0 3
  %3702 = vperm.xlu0 %3701, %v3699
  %v3703 = vpop.permute.xlu0 %3702
  %v3705 = vmul.f32 %v3558, %v3703
  %v3706 = vadd.f32 %v3697, %v3705
  %v3707 = vadd.f32 %v3698, %v3699
  %v3708 = vmul.f32 %v3684, %v3685
  %v3709 = vmul.f32 %v3708, %v3678
  %3711 = vset.pattern.permute.xlu0 3
  %3712 = vperm.xlu0 %3711, %v3709
  %v3713 = vpop.permute.xlu0 %3712
  %v3715 = vmul.f32 %v3559, %v3713
  %v3716 = vadd.f32 %v3706, %v3715
  %v3717 = vadd.f32 %v3707, %v3709
  %v3718 = vmul.f32 %v3708, %v3686
  %v3719 = vmul.f32 %v3718, %v3679
  %3721 = vset.pattern.permute.xlu0 3
  %3722 = vperm.xlu0 %3721, %v3719
  %v3723 = vpop.permute.xlu0 %3722
  %v3725 = vmul.f32 %v3560, %v3723
  %v3726 = vadd.f32 %v3716, %v3725
  %v3727 = vadd.f32 %v3717, %v3719
  %v3728 = vmul.f32 %v3718, %v3687
  %v3729 = vmul.f32 %v3728, %v3680
  %3731 = vset.pattern.permute.xlu0 3
  %3732 = vperm.xlu0 %3731, %v3729
  %v3733 = vpop.permute.xlu0 %3732
  %v3735 = vmul.f32 %v3561, %v3733
  %v3736 = vadd.f32 %v3726, %v3735
  %v3737 = vadd.f32 %v3727, %v3729
  %v3738 = vmul.f32 %v3728, %v3688
  %v3739 = vmul.f32 %v3738, %v3681
  %3741 = vset.pattern.permute.xlu0 3
  %3742 = vperm.xlu0 %3741, %v3739
  %v3743 = vpop.permute.xlu0 %3742
  %v3745 = vmul.f32 %v3562, %v3743
  %v3746 = vadd.f32 %v3736, %v3745
  %v3747 = vadd.f32 %v3737, %v3739
  %v3748 = vmul.f32 %v3738, %v3689
  %v3749 = vmul.f32 %v3748, %v3682
  %3751 = vset.pattern.permute.xlu0 3
  %3752 = vperm.xlu0 %3751, %v3749
  %v3753 = vpop.permute.xlu0 %3752
  %v3755 = vmul.f32 %v3563, %v3753
  %v3756 = vadd.f32 %v3746, %v3755
  %v3757 = vadd.f32 %v3747, %v3749
  %v3758 = vmul.f32 %v3748, %v3690
  %v3759 = vmul.f32 %v3758, %v3683
  %3761 = vset.pattern.permute.xlu0 3
  %3762 = vperm.xlu0 %3761, %v3759
  %v3763 = vpop.permute.xlu0 %3762
  %v3765 = vmul.f32 %v3564, %v3763
  %v3766 = vadd.f32 %v3756, %v3765
  %v3767 = vadd.f32 %v3757, %v3759
  %v3768 = vsub.f32 1.0, %v3767
  %3770 = vset.pattern.permute.xlu0 3
  %3771 = vperm.xlu0 %3770, %v3768
  %v3772 = vpop.permute.xlu0 %3771
  %v3774 = vmul.f32 %v22, %v3772
  %v3775 = vadd.f32 %v3766, %v3774
  %vm3776 = vcmask 23552
  %3777 = vst.msk [vmem:[%s3] sm:$0xff] %vm3776, %v3775
  // Predicated region
  $region14: #{rsen_render.1} parent=0 // pred_check
    _
  $region15: #{rsen_render.1} parent=0 // pred_check_branch
    %3779 = sbr.rel (0) target = $region17
  $region16: #{rsen_render.1} parent=0 // pred_region
    _
  $region17: #{rsen_render.1} parent=0 // pred_fallthru
    _
  // Predicated region
  $region18: #{rsen_render.1} parent=0 // pred_check
    _
  $region19: #{rsen_render.1} parent=0 // pred_check_branch
    %3781 = sbr.rel (0) target = $region21
  $region20: #{rsen_render.1} parent=0 // pred_region
    _
  $region21: #{rsen_render.1} parent=0 // pred_fallthru
    _

</llo_original>
